<compile_context>
chip_gen: v5e
topology: v5e:2x2
jax: 0.10.0
libtpu: 0.0.40
codegen_flags: <defaults>
</compile_context>

<pallas_src>
import numpy as np
import jax
import jax.numpy as jnp
from jax import lax
from jax.experimental import pallas as pl
from jax.experimental.pallas import tpu as pltpu


# ----------------------------------------------------------------------------
# Pallas kernel (built per static width / pool flag).
# ----------------------------------------------------------------------------
def _make_kernel(w, pool):
    def kernel(x_ref, w0_ref, wc_ref, bcr_ref, g_ref, be_ref, out_ref, *scratch):
        f32 = jnp.float32
        bf16 = jnp.bfloat16
        rw = x_ref.shape[0]          # N*H*W rows

        # Width position of every flattened row; taps whose source crosses an
        # (n, h) row-group boundary are masked to zero (the 1x5 conv zero-pads
        # along W only).  The same mask also covers pltpu.roll's end-of-array
        # wraparound rows.
        wpos = lax.broadcasted_iota(jnp.int32, (rw, 1), 0) % w
        masks = {s: (wpos + s >= 0) & (wpos + s < w) for s in (-2, -1, 1, 2)}

        def batchnorm(v, i):
            # Training-mode BN over all rows (=N,H,W), fused affine.
            m = jnp.mean(v, axis=0, keepdims=True)        # (1, C) sublane reduce
            ms = jnp.mean(v * v, axis=0, keepdims=True)   # (1, C)
            var = ms - m * m
            scale = g_ref[i] * lax.rsqrt(var + 1e-5)      # (1, C)
            shift = be_ref[i] - m * scale                 # (1, C)
            return v * scale + shift                      # 2 full-tile VPU ops

        def conv1x5(v, idx):
            # out[., co] = sum_{s, ci} v[. + s, ci] * W[idx, s+2, ci, co]
            # Center tap needs no shift/mask; the 4 shifted taps use the XLU
            # (roll) + a select, then accumulate over 5 small bf16 MXU dots.
            acc = jnp.dot(v.astype(bf16), wc_ref[5 * idx + 2],
                          preferred_element_type=f32)
            for s in (-2, -1, 1, 2):
                rolled = pltpu.roll(v, (-s) % rw, axis=0)   # rolled[r] = v[r+s]
                tap = jnp.where(masks[s], rolled, 0.0).astype(bf16)
                acc = acc + jnp.dot(tap, wc_ref[5 * idx + s + 2],
                                    preferred_element_type=f32)
            return acc

        # Stem: Conv2d(in, hid, (1,1)) + BN.  The stem bias is dropped in-kernel:
        # it is exactly cancelled by BN's batch-mean subtraction.
        h = jnp.dot(x_ref[...], w0_ref[...], preferred_element_type=f32)
        h = batchnorm(h, 0)

        # Two residual units: x + BN(Conv1x5(BN(ReLU(Conv1x5(x) + b))))
        # (the second conv's bias is dropped -- cancelled by the following BN).
        for u in range(2):
            r = h
            y = conv1x5(r, 2 * u) + bcr_ref[u]        # bias kept (feeds ReLU)
            y = jnp.maximum(y, 0.0)
            y = batchnorm(y, 1 + 2 * u)
            y = conv1x5(y, 2 * u + 1)                 # bias dropped (feeds BN)
            y = batchnorm(y, 2 + 2 * u)
            h = r + y

        if pool:
            # MaxPool2d((1, 2)): roll-by-1 + max, one store, one stride-2 read.
            # W is even, so each pool window is a pair of adjacent flat rows.
            pool_ref = scratch[0]
            pool_ref[...] = jnp.maximum(h, pltpu.roll(h, rw - 1, axis=0))
            out_ref[...] = pool_ref[pl.ds(0, out_ref.shape[0], 2), :]
        else:
            out_ref[...] = h

    return kernel


# ----------------------------------------------------------------------------
# Plain-JAX glue: layout plumbing + pallas_call.
# ----------------------------------------------------------------------------
def _pad_last(a, n):
    pad = n - a.shape[-1]
    if pad == 0:
        return a
    return jnp.pad(a, [(0, 0)] * (a.ndim - 1) + [(0, pad)])


def residual_stack_forward(x_nchw, params, pool=True):
    n, cin, h, w = x_nchw.shape
    hid = params["w0"].shape[1]
    hidp = ((hid + 127) // 128) * 128        # lane-dense channel axis
    if pool:
        assert w % 2 == 0, "the (1,2) max-pool path assumes an even width"
    rw = n * h * w
    wout = (w // 2) if pool else w
    out_rows = n * h * wout

    # NCHW -> (N*H*W, C) rows (W fastest), channels on the lane axis; matmul
    # operands cast to bf16 on the host (f32 accumulation in-kernel).
    # TODO(synk): at scale, fold this transpose/cast into the producing op or
    # the input BlockSpec once a row-tiled grid exists.
    x2 = jnp.transpose(x_nchw, (0, 2, 3, 1)).reshape(rw, cin).astype(jnp.bfloat16)

    # Zero-pad the channel axis to 128 so every intermediate / output store is
    # lane-dense.  Padded lanes stay exactly zero: zero weight columns/biases,
    # and gamma = beta = 0 so BN of an all-zero channel is zero.
    w0 = _pad_last(params["w0"], hidp).astype(jnp.bfloat16)            # (Cin, hidp)
    wc = jnp.pad(params["wc"],
                 ((0, 0), (0, 0), (0, hidp - hid), (0, hidp - hid)))
    wc = wc.reshape(4 * 5, hidp, hidp).astype(jnp.bfloat16)            # (20, hidp, hidp)
    bc_relu = _pad_last(jnp.stack([params["bc"][0], params["bc"][2]]), hidp)  # (2,1,hidp)
    g = _pad_last(params["g"], hidp)                                   # (5, 1, hidp)
    be = _pad_last(params["be"], hidp)                                 # (5, 1, hidp)

    vmem = pl.BlockSpec(memory_space=pltpu.MemorySpace.VMEM)
    out2 = pl.pallas_call(
        _make_kernel(w, pool),
        out_shape=jax.ShapeDtypeStruct((out_rows, hidp), jnp.float32),
        in_specs=[vmem] * 6,
        out_specs=vmem,
        scratch_shapes=([pltpu.VMEM((rw, hidp), jnp.float32)] if pool else []),
    )(x2, w0, wc, bc_relu, g, be)

    out = out2[:, :hid].reshape(n, h, wout, hid)
    return jnp.transpose(out, (0, 3, 1, 2))        # back to NCHW


# ----------------------------------------------------------------------------
# Deterministic synthetic parameters (shapes follow the PyTorch __init__).
# ----------------------------------------------------------------------------
def make_params(key, in_dim, hid_dim):
    ks = jax.random.split(key, 6)
    return {
        # Conv2d(in, hid, (1,1)) weight stored transposed as (Cin, Cout); bias (1, Cout)
        "w0": jax.random.normal(ks[0], (in_dim, hid_dim), jnp.float32) * 0.2,
        "b0": jax.random.normal(ks[1], (1, hid_dim), jnp.float32) * 0.1,
        # four Conv2d(hid, hid, (1,5)) layers: (layer, tap, Cin, Cout); bias (layer,1,Cout)
        "wc": jax.random.normal(ks[2], (4, 5, hid_dim, hid_dim), jnp.float32) * 0.05,
        "bc": jax.random.normal(ks[3], (4, 1, hid_dim), jnp.float32) * 0.1,
        # five BatchNorm2d layers (bn0, bn1a, bn1b, bn2a, bn2b): gamma / beta (layer,1,C)
        "g": 1.0 + jax.random.normal(ks[4], (5, 1, hid_dim), jnp.float32) * 0.1,
        "be": jax.random.normal(ks[5], (5, 1, hid_dim), jnp.float32) * 0.1,
    }


# ----------------------------------------------------------------------------
# Pure-JAX f32 reference (structured differently, uses ALL biases -- verifies
# that dropping the BN-cancelled biases in the kernel is mathematically exact).
# ----------------------------------------------------------------------------
def reference_forward(x_nchw, p, pool=True):
    x = jnp.transpose(x_nchw, (0, 2, 3, 1)).astype(jnp.float32)   # NHWC

    def bn(v, i):
        m = jnp.mean(v, axis=(0, 1, 2), keepdims=True)
        var = jnp.mean((v - m) ** 2, axis=(0, 1, 2), keepdims=True)
        return p["g"][i, 0] * (v - m) * lax.rsqrt(var + 1e-5) + p["be"][i, 0]

    def conv5(v, idx):
        w = v.shape[2]
        vp = jnp.pad(v, ((0, 0), (0, 0), (2, 2), (0, 0)))
        out = jnp.zeros(v.shape[:3] + (p["wc"].shape[-1],), jnp.float32)
        for k in range(5):
            out = out + jnp.einsum("nhwc,cd->nhwd", vp[:, :, k:k + w, :], p["wc"][idx, k])
        return out + p["bc"][idx, 0]

    h = jnp.einsum("nhwc,cd->nhwd", x, p["w0"]) + p["b0"][0]
    h = bn(h, 0)
    for u in range(2):
        r = h
        y = conv5(r, 2 * u)
        y = jnp.maximum(y, 0.0)
        y = bn(y, 1 + 2 * u)
        y = conv5(y, 2 * u + 1)
        y = bn(y, 2 + 2 * u)
        h = r + y
    if pool:
        n, hh, w, c = h.shape
        h = jnp.max(h.reshape(n, hh, w // 2, 2, c), axis=3)
    return jnp.transpose(h, (0, 3, 1, 2))


if __name__ == "__main__":
    key = jax.random.PRNGKey(0)
    kx, kp = jax.random.split(key)

    N, IN_DIM, H, W = 2, 4, 4, 16
    HID = 32

    x = jax.random.normal(kx, (N, IN_DIM, H, W), jnp.float32)
    params = make_params(kp, IN_DIM, HID)

    out = jax.block_until_ready(residual_stack_forward(x, params, pool=True))
    assert out.shape == (N, HID, H, W // 2), out.shape

    ref = jax.block_until_ready(reference_forward(x, params, pool=True))
    # bf16 MXU inputs (f32 accumulation) -> slightly looser tolerance than pure f32.
    if not np.allclose(np.asarray(out), np.asarray(ref), atol=5e-2, rtol=5e-2):
        err = float(np.max(np.abs(np.asarray(out) - np.asarray(ref))))
        raise AssertionError(f"Pallas kernel output mismatch, max abs err = {err}")

    print("KERNEL_OK")
</pallas_src>

<mosaic_0001>
module attributes {stable_mosaic.version = 11 : i64} {
  func.func @kernel(%arg0: memref<128x4xbf16, #tpu.memory_space<vmem>>, %arg1: memref<4x128xbf16, #tpu.memory_space<vmem>>, %arg2: memref<20x128x128xbf16, #tpu.memory_space<vmem>>, %arg3: memref<2x1x128xf32, #tpu.memory_space<vmem>>, %arg4: memref<5x1x128xf32, #tpu.memory_space<vmem>>, %arg5: memref<5x1x128xf32, #tpu.memory_space<vmem>>, %arg6: memref<64x128xf32, #tpu.memory_space<vmem>>, %arg7: memref<128x128xf32, #tpu.memory_space<vmem>>) attributes {dimension_semantics = [], scalar_prefetch = 0 : i64, scratch_operands = 1 : i64, tpu.core_type = #tpu.core_type<tc>} {
    %0 = tpu.iota {dimensions = array<i32: 0>} : vector<128x1xi32>
    %c16_i32 = arith.constant 16 : i32
    %c0_i32 = arith.constant 0 : i32
    %1 = arith.cmpi eq, %c16_i32, %c0_i32 : i32
    %c1_i32 = arith.constant 1 : i32
    %2 = arith.select %1, %c1_i32, %c16_i32 : i32
    %3 = vector.broadcast %2 : i32 to vector<128x1xi32>
    %4 = arith.remsi %0, %3 : vector<128x1xi32>
    %c0_i32_0 = arith.constant 0 : i32
    %5 = vector.broadcast %c0_i32_0 : i32 to vector<128x1xi32>
    %6 = arith.cmpi ne, %4, %5 : vector<128x1xi32>
    %c0_i32_1 = arith.constant 0 : i32
    %7 = vector.broadcast %c0_i32_1 : i32 to vector<128x1xi32>
    %8 = arith.cmpi slt, %4, %7 : vector<128x1xi32>
    %c0_i32_2 = arith.constant 0 : i32
    %9 = arith.cmpi slt, %2, %c0_i32_2 : i32
    %10 = vector.broadcast %9 : i1 to vector<128x1xi1>
    %11 = vector.broadcast %10 : vector<128x1xi1> to vector<128x1xi1>
    %12 = arith.xori %8, %11 : vector<128x1xi1>
    %13 = arith.andi %12, %6 : vector<128x1xi1>
    %14 = vector.broadcast %2 : i32 to vector<128x1xi32>
    %15 = arith.addi %4, %14 : vector<128x1xi32>
    %16 = arith.select %13, %15, %4 : vector<128x1xi1>, vector<128x1xi32>
    %c-2_i32 = arith.constant -2 : i32
    %17 = vector.broadcast %c-2_i32 : i32 to vector<128x1xi32>
    %18 = arith.addi %16, %17 : vector<128x1xi32>
    %c0_i32_3 = arith.constant 0 : i32
    %19 = vector.broadcast %c0_i32_3 : i32 to vector<128x1xi32>
    %20 = arith.cmpi sge, %18, %19 : vector<128x1xi32>
    %c-2_i32_4 = arith.constant -2 : i32
    %21 = vector.broadcast %c-2_i32_4 : i32 to vector<128x1xi32>
    %22 = arith.addi %16, %21 : vector<128x1xi32>
    %c16_i32_5 = arith.constant 16 : i32
    %23 = vector.broadcast %c16_i32_5 : i32 to vector<128x1xi32>
    %24 = arith.cmpi slt, %22, %23 : vector<128x1xi32>
    %25 = arith.andi %20, %24 : vector<128x1xi1>
    %c-1_i32 = arith.constant -1 : i32
    %26 = vector.broadcast %c-1_i32 : i32 to vector<128x1xi32>
    %27 = arith.addi %16, %26 : vector<128x1xi32>
    %c0_i32_6 = arith.constant 0 : i32
    %28 = vector.broadcast %c0_i32_6 : i32 to vector<128x1xi32>
    %29 = arith.cmpi sge, %27, %28 : vector<128x1xi32>
    %c-1_i32_7 = arith.constant -1 : i32
    %30 = vector.broadcast %c-1_i32_7 : i32 to vector<128x1xi32>
    %31 = arith.addi %16, %30 : vector<128x1xi32>
    %c16_i32_8 = arith.constant 16 : i32
    %32 = vector.broadcast %c16_i32_8 : i32 to vector<128x1xi32>
    %33 = arith.cmpi slt, %31, %32 : vector<128x1xi32>
    %34 = arith.andi %29, %33 : vector<128x1xi1>
    %c1_i32_9 = arith.constant 1 : i32
    %35 = vector.broadcast %c1_i32_9 : i32 to vector<128x1xi32>
    %36 = arith.addi %16, %35 : vector<128x1xi32>
    %c0_i32_10 = arith.constant 0 : i32
    %37 = vector.broadcast %c0_i32_10 : i32 to vector<128x1xi32>
    %38 = arith.cmpi sge, %36, %37 : vector<128x1xi32>
    %c1_i32_11 = arith.constant 1 : i32
    %39 = vector.broadcast %c1_i32_11 : i32 to vector<128x1xi32>
    %40 = arith.addi %16, %39 : vector<128x1xi32>
    %c16_i32_12 = arith.constant 16 : i32
    %41 = vector.broadcast %c16_i32_12 : i32 to vector<128x1xi32>
    %42 = arith.cmpi slt, %40, %41 : vector<128x1xi32>
    %43 = arith.andi %38, %42 : vector<128x1xi1>
    %c2_i32 = arith.constant 2 : i32
    %44 = vector.broadcast %c2_i32 : i32 to vector<128x1xi32>
    %45 = arith.addi %16, %44 : vector<128x1xi32>
    %c0_i32_13 = arith.constant 0 : i32
    %46 = vector.broadcast %c0_i32_13 : i32 to vector<128x1xi32>
    %47 = arith.cmpi sge, %45, %46 : vector<128x1xi32>
    %c2_i32_14 = arith.constant 2 : i32
    %48 = vector.broadcast %c2_i32_14 : i32 to vector<128x1xi32>
    %49 = arith.addi %16, %48 : vector<128x1xi32>
    %c16_i32_15 = arith.constant 16 : i32
    %50 = vector.broadcast %c16_i32_15 : i32 to vector<128x1xi32>
    %51 = arith.cmpi slt, %49, %50 : vector<128x1xi32>
    %52 = arith.andi %47, %51 : vector<128x1xi1>
    %c0 = arith.constant 0 : index
    %c0_16 = arith.constant 0 : index
    %53 = vector.load %arg0[%c0, %c0_16] : memref<128x4xbf16, #tpu.memory_space<vmem>>, vector<128x4xbf16>
    %c0_17 = arith.constant 0 : index
    %c0_18 = arith.constant 0 : index
    %54 = vector.load %arg1[%c0_17, %c0_18] : memref<4x128xbf16, #tpu.memory_space<vmem>>, vector<4x128xbf16>
    %cst = arith.constant dense<0.000000e+00> : vector<128x128xf32>
    %55 = tpu.matmul %53, %54, %cst {dimension_numbers = #tpu.dot_dimension_numbers<[1], [0], [0], [1], [0, 0, 1, 1], [], []>} : vector<128x4xbf16>, vector<4x128xbf16>, vector<128x128xf32> -> vector<128x128xf32>
    %cst_19 = arith.constant dense<0.000000e+00> : vector<128xf32>
    %56 = vector.multi_reduction <add>, %55, %cst_19 [0] : vector<128x128xf32> to vector<128xf32>
    %57 = vector.shape_cast %56 : vector<128xf32> to vector<1x128xf32>
    %cst_20 = arith.constant 1.280000e+02 : f32
    %58 = vector.broadcast %cst_20 : f32 to vector<1x128xf32>
    %59 = arith.divf %57, %58 : vector<1x128xf32>
    %60 = arith.mulf %55, %55 : vector<128x128xf32>
    %cst_21 = arith.constant dense<0.000000e+00> : vector<128xf32>
    %61 = vector.multi_reduction <add>, %60, %cst_21 [0] : vector<128x128xf32> to vector<128xf32>
    %62 = vector.shape_cast %61 : vector<128xf32> to vector<1x128xf32>
    %cst_22 = arith.constant 1.280000e+02 : f32
    %63 = vector.broadcast %cst_22 : f32 to vector<1x128xf32>
    %64 = arith.divf %62, %63 : vector<1x128xf32>
    %65 = arith.mulf %59, %59 : vector<1x128xf32>
    %66 = arith.subf %64, %65 : vector<1x128xf32>
    %c0_23 = arith.constant 0 : index
    %c0_24 = arith.constant 0 : index
    %c0_25 = arith.constant 0 : index
    %67 = vector.load %arg4[%c0_23, %c0_24, %c0_25] : memref<5x1x128xf32, #tpu.memory_space<vmem>>, vector<1x1x128xf32>
    %68 = vector.shape_cast %67 : vector<1x1x128xf32> to vector<1x128xf32>
    %cst_26 = arith.constant 9.99999974E-6 : f32
    %69 = vector.broadcast %cst_26 : f32 to vector<1x128xf32>
    %70 = arith.addf %66, %69 : vector<1x128xf32>
    %71 = math.rsqrt %70 : vector<1x128xf32>
    %72 = arith.mulf %68, %71 : vector<1x128xf32>
    %c0_27 = arith.constant 0 : index
    %c0_28 = arith.constant 0 : index
    %c0_29 = arith.constant 0 : index
    %73 = vector.load %arg5[%c0_27, %c0_28, %c0_29] : memref<5x1x128xf32, #tpu.memory_space<vmem>>, vector<1x1x128xf32>
    %74 = vector.shape_cast %73 : vector<1x1x128xf32> to vector<1x128xf32>
    %75 = arith.mulf %59, %72 : vector<1x128xf32>
    %76 = arith.subf %74, %75 : vector<1x128xf32>
    %77 = vector.broadcast %72 : vector<1x128xf32> to vector<128x128xf32>
    %78 = arith.mulf %55, %77 : vector<128x128xf32>
    %79 = vector.broadcast %76 : vector<1x128xf32> to vector<128x128xf32>
    %80 = arith.addf %78, %79 : vector<128x128xf32>
    %81 = arith.truncf %80 : vector<128x128xf32> to vector<128x128xbf16>
    %c2 = arith.constant 2 : index
    %c0_30 = arith.constant 0 : index
    %c0_31 = arith.constant 0 : index
    %82 = vector.load %arg2[%c2, %c0_30, %c0_31] : memref<20x128x128xbf16, #tpu.memory_space<vmem>>, vector<1x128x128xbf16>
    %83 = vector.shape_cast %82 : vector<1x128x128xbf16> to vector<128x128xbf16>
    %cst_32 = arith.constant dense<0.000000e+00> : vector<128x128xf32>
    %84 = tpu.matmul %81, %83, %cst_32 {dimension_numbers = #tpu.dot_dimension_numbers<[1], [0], [0], [1], [0, 0, 1, 1], [], []>} : vector<128x128xbf16>, vector<128x128xbf16>, vector<128x128xf32> -> vector<128x128xf32>
    %c2_i32_33 = arith.constant 2 : i32
    %85 = tpu.dynamic_rotate %80 by %c2_i32_33 dim 0 : vector<128x128xf32>, i32 -> vector<128x128xf32>
    %cst_34 = arith.constant 0.000000e+00 : f32
    %86 = vector.shape_cast %25 : vector<128x1xi1> to vector<128x1xi1>
    %87 = vector.broadcast %86 : vector<128x1xi1> to vector<128x128xi1>
    %88 = vector.broadcast %cst_34 : f32 to vector<128x128xf32>
    %89 = arith.select %87, %85, %88 : vector<128x128xi1>, vector<128x128xf32>
    %90 = arith.truncf %89 : vector<128x128xf32> to vector<128x128xbf16>
    %c0_35 = arith.constant 0 : index
    %c0_36 = arith.constant 0 : index
    %c0_37 = arith.constant 0 : index
    %91 = vector.load %arg2[%c0_35, %c0_36, %c0_37] : memref<20x128x128xbf16, #tpu.memory_space<vmem>>, vector<1x128x128xbf16>
    %92 = vector.shape_cast %91 : vector<1x128x128xbf16> to vector<128x128xbf16>
    %cst_38 = arith.constant dense<0.000000e+00> : vector<128x128xf32>
    %93 = tpu.matmul %90, %92, %cst_38 {dimension_numbers = #tpu.dot_dimension_numbers<[1], [0], [0], [1], [0, 0, 1, 1], [], []>} : vector<128x128xbf16>, vector<128x128xbf16>, vector<128x128xf32> -> vector<128x128xf32>
    %94 = arith.addf %84, %93 : vector<128x128xf32>
    %c1_i32_39 = arith.constant 1 : i32
    %95 = tpu.dynamic_rotate %80 by %c1_i32_39 dim 0 : vector<128x128xf32>, i32 -> vector<128x128xf32>
    %cst_40 = arith.constant 0.000000e+00 : f32
    %96 = vector.shape_cast %34 : vector<128x1xi1> to vector<128x1xi1>
    %97 = vector.broadcast %96 : vector<128x1xi1> to vector<128x128xi1>
    %98 = vector.broadcast %cst_40 : f32 to vector<128x128xf32>
    %99 = arith.select %97, %95, %98 : vector<128x128xi1>, vector<128x128xf32>
    %100 = arith.truncf %99 : vector<128x128xf32> to vector<128x128xbf16>
    %c1 = arith.constant 1 : index
    %c0_41 = arith.constant 0 : index
    %c0_42 = arith.constant 0 : index
    %101 = vector.load %arg2[%c1, %c0_41, %c0_42] : memref<20x128x128xbf16, #tpu.memory_space<vmem>>, vector<1x128x128xbf16>
    %102 = vector.shape_cast %101 : vector<1x128x128xbf16> to vector<128x128xbf16>
    %cst_43 = arith.constant dense<0.000000e+00> : vector<128x128xf32>
    %103 = tpu.matmul %100, %102, %cst_43 {dimension_numbers = #tpu.dot_dimension_numbers<[1], [0], [0], [1], [0, 0, 1, 1], [], []>} : vector<128x128xbf16>, vector<128x128xbf16>, vector<128x128xf32> -> vector<128x128xf32>
    %104 = arith.addf %94, %103 : vector<128x128xf32>
    %c127_i32 = arith.constant 127 : i32
    %105 = tpu.dynamic_rotate %80 by %c127_i32 dim 0 : vector<128x128xf32>, i32 -> vector<128x128xf32>
    %cst_44 = arith.constant 0.000000e+00 : f32
    %106 = vector.shape_cast %43 : vector<128x1xi1> to vector<128x1xi1>
    %107 = vector.broadcast %106 : vector<128x1xi1> to vector<128x128xi1>
    %108 = vector.broadcast %cst_44 : f32 to vector<128x128xf32>
    %109 = arith.select %107, %105, %108 : vector<128x128xi1>, vector<128x128xf32>
    %110 = arith.truncf %109 : vector<128x128xf32> to vector<128x128xbf16>
    %c3 = arith.constant 3 : index
    %c0_45 = arith.constant 0 : index
    %c0_46 = arith.constant 0 : index
    %111 = vector.load %arg2[%c3, %c0_45, %c0_46] : memref<20x128x128xbf16, #tpu.memory_space<vmem>>, vector<1x128x128xbf16>
    %112 = vector.shape_cast %111 : vector<1x128x128xbf16> to vector<128x128xbf16>
    %cst_47 = arith.constant dense<0.000000e+00> : vector<128x128xf32>
    %113 = tpu.matmul %110, %112, %cst_47 {dimension_numbers = #tpu.dot_dimension_numbers<[1], [0], [0], [1], [0, 0, 1, 1], [], []>} : vector<128x128xbf16>, vector<128x128xbf16>, vector<128x128xf32> -> vector<128x128xf32>
    %114 = arith.addf %104, %113 : vector<128x128xf32>
    %c126_i32 = arith.constant 126 : i32
    %115 = tpu.dynamic_rotate %80 by %c126_i32 dim 0 : vector<128x128xf32>, i32 -> vector<128x128xf32>
    %cst_48 = arith.constant 0.000000e+00 : f32
    %116 = vector.shape_cast %52 : vector<128x1xi1> to vector<128x1xi1>
    %117 = vector.broadcast %116 : vector<128x1xi1> to vector<128x128xi1>
    %118 = vector.broadcast %cst_48 : f32 to vector<128x128xf32>
    %119 = arith.select %117, %115, %118 : vector<128x128xi1>, vector<128x128xf32>
    %120 = arith.truncf %119 : vector<128x128xf32> to vector<128x128xbf16>
    %c4 = arith.constant 4 : index
    %c0_49 = arith.constant 0 : index
    %c0_50 = arith.constant 0 : index
    %121 = vector.load %arg2[%c4, %c0_49, %c0_50] : memref<20x128x128xbf16, #tpu.memory_space<vmem>>, vector<1x128x128xbf16>
    %122 = vector.shape_cast %121 : vector<1x128x128xbf16> to vector<128x128xbf16>
    %cst_51 = arith.constant dense<0.000000e+00> : vector<128x128xf32>
    %123 = tpu.matmul %120, %122, %cst_51 {dimension_numbers = #tpu.dot_dimension_numbers<[1], [0], [0], [1], [0, 0, 1, 1], [], []>} : vector<128x128xbf16>, vector<128x128xbf16>, vector<128x128xf32> -> vector<128x128xf32>
    %124 = arith.addf %114, %123 : vector<128x128xf32>
    %c0_52 = arith.constant 0 : index
    %c0_53 = arith.constant 0 : index
    %c0_54 = arith.constant 0 : index
    %125 = vector.load %arg3[%c0_52, %c0_53, %c0_54] : memref<2x1x128xf32, #tpu.memory_space<vmem>>, vector<1x1x128xf32>
    %126 = vector.shape_cast %125 : vector<1x1x128xf32> to vector<1x128xf32>
    %127 = vector.broadcast %126 : vector<1x128xf32> to vector<128x128xf32>
    %128 = arith.addf %124, %127 : vector<128x128xf32>
    %cst_55 = arith.constant 0.000000e+00 : f32
    %129 = vector.broadcast %cst_55 : f32 to vector<128x128xf32>
    %130 = arith.maximumf %128, %129 : vector<128x128xf32>
    %cst_56 = arith.constant dense<0.000000e+00> : vector<128xf32>
    %131 = vector.multi_reduction <add>, %130, %cst_56 [0] : vector<128x128xf32> to vector<128xf32>
    %132 = vector.shape_cast %131 : vector<128xf32> to vector<1x128xf32>
    %cst_57 = arith.constant 1.280000e+02 : f32
    %133 = vector.broadcast %cst_57 : f32 to vector<1x128xf32>
    %134 = arith.divf %132, %133 : vector<1x128xf32>
    %135 = arith.mulf %130, %130 : vector<128x128xf32>
    %cst_58 = arith.constant dense<0.000000e+00> : vector<128xf32>
    %136 = vector.multi_reduction <add>, %135, %cst_58 [0] : vector<128x128xf32> to vector<128xf32>
    %137 = vector.shape_cast %136 : vector<128xf32> to vector<1x128xf32>
    %cst_59 = arith.constant 1.280000e+02 : f32
    %138 = vector.broadcast %cst_59 : f32 to vector<1x128xf32>
    %139 = arith.divf %137, %138 : vector<1x128xf32>
    %140 = arith.mulf %134, %134 : vector<1x128xf32>
    %141 = arith.subf %139, %140 : vector<1x128xf32>
    %c1_60 = arith.constant 1 : index
    %c0_61 = arith.constant 0 : index
    %c0_62 = arith.constant 0 : index
    %142 = vector.load %arg4[%c1_60, %c0_61, %c0_62] : memref<5x1x128xf32, #tpu.memory_space<vmem>>, vector<1x1x128xf32>
    %143 = vector.shape_cast %142 : vector<1x1x128xf32> to vector<1x128xf32>
    %cst_63 = arith.constant 9.99999974E-6 : f32
    %144 = vector.broadcast %cst_63 : f32 to vector<1x128xf32>
    %145 = arith.addf %141, %144 : vector<1x128xf32>
    %146 = math.rsqrt %145 : vector<1x128xf32>
    %147 = arith.mulf %143, %146 : vector<1x128xf32>
    %c1_64 = arith.constant 1 : index
    %c0_65 = arith.constant 0 : index
    %c0_66 = arith.constant 0 : index
    %148 = vector.load %arg5[%c1_64, %c0_65, %c0_66] : memref<5x1x128xf32, #tpu.memory_space<vmem>>, vector<1x1x128xf32>
    %149 = vector.shape_cast %148 : vector<1x1x128xf32> to vector<1x128xf32>
    %150 = arith.mulf %134, %147 : vector<1x128xf32>
    %151 = arith.subf %149, %150 : vector<1x128xf32>
    %152 = vector.broadcast %147 : vector<1x128xf32> to vector<128x128xf32>
    %153 = arith.mulf %130, %152 : vector<128x128xf32>
    %154 = vector.broadcast %151 : vector<1x128xf32> to vector<128x128xf32>
    %155 = arith.addf %153, %154 : vector<128x128xf32>
    %156 = arith.truncf %155 : vector<128x128xf32> to vector<128x128xbf16>
    %c7 = arith.constant 7 : index
    %c0_67 = arith.constant 0 : index
    %c0_68 = arith.constant 0 : index
    %157 = vector.load %arg2[%c7, %c0_67, %c0_68] : memref<20x128x128xbf16, #tpu.memory_space<vmem>>, vector<1x128x128xbf16>
    %158 = vector.shape_cast %157 : vector<1x128x128xbf16> to vector<128x128xbf16>
    %cst_69 = arith.constant dense<0.000000e+00> : vector<128x128xf32>
    %159 = tpu.matmul %156, %158, %cst_69 {dimension_numbers = #tpu.dot_dimension_numbers<[1], [0], [0], [1], [0, 0, 1, 1], [], []>} : vector<128x128xbf16>, vector<128x128xbf16>, vector<128x128xf32> -> vector<128x128xf32>
    %c2_i32_70 = arith.constant 2 : i32
    %160 = tpu.dynamic_rotate %155 by %c2_i32_70 dim 0 : vector<128x128xf32>, i32 -> vector<128x128xf32>
    %cst_71 = arith.constant 0.000000e+00 : f32
    %161 = vector.shape_cast %25 : vector<128x1xi1> to vector<128x1xi1>
    %162 = vector.broadcast %161 : vector<128x1xi1> to vector<128x128xi1>
    %163 = vector.broadcast %cst_71 : f32 to vector<128x128xf32>
    %164 = arith.select %162, %160, %163 : vector<128x128xi1>, vector<128x128xf32>
    %165 = arith.truncf %164 : vector<128x128xf32> to vector<128x128xbf16>
    %c5 = arith.constant 5 : index
    %c0_72 = arith.constant 0 : index
    %c0_73 = arith.constant 0 : index
    %166 = vector.load %arg2[%c5, %c0_72, %c0_73] : memref<20x128x128xbf16, #tpu.memory_space<vmem>>, vector<1x128x128xbf16>
    %167 = vector.shape_cast %166 : vector<1x128x128xbf16> to vector<128x128xbf16>
    %cst_74 = arith.constant dense<0.000000e+00> : vector<128x128xf32>
    %168 = tpu.matmul %165, %167, %cst_74 {dimension_numbers = #tpu.dot_dimension_numbers<[1], [0], [0], [1], [0, 0, 1, 1], [], []>} : vector<128x128xbf16>, vector<128x128xbf16>, vector<128x128xf32> -> vector<128x128xf32>
    %169 = arith.addf %159, %168 : vector<128x128xf32>
    %c1_i32_75 = arith.constant 1 : i32
    %170 = tpu.dynamic_rotate %155 by %c1_i32_75 dim 0 : vector<128x128xf32>, i32 -> vector<128x128xf32>
    %cst_76 = arith.constant 0.000000e+00 : f32
    %171 = vector.shape_cast %34 : vector<128x1xi1> to vector<128x1xi1>
    %172 = vector.broadcast %171 : vector<128x1xi1> to vector<128x128xi1>
    %173 = vector.broadcast %cst_76 : f32 to vector<128x128xf32>
    %174 = arith.select %172, %170, %173 : vector<128x128xi1>, vector<128x128xf32>
    %175 = arith.truncf %174 : vector<128x128xf32> to vector<128x128xbf16>
    %c6 = arith.constant 6 : index
    %c0_77 = arith.constant 0 : index
    %c0_78 = arith.constant 0 : index
    %176 = vector.load %arg2[%c6, %c0_77, %c0_78] : memref<20x128x128xbf16, #tpu.memory_space<vmem>>, vector<1x128x128xbf16>
    %177 = vector.shape_cast %176 : vector<1x128x128xbf16> to vector<128x128xbf16>
    %cst_79 = arith.constant dense<0.000000e+00> : vector<128x128xf32>
    %178 = tpu.matmul %175, %177, %cst_79 {dimension_numbers = #tpu.dot_dimension_numbers<[1], [0], [0], [1], [0, 0, 1, 1], [], []>} : vector<128x128xbf16>, vector<128x128xbf16>, vector<128x128xf32> -> vector<128x128xf32>
    %179 = arith.addf %169, %178 : vector<128x128xf32>
    %c127_i32_80 = arith.constant 127 : i32
    %180 = tpu.dynamic_rotate %155 by %c127_i32_80 dim 0 : vector<128x128xf32>, i32 -> vector<128x128xf32>
    %cst_81 = arith.constant 0.000000e+00 : f32
    %181 = vector.shape_cast %43 : vector<128x1xi1> to vector<128x1xi1>
    %182 = vector.broadcast %181 : vector<128x1xi1> to vector<128x128xi1>
    %183 = vector.broadcast %cst_81 : f32 to vector<128x128xf32>
    %184 = arith.select %182, %180, %183 : vector<128x128xi1>, vector<128x128xf32>
    %185 = arith.truncf %184 : vector<128x128xf32> to vector<128x128xbf16>
    %c8 = arith.constant 8 : index
    %c0_82 = arith.constant 0 : index
    %c0_83 = arith.constant 0 : index
    %186 = vector.load %arg2[%c8, %c0_82, %c0_83] : memref<20x128x128xbf16, #tpu.memory_space<vmem>>, vector<1x128x128xbf16>
    %187 = vector.shape_cast %186 : vector<1x128x128xbf16> to vector<128x128xbf16>
    %cst_84 = arith.constant dense<0.000000e+00> : vector<128x128xf32>
    %188 = tpu.matmul %185, %187, %cst_84 {dimension_numbers = #tpu.dot_dimension_numbers<[1], [0], [0], [1], [0, 0, 1, 1], [], []>} : vector<128x128xbf16>, vector<128x128xbf16>, vector<128x128xf32> -> vector<128x128xf32>
    %189 = arith.addf %179, %188 : vector<128x128xf32>
    %c126_i32_85 = arith.constant 126 : i32
    %190 = tpu.dynamic_rotate %155 by %c126_i32_85 dim 0 : vector<128x128xf32>, i32 -> vector<128x128xf32>
    %cst_86 = arith.constant 0.000000e+00 : f32
    %191 = vector.shape_cast %52 : vector<128x1xi1> to vector<128x1xi1>
    %192 = vector.broadcast %191 : vector<128x1xi1> to vector<128x128xi1>
    %193 = vector.broadcast %cst_86 : f32 to vector<128x128xf32>
    %194 = arith.select %192, %190, %193 : vector<128x128xi1>, vector<128x128xf32>
    %195 = arith.truncf %194 : vector<128x128xf32> to vector<128x128xbf16>
    %c9 = arith.constant 9 : index
    %c0_87 = arith.constant 0 : index
    %c0_88 = arith.constant 0 : index
    %196 = vector.load %arg2[%c9, %c0_87, %c0_88] : memref<20x128x128xbf16, #tpu.memory_space<vmem>>, vector<1x128x128xbf16>
    %197 = vector.shape_cast %196 : vector<1x128x128xbf16> to vector<128x128xbf16>
    %cst_89 = arith.constant dense<0.000000e+00> : vector<128x128xf32>
    %198 = tpu.matmul %195, %197, %cst_89 {dimension_numbers = #tpu.dot_dimension_numbers<[1], [0], [0], [1], [0, 0, 1, 1], [], []>} : vector<128x128xbf16>, vector<128x128xbf16>, vector<128x128xf32> -> vector<128x128xf32>
    %199 = arith.addf %189, %198 : vector<128x128xf32>
    %cst_90 = arith.constant dense<0.000000e+00> : vector<128xf32>
    %200 = vector.multi_reduction <add>, %199, %cst_90 [0] : vector<128x128xf32> to vector<128xf32>
    %201 = vector.shape_cast %200 : vector<128xf32> to vector<1x128xf32>
    %cst_91 = arith.constant 1.280000e+02 : f32
    %202 = vector.broadcast %cst_91 : f32 to vector<1x128xf32>
    %203 = arith.divf %201, %202 : vector<1x128xf32>
    %204 = arith.mulf %199, %199 : vector<128x128xf32>
    %cst_92 = arith.constant dense<0.000000e+00> : vector<128xf32>
    %205 = vector.multi_reduction <add>, %204, %cst_92 [0] : vector<128x128xf32> to vector<128xf32>
    %206 = vector.shape_cast %205 : vector<128xf32> to vector<1x128xf32>
    %cst_93 = arith.constant 1.280000e+02 : f32
    %207 = vector.broadcast %cst_93 : f32 to vector<1x128xf32>
    %208 = arith.divf %206, %207 : vector<1x128xf32>
    %209 = arith.mulf %203, %203 : vector<1x128xf32>
    %210 = arith.subf %208, %209 : vector<1x128xf32>
    %c2_94 = arith.constant 2 : index
    %c0_95 = arith.constant 0 : index
    %c0_96 = arith.constant 0 : index
    %211 = vector.load %arg4[%c2_94, %c0_95, %c0_96] : memref<5x1x128xf32, #tpu.memory_space<vmem>>, vector<1x1x128xf32>
    %212 = vector.shape_cast %211 : vector<1x1x128xf32> to vector<1x128xf32>
    %cst_97 = arith.constant 9.99999974E-6 : f32
    %213 = vector.broadcast %cst_97 : f32 to vector<1x128xf32>
    %214 = arith.addf %210, %213 : vector<1x128xf32>
    %215 = math.rsqrt %214 : vector<1x128xf32>
    %216 = arith.mulf %212, %215 : vector<1x128xf32>
    %c2_98 = arith.constant 2 : index
    %c0_99 = arith.constant 0 : index
    %c0_100 = arith.constant 0 : index
    %217 = vector.load %arg5[%c2_98, %c0_99, %c0_100] : memref<5x1x128xf32, #tpu.memory_space<vmem>>, vector<1x1x128xf32>
    %218 = vector.shape_cast %217 : vector<1x1x128xf32> to vector<1x128xf32>
    %219 = arith.mulf %203, %216 : vector<1x128xf32>
    %220 = arith.subf %218, %219 : vector<1x128xf32>
    %221 = vector.broadcast %216 : vector<1x128xf32> to vector<128x128xf32>
    %222 = arith.mulf %199, %221 : vector<128x128xf32>
    %223 = vector.broadcast %220 : vector<1x128xf32> to vector<128x128xf32>
    %224 = arith.addf %222, %223 : vector<128x128xf32>
    %225 = arith.addf %80, %224 : vector<128x128xf32>
    %226 = arith.truncf %225 : vector<128x128xf32> to vector<128x128xbf16>
    %c12 = arith.constant 12 : index
    %c0_101 = arith.constant 0 : index
    %c0_102 = arith.constant 0 : index
    %227 = vector.load %arg2[%c12, %c0_101, %c0_102] : memref<20x128x128xbf16, #tpu.memory_space<vmem>>, vector<1x128x128xbf16>
    %228 = vector.shape_cast %227 : vector<1x128x128xbf16> to vector<128x128xbf16>
    %cst_103 = arith.constant dense<0.000000e+00> : vector<128x128xf32>
    %229 = tpu.matmul %226, %228, %cst_103 {dimension_numbers = #tpu.dot_dimension_numbers<[1], [0], [0], [1], [0, 0, 1, 1], [], []>} : vector<128x128xbf16>, vector<128x128xbf16>, vector<128x128xf32> -> vector<128x128xf32>
    %c2_i32_104 = arith.constant 2 : i32
    %230 = tpu.dynamic_rotate %225 by %c2_i32_104 dim 0 : vector<128x128xf32>, i32 -> vector<128x128xf32>
    %cst_105 = arith.constant 0.000000e+00 : f32
    %231 = vector.shape_cast %25 : vector<128x1xi1> to vector<128x1xi1>
    %232 = vector.broadcast %231 : vector<128x1xi1> to vector<128x128xi1>
    %233 = vector.broadcast %cst_105 : f32 to vector<128x128xf32>
    %234 = arith.select %232, %230, %233 : vector<128x128xi1>, vector<128x128xf32>
    %235 = arith.truncf %234 : vector<128x128xf32> to vector<128x128xbf16>
    %c10 = arith.constant 10 : index
    %c0_106 = arith.constant 0 : index
    %c0_107 = arith.constant 0 : index
    %236 = vector.load %arg2[%c10, %c0_106, %c0_107] : memref<20x128x128xbf16, #tpu.memory_space<vmem>>, vector<1x128x128xbf16>
    %237 = vector.shape_cast %236 : vector<1x128x128xbf16> to vector<128x128xbf16>
    %cst_108 = arith.constant dense<0.000000e+00> : vector<128x128xf32>
    %238 = tpu.matmul %235, %237, %cst_108 {dimension_numbers = #tpu.dot_dimension_numbers<[1], [0], [0], [1], [0, 0, 1, 1], [], []>} : vector<128x128xbf16>, vector<128x128xbf16>, vector<128x128xf32> -> vector<128x128xf32>
    %239 = arith.addf %229, %238 : vector<128x128xf32>
    %c1_i32_109 = arith.constant 1 : i32
    %240 = tpu.dynamic_rotate %225 by %c1_i32_109 dim 0 : vector<128x128xf32>, i32 -> vector<128x128xf32>
    %cst_110 = arith.constant 0.000000e+00 : f32
    %241 = vector.shape_cast %34 : vector<128x1xi1> to vector<128x1xi1>
    %242 = vector.broadcast %241 : vector<128x1xi1> to vector<128x128xi1>
    %243 = vector.broadcast %cst_110 : f32 to vector<128x128xf32>
    %244 = arith.select %242, %240, %243 : vector<128x128xi1>, vector<128x128xf32>
    %245 = arith.truncf %244 : vector<128x128xf32> to vector<128x128xbf16>
    %c11 = arith.constant 11 : index
    %c0_111 = arith.constant 0 : index
    %c0_112 = arith.constant 0 : index
    %246 = vector.load %arg2[%c11, %c0_111, %c0_112] : memref<20x128x128xbf16, #tpu.memory_space<vmem>>, vector<1x128x128xbf16>
    %247 = vector.shape_cast %246 : vector<1x128x128xbf16> to vector<128x128xbf16>
    %cst_113 = arith.constant dense<0.000000e+00> : vector<128x128xf32>
    %248 = tpu.matmul %245, %247, %cst_113 {dimension_numbers = #tpu.dot_dimension_numbers<[1], [0], [0], [1], [0, 0, 1, 1], [], []>} : vector<128x128xbf16>, vector<128x128xbf16>, vector<128x128xf32> -> vector<128x128xf32>
    %249 = arith.addf %239, %248 : vector<128x128xf32>
    %c127_i32_114 = arith.constant 127 : i32
    %250 = tpu.dynamic_rotate %225 by %c127_i32_114 dim 0 : vector<128x128xf32>, i32 -> vector<128x128xf32>
    %cst_115 = arith.constant 0.000000e+00 : f32
    %251 = vector.shape_cast %43 : vector<128x1xi1> to vector<128x1xi1>
    %252 = vector.broadcast %251 : vector<128x1xi1> to vector<128x128xi1>
    %253 = vector.broadcast %cst_115 : f32 to vector<128x128xf32>
    %254 = arith.select %252, %250, %253 : vector<128x128xi1>, vector<128x128xf32>
    %255 = arith.truncf %254 : vector<128x128xf32> to vector<128x128xbf16>
    %c13 = arith.constant 13 : index
    %c0_116 = arith.constant 0 : index
    %c0_117 = arith.constant 0 : index
    %256 = vector.load %arg2[%c13, %c0_116, %c0_117] : memref<20x128x128xbf16, #tpu.memory_space<vmem>>, vector<1x128x128xbf16>
    %257 = vector.shape_cast %256 : vector<1x128x128xbf16> to vector<128x128xbf16>
    %cst_118 = arith.constant dense<0.000000e+00> : vector<128x128xf32>
    %258 = tpu.matmul %255, %257, %cst_118 {dimension_numbers = #tpu.dot_dimension_numbers<[1], [0], [0], [1], [0, 0, 1, 1], [], []>} : vector<128x128xbf16>, vector<128x128xbf16>, vector<128x128xf32> -> vector<128x128xf32>
    %259 = arith.addf %249, %258 : vector<128x128xf32>
    %c126_i32_119 = arith.constant 126 : i32
    %260 = tpu.dynamic_rotate %225 by %c126_i32_119 dim 0 : vector<128x128xf32>, i32 -> vector<128x128xf32>
    %cst_120 = arith.constant 0.000000e+00 : f32
    %261 = vector.shape_cast %52 : vector<128x1xi1> to vector<128x1xi1>
    %262 = vector.broadcast %261 : vector<128x1xi1> to vector<128x128xi1>
    %263 = vector.broadcast %cst_120 : f32 to vector<128x128xf32>
    %264 = arith.select %262, %260, %263 : vector<128x128xi1>, vector<128x128xf32>
    %265 = arith.truncf %264 : vector<128x128xf32> to vector<128x128xbf16>
    %c14 = arith.constant 14 : index
    %c0_121 = arith.constant 0 : index
    %c0_122 = arith.constant 0 : index
    %266 = vector.load %arg2[%c14, %c0_121, %c0_122] : memref<20x128x128xbf16, #tpu.memory_space<vmem>>, vector<1x128x128xbf16>
    %267 = vector.shape_cast %266 : vector<1x128x128xbf16> to vector<128x128xbf16>
    %cst_123 = arith.constant dense<0.000000e+00> : vector<128x128xf32>
    %268 = tpu.matmul %265, %267, %cst_123 {dimension_numbers = #tpu.dot_dimension_numbers<[1], [0], [0], [1], [0, 0, 1, 1], [], []>} : vector<128x128xbf16>, vector<128x128xbf16>, vector<128x128xf32> -> vector<128x128xf32>
    %269 = arith.addf %259, %268 : vector<128x128xf32>
    %c1_124 = arith.constant 1 : index
    %c0_125 = arith.constant 0 : index
    %c0_126 = arith.constant 0 : index
    %270 = vector.load %arg3[%c1_124, %c0_125, %c0_126] : memref<2x1x128xf32, #tpu.memory_space<vmem>>, vector<1x1x128xf32>
    %271 = vector.shape_cast %270 : vector<1x1x128xf32> to vector<1x128xf32>
    %272 = vector.broadcast %271 : vector<1x128xf32> to vector<128x128xf32>
    %273 = arith.addf %269, %272 : vector<128x128xf32>
    %cst_127 = arith.constant 0.000000e+00 : f32
    %274 = vector.broadcast %cst_127 : f32 to vector<128x128xf32>
    %275 = arith.maximumf %273, %274 : vector<128x128xf32>
    %cst_128 = arith.constant dense<0.000000e+00> : vector<128xf32>
    %276 = vector.multi_reduction <add>, %275, %cst_128 [0] : vector<128x128xf32> to vector<128xf32>
    %277 = vector.shape_cast %276 : vector<128xf32> to vector<1x128xf32>
    %cst_129 = arith.constant 1.280000e+02 : f32
    %278 = vector.broadcast %cst_129 : f32 to vector<1x128xf32>
    %279 = arith.divf %277, %278 : vector<1x128xf32>
    %280 = arith.mulf %275, %275 : vector<128x128xf32>
    %cst_130 = arith.constant dense<0.000000e+00> : vector<128xf32>
    %281 = vector.multi_reduction <add>, %280, %cst_130 [0] : vector<128x128xf32> to vector<128xf32>
    %282 = vector.shape_cast %281 : vector<128xf32> to vector<1x128xf32>
    %cst_131 = arith.constant 1.280000e+02 : f32
    %283 = vector.broadcast %cst_131 : f32 to vector<1x128xf32>
    %284 = arith.divf %282, %283 : vector<1x128xf32>
    %285 = arith.mulf %279, %279 : vector<1x128xf32>
    %286 = arith.subf %284, %285 : vector<1x128xf32>
    %c3_132 = arith.constant 3 : index
    %c0_133 = arith.constant 0 : index
    %c0_134 = arith.constant 0 : index
    %287 = vector.load %arg4[%c3_132, %c0_133, %c0_134] : memref<5x1x128xf32, #tpu.memory_space<vmem>>, vector<1x1x128xf32>
    %288 = vector.shape_cast %287 : vector<1x1x128xf32> to vector<1x128xf32>
    %cst_135 = arith.constant 9.99999974E-6 : f32
    %289 = vector.broadcast %cst_135 : f32 to vector<1x128xf32>
    %290 = arith.addf %286, %289 : vector<1x128xf32>
    %291 = math.rsqrt %290 : vector<1x128xf32>
    %292 = arith.mulf %288, %291 : vector<1x128xf32>
    %c3_136 = arith.constant 3 : index
    %c0_137 = arith.constant 0 : index
    %c0_138 = arith.constant 0 : index
    %293 = vector.load %arg5[%c3_136, %c0_137, %c0_138] : memref<5x1x128xf32, #tpu.memory_space<vmem>>, vector<1x1x128xf32>
    %294 = vector.shape_cast %293 : vector<1x1x128xf32> to vector<1x128xf32>
    %295 = arith.mulf %279, %292 : vector<1x128xf32>
    %296 = arith.subf %294, %295 : vector<1x128xf32>
    %297 = vector.broadcast %292 : vector<1x128xf32> to vector<128x128xf32>
    %298 = arith.mulf %275, %297 : vector<128x128xf32>
    %299 = vector.broadcast %296 : vector<1x128xf32> to vector<128x128xf32>
    %300 = arith.addf %298, %299 : vector<128x128xf32>
    %301 = arith.truncf %300 : vector<128x128xf32> to vector<128x128xbf16>
    %c17 = arith.constant 17 : index
    %c0_139 = arith.constant 0 : index
    %c0_140 = arith.constant 0 : index
    %302 = vector.load %arg2[%c17, %c0_139, %c0_140] : memref<20x128x128xbf16, #tpu.memory_space<vmem>>, vector<1x128x128xbf16>
    %303 = vector.shape_cast %302 : vector<1x128x128xbf16> to vector<128x128xbf16>
    %cst_141 = arith.constant dense<0.000000e+00> : vector<128x128xf32>
    %304 = tpu.matmul %301, %303, %cst_141 {dimension_numbers = #tpu.dot_dimension_numbers<[1], [0], [0], [1], [0, 0, 1, 1], [], []>} : vector<128x128xbf16>, vector<128x128xbf16>, vector<128x128xf32> -> vector<128x128xf32>
    %c2_i32_142 = arith.constant 2 : i32
    %305 = tpu.dynamic_rotate %300 by %c2_i32_142 dim 0 : vector<128x128xf32>, i32 -> vector<128x128xf32>
    %cst_143 = arith.constant 0.000000e+00 : f32
    %306 = vector.shape_cast %25 : vector<128x1xi1> to vector<128x1xi1>
    %307 = vector.broadcast %306 : vector<128x1xi1> to vector<128x128xi1>
    %308 = vector.broadcast %cst_143 : f32 to vector<128x128xf32>
    %309 = arith.select %307, %305, %308 : vector<128x128xi1>, vector<128x128xf32>
    %310 = arith.truncf %309 : vector<128x128xf32> to vector<128x128xbf16>
    %c15 = arith.constant 15 : index
    %c0_144 = arith.constant 0 : index
    %c0_145 = arith.constant 0 : index
    %311 = vector.load %arg2[%c15, %c0_144, %c0_145] : memref<20x128x128xbf16, #tpu.memory_space<vmem>>, vector<1x128x128xbf16>
    %312 = vector.shape_cast %311 : vector<1x128x128xbf16> to vector<128x128xbf16>
    %cst_146 = arith.constant dense<0.000000e+00> : vector<128x128xf32>
    %313 = tpu.matmul %310, %312, %cst_146 {dimension_numbers = #tpu.dot_dimension_numbers<[1], [0], [0], [1], [0, 0, 1, 1], [], []>} : vector<128x128xbf16>, vector<128x128xbf16>, vector<128x128xf32> -> vector<128x128xf32>
    %314 = arith.addf %304, %313 : vector<128x128xf32>
    %c1_i32_147 = arith.constant 1 : i32
    %315 = tpu.dynamic_rotate %300 by %c1_i32_147 dim 0 : vector<128x128xf32>, i32 -> vector<128x128xf32>
    %cst_148 = arith.constant 0.000000e+00 : f32
    %316 = vector.shape_cast %34 : vector<128x1xi1> to vector<128x1xi1>
    %317 = vector.broadcast %316 : vector<128x1xi1> to vector<128x128xi1>
    %318 = vector.broadcast %cst_148 : f32 to vector<128x128xf32>
    %319 = arith.select %317, %315, %318 : vector<128x128xi1>, vector<128x128xf32>
    %320 = arith.truncf %319 : vector<128x128xf32> to vector<128x128xbf16>
    %c16 = arith.constant 16 : index
    %c0_149 = arith.constant 0 : index
    %c0_150 = arith.constant 0 : index
    %321 = vector.load %arg2[%c16, %c0_149, %c0_150] : memref<20x128x128xbf16, #tpu.memory_space<vmem>>, vector<1x128x128xbf16>
    %322 = vector.shape_cast %321 : vector<1x128x128xbf16> to vector<128x128xbf16>
    %cst_151 = arith.constant dense<0.000000e+00> : vector<128x128xf32>
    %323 = tpu.matmul %320, %322, %cst_151 {dimension_numbers = #tpu.dot_dimension_numbers<[1], [0], [0], [1], [0, 0, 1, 1], [], []>} : vector<128x128xbf16>, vector<128x128xbf16>, vector<128x128xf32> -> vector<128x128xf32>
    %324 = arith.addf %314, %323 : vector<128x128xf32>
    %c127_i32_152 = arith.constant 127 : i32
    %325 = tpu.dynamic_rotate %300 by %c127_i32_152 dim 0 : vector<128x128xf32>, i32 -> vector<128x128xf32>
    %cst_153 = arith.constant 0.000000e+00 : f32
    %326 = vector.shape_cast %43 : vector<128x1xi1> to vector<128x1xi1>
    %327 = vector.broadcast %326 : vector<128x1xi1> to vector<128x128xi1>
    %328 = vector.broadcast %cst_153 : f32 to vector<128x128xf32>
    %329 = arith.select %327, %325, %328 : vector<128x128xi1>, vector<128x128xf32>
    %330 = arith.truncf %329 : vector<128x128xf32> to vector<128x128xbf16>
    %c18 = arith.constant 18 : index
    %c0_154 = arith.constant 0 : index
    %c0_155 = arith.constant 0 : index
    %331 = vector.load %arg2[%c18, %c0_154, %c0_155] : memref<20x128x128xbf16, #tpu.memory_space<vmem>>, vector<1x128x128xbf16>
    %332 = vector.shape_cast %331 : vector<1x128x128xbf16> to vector<128x128xbf16>
    %cst_156 = arith.constant dense<0.000000e+00> : vector<128x128xf32>
    %333 = tpu.matmul %330, %332, %cst_156 {dimension_numbers = #tpu.dot_dimension_numbers<[1], [0], [0], [1], [0, 0, 1, 1], [], []>} : vector<128x128xbf16>, vector<128x128xbf16>, vector<128x128xf32> -> vector<128x128xf32>
    %334 = arith.addf %324, %333 : vector<128x128xf32>
    %c126_i32_157 = arith.constant 126 : i32
    %335 = tpu.dynamic_rotate %300 by %c126_i32_157 dim 0 : vector<128x128xf32>, i32 -> vector<128x128xf32>
    %cst_158 = arith.constant 0.000000e+00 : f32
    %336 = vector.shape_cast %52 : vector<128x1xi1> to vector<128x1xi1>
    %337 = vector.broadcast %336 : vector<128x1xi1> to vector<128x128xi1>
    %338 = vector.broadcast %cst_158 : f32 to vector<128x128xf32>
    %339 = arith.select %337, %335, %338 : vector<128x128xi1>, vector<128x128xf32>
    %340 = arith.truncf %339 : vector<128x128xf32> to vector<128x128xbf16>
    %c19 = arith.constant 19 : index
    %c0_159 = arith.constant 0 : index
    %c0_160 = arith.constant 0 : index
    %341 = vector.load %arg2[%c19, %c0_159, %c0_160] : memref<20x128x128xbf16, #tpu.memory_space<vmem>>, vector<1x128x128xbf16>
    %342 = vector.shape_cast %341 : vector<1x128x128xbf16> to vector<128x128xbf16>
    %cst_161 = arith.constant dense<0.000000e+00> : vector<128x128xf32>
    %343 = tpu.matmul %340, %342, %cst_161 {dimension_numbers = #tpu.dot_dimension_numbers<[1], [0], [0], [1], [0, 0, 1, 1], [], []>} : vector<128x128xbf16>, vector<128x128xbf16>, vector<128x128xf32> -> vector<128x128xf32>
    %344 = arith.addf %334, %343 : vector<128x128xf32>
    %cst_162 = arith.constant dense<0.000000e+00> : vector<128xf32>
    %345 = vector.multi_reduction <add>, %344, %cst_162 [0] : vector<128x128xf32> to vector<128xf32>
    %346 = vector.shape_cast %345 : vector<128xf32> to vector<1x128xf32>
    %cst_163 = arith.constant 1.280000e+02 : f32
    %347 = vector.broadcast %cst_163 : f32 to vector<1x128xf32>
    %348 = arith.divf %346, %347 : vector<1x128xf32>
    %349 = arith.mulf %344, %344 : vector<128x128xf32>
    %cst_164 = arith.constant dense<0.000000e+00> : vector<128xf32>
    %350 = vector.multi_reduction <add>, %349, %cst_164 [0] : vector<128x128xf32> to vector<128xf32>
    %351 = vector.shape_cast %350 : vector<128xf32> to vector<1x128xf32>
    %cst_165 = arith.constant 1.280000e+02 : f32
    %352 = vector.broadcast %cst_165 : f32 to vector<1x128xf32>
    %353 = arith.divf %351, %352 : vector<1x128xf32>
    %354 = arith.mulf %348, %348 : vector<1x128xf32>
    %355 = arith.subf %353, %354 : vector<1x128xf32>
    %c4_166 = arith.constant 4 : index
    %c0_167 = arith.constant 0 : index
    %c0_168 = arith.constant 0 : index
    %356 = vector.load %arg4[%c4_166, %c0_167, %c0_168] : memref<5x1x128xf32, #tpu.memory_space<vmem>>, vector<1x1x128xf32>
    %357 = vector.shape_cast %356 : vector<1x1x128xf32> to vector<1x128xf32>
    %cst_169 = arith.constant 9.99999974E-6 : f32
    %358 = vector.broadcast %cst_169 : f32 to vector<1x128xf32>
    %359 = arith.addf %355, %358 : vector<1x128xf32>
    %360 = math.rsqrt %359 : vector<1x128xf32>
    %361 = arith.mulf %357, %360 : vector<1x128xf32>
    %c4_170 = arith.constant 4 : index
    %c0_171 = arith.constant 0 : index
    %c0_172 = arith.constant 0 : index
    %362 = vector.load %arg5[%c4_170, %c0_171, %c0_172] : memref<5x1x128xf32, #tpu.memory_space<vmem>>, vector<1x1x128xf32>
    %363 = vector.shape_cast %362 : vector<1x1x128xf32> to vector<1x128xf32>
    %364 = arith.mulf %348, %361 : vector<1x128xf32>
    %365 = arith.subf %363, %364 : vector<1x128xf32>
    %366 = vector.broadcast %361 : vector<1x128xf32> to vector<128x128xf32>
    %367 = arith.mulf %344, %366 : vector<128x128xf32>
    %368 = vector.broadcast %365 : vector<1x128xf32> to vector<128x128xf32>
    %369 = arith.addf %367, %368 : vector<128x128xf32>
    %370 = arith.addf %225, %369 : vector<128x128xf32>
    %c127_i32_173 = arith.constant 127 : i32
    %371 = tpu.dynamic_rotate %370 by %c127_i32_173 dim 0 : vector<128x128xf32>, i32 -> vector<128x128xf32>
    %372 = arith.maximumf %370, %371 : vector<128x128xf32>
    %c0_174 = arith.constant 0 : index
    %c0_175 = arith.constant 0 : index
    %373 = vector.load %arg7[%c0_174, %c0_175] : memref<128x128xf32, #tpu.memory_space<vmem>>, vector<128x128xf32>
    tpu.vector_store %arg7[%c0_174, %c0_175], %372 {strides = array<i32>} : memref<128x128xf32, #tpu.memory_space<vmem>>, vector<128x128xf32>,
    %c0_176 = arith.constant 0 : index
    %c0_177 = arith.constant 0 : index
    %374 = tpu.strided_load %arg7[%c0_176, %c0_177] {strides = array<i32: 2, 1>} : memref<128x128xf32, #tpu.memory_space<vmem>>, vector<64x128xf32>
    %c0_178 = arith.constant 0 : index
    %c0_179 = arith.constant 0 : index
    %375 = vector.load %arg6[%c0_178, %c0_179] : memref<64x128xf32, #tpu.memory_space<vmem>>, vector<64x128xf32>
    tpu.vector_store %arg6[%c0_178, %c0_179], %374 {strides = array<i32>} : memref<64x128xf32, #tpu.memory_space<vmem>>, vector<64x128xf32>,
    return
  }
}

</mosaic_0001>

<llo_original>
// kernel: tpu_custom_call.1
$region0: #{tpu_custom_call.1}
  #allocation0 [shape = 'u32[]', space=smem, size = 0x4, offset = 0x4, fixed_abs, tag = 'smem constant byte address 0x4 - core index']
  #allocation1 [shape = 'u32[72,128]{1,0:T(1,128)}', space=vmem, size = 0x9000, scoped, tag = 'internal scratch']
  #allocation2 [shape = 'f32[128,128]{1,0:T(8,128)}', space=vmem, size = 0x10000, scoped, tag = 'scratch operand']
  %s0 = inlined_call_operand.vmem [shape: bf16[128,4], index: 0, kind: input, shape index: {}]
  %s1 = inlined_call_operand.vmem [shape: bf16[4,128], index: 1, kind: input, shape index: {}]
  %s2 = inlined_call_operand.hbm [shape: bf16[20,128,128], index: 2, kind: input, shape index: {}]
  %s3 = inlined_call_operand.vmem [shape: f32[2,1,128], index: 3, kind: input, shape index: {}]
  %s4 = inlined_call_operand.vmem [shape: f32[5,1,128], index: 4, kind: input, shape index: {}]
  %s5 = inlined_call_operand.vmem [shape: f32[5,1,128], index: 5, kind: input, shape index: {}]
  %s6 = inlined_call_operand.hbm [shape: f32[64,128], index: 6, kind: output, shape index: {}]
  %s7 = sld [smem:[#allocation0]]
  $region38: #{tpu_custom_call.1} parent=0
    _
  %s9 = ssub.s32 1, %s7
  %s10 = scalar_select 0, %s9, %s7
  $region1: #{tpu_custom_call.1} parent=0
    #allocation3 [shape = 'u8[655360]{0}', space=vmem, size = 0xa0000, scoped, tag = 'input window, operand 2, single buffered']
    #allocation4 [shape = 's32[1]{0}', space=sflag, size = 0x4, scoped, tag = 'scoped memory for tpu_custom_call.1']
    #allocation5 [shape = 's32[1]{0}', space=sflag, size = 0x4, scoped, tag = 'scoped memory for tpu_custom_call.1']
    #allocation6 [shape = 'u8[32768]{0}', space=vmem, size = 0x8000, scoped, tag = 'output window, operand 0, single buffered']
    %11 = vsyncpa [#allocation4], 0
    %12 = vsyncpa [#allocation5], 0
    // Predicated region
    $region2: #{tpu_custom_call.1} parent=1 // pred_check
      _
    $region3: #{tpu_custom_call.1} parent=1 // pred_check_branch
      %14 = sbr.rel (0) target = $region5
    $region4: #{tpu_custom_call.1} parent=1 // pred_region
      _
    $region5: #{tpu_custom_call.1} parent=1 // pred_fallthru
      _
    // Predicated region
    $region6: #{tpu_custom_call.1} parent=1 // pred_check
      _
    $region7: #{tpu_custom_call.1} parent=1 // pred_check_branch
      %16 = sbr.rel (0) target = $region9
    $region8: #{tpu_custom_call.1} parent=1 // pred_region
      _
    $region9: #{tpu_custom_call.1} parent=1 // pred_fallthru
      _
    // Predicated region
    $region10: #{tpu_custom_call.1} parent=1 // pred_check
      _
    $region11: #{tpu_custom_call.1} parent=1 // pred_check_branch
      %18 = sbr.rel (0) target = $region13
    $region12: #{tpu_custom_call.1} parent=1 // pred_region
      %20 = vsyncadd [#allocation4], 0
      %s21 = sshll.u32 %s2, 4
      %s22 = int_to_ptr.hbm [resolvable:$true] %s21
      %s23 = sshll.u32 [#allocation3], 4
      %s24 = int_to_ptr.vmem [resolvable:$true] %s23
      %29 = dma.hbm_to_vmem [thread:$0]  %s22, 20480, %s24, [#allocation4], 64, 64, 4
    $region13: #{tpu_custom_call.1} parent=1 // pred_fallthru
      _
    // Predicated region
    $region14: #{tpu_custom_call.1} parent=1 // pred_check
      _
    $region15: #{tpu_custom_call.1} parent=1 // pred_check_branch
      %31 = sbr.rel (0) target = $region17
    $region16: #{tpu_custom_call.1} parent=1 // pred_region
      _
    $region17: #{tpu_custom_call.1} parent=1 // pred_fallthru
      _
    // Predicated region
    $region18: #{tpu_custom_call.1} parent=1 // pred_check
      _
    $region19: #{tpu_custom_call.1} parent=1 // pred_check_branch
      %33 = sbr.rel (0) target = $region21
    $region20: #{tpu_custom_call.1} parent=1 // pred_region
      _
    $region21: #{tpu_custom_call.1} parent=1 // pred_fallthru
      _
    // Predicated region
    $region22: #{tpu_custom_call.1} parent=1 // pred_check
      _
    $region23: #{tpu_custom_call.1} parent=1 // pred_check_branch
      %35 = sbr.rel (0) target = $region25
    $region24: #{tpu_custom_call.1} parent=1 // pred_region
      _
    $region25: #{tpu_custom_call.1} parent=1 // pred_fallthru
      _
    // Predicated region
    $region26: #{tpu_custom_call.1} parent=1 // pred_check
      _
    $region27: #{tpu_custom_call.1} parent=1 // pred_check_branch
      %37 = sbr.rel (0) target = $region29
    $region28: #{tpu_custom_call.1} parent=1 // pred_region
      %39 = dma.done [#allocation4], 20480
    $region29: #{tpu_custom_call.1} parent=1 // pred_fallthru
      _
    %v41 = vlaneseq
    %v42 = vshrl.u32 %v41, 7
    %v43 = vadd.s32 %v42, 8
    %v44 = vadd.s32 %v42, 16
    %v45 = vadd.s32 %v42, 24
    %v46 = vadd.s32 %v42, 32
    %v47 = vadd.s32 %v42, 40
    %v48 = vadd.s32 %v42, 48
    %v49 = vadd.s32 %v42, 56
    %v50 = vadd.s32 %v42, 64
    %v51 = vadd.s32 %v42, 72
    %v52 = vadd.s32 %v42, 80
    %v53 = vadd.s32 %v42, 88
    %v54 = vadd.s32 %v42, 96
    %v55 = vadd.s32 %v42, 104
    %v56 = vadd.s32 %v42, 112
    %v57 = vadd.s32 %v42, 120
    %vm58 = vcmp.lt.s32.totalorder %v42, 0
    %v59 = vsub.s32 0, %v42
    %v60 = vsel %vm58, %v59, %v42
    %v61 = vshrl.u32 %v60, 4
    %v62 = vand.u32 %v60, 15
    %v63 = vsub.s32 0, %v62
    %v64 = vsel %vm58, %v63, %v62
    %vm65 = vcmp.lt.s32.totalorder %v43, 0
    %v66 = vsub.s32 0, %v43
    %v67 = vsel %vm65, %v66, %v43
    %v68 = vshrl.u32 %v67, 4
    %v69 = vand.u32 %v67, 15
    %v70 = vsub.s32 0, %v69
    %v71 = vsel %vm65, %v70, %v69
    %vm72 = vcmp.lt.s32.totalorder %v44, 0
    %v73 = vsub.s32 0, %v44
    %v74 = vsel %vm72, %v73, %v44
    %v75 = vshrl.u32 %v74, 4
    %v76 = vand.u32 %v74, 15
    %v77 = vsub.s32 0, %v76
    %v78 = vsel %vm72, %v77, %v76
    %vm79 = vcmp.lt.s32.totalorder %v45, 0
    %v80 = vsub.s32 0, %v45
    %v81 = vsel %vm79, %v80, %v45
    %v82 = vshrl.u32 %v81, 4
    %v83 = vand.u32 %v81, 15
    %v84 = vsub.s32 0, %v83
    %v85 = vsel %vm79, %v84, %v83
    %vm86 = vcmp.lt.s32.totalorder %v46, 0
    %v87 = vsub.s32 0, %v46
    %v88 = vsel %vm86, %v87, %v46
    %v89 = vshrl.u32 %v88, 4
    %v90 = vand.u32 %v88, 15
    %v91 = vsub.s32 0, %v90
    %v92 = vsel %vm86, %v91, %v90
    %vm93 = vcmp.lt.s32.totalorder %v47, 0
    %v94 = vsub.s32 0, %v47
    %v95 = vsel %vm93, %v94, %v47
    %v96 = vshrl.u32 %v95, 4
    %v97 = vand.u32 %v95, 15
    %v98 = vsub.s32 0, %v97
    %v99 = vsel %vm93, %v98, %v97
    %vm100 = vcmp.lt.s32.totalorder %v48, 0
    %v101 = vsub.s32 0, %v48
    %v102 = vsel %vm100, %v101, %v48
    %v103 = vshrl.u32 %v102, 4
    %v104 = vand.u32 %v102, 15
    %v105 = vsub.s32 0, %v104
    %v106 = vsel %vm100, %v105, %v104
    %vm107 = vcmp.lt.s32.totalorder %v49, 0
    %v108 = vsub.s32 0, %v49
    %v109 = vsel %vm107, %v108, %v49
    %v110 = vshrl.u32 %v109, 4
    %v111 = vand.u32 %v109, 15
    %v112 = vsub.s32 0, %v111
    %v113 = vsel %vm107, %v112, %v111
    %vm114 = vcmp.lt.s32.totalorder %v50, 0
    %v115 = vsub.s32 0, %v50
    %v116 = vsel %vm114, %v115, %v50
    %v117 = vshrl.u32 %v116, 4
    %v118 = vand.u32 %v116, 15
    %v119 = vsub.s32 0, %v118
    %v120 = vsel %vm114, %v119, %v118
    %vm121 = vcmp.lt.s32.totalorder %v51, 0
    %v122 = vsub.s32 0, %v51
    %v123 = vsel %vm121, %v122, %v51
    %v124 = vshrl.u32 %v123, 4
    %v125 = vand.u32 %v123, 15
    %v126 = vsub.s32 0, %v125
    %v127 = vsel %vm121, %v126, %v125
    %vm128 = vcmp.lt.s32.totalorder %v52, 0
    %v129 = vsub.s32 0, %v52
    %v130 = vsel %vm128, %v129, %v52
    %v131 = vshrl.u32 %v130, 4
    %v132 = vand.u32 %v130, 15
    %v133 = vsub.s32 0, %v132
    %v134 = vsel %vm128, %v133, %v132
    %vm135 = vcmp.lt.s32.totalorder %v53, 0
    %v136 = vsub.s32 0, %v53
    %v137 = vsel %vm135, %v136, %v53
    %v138 = vshrl.u32 %v137, 4
    %v139 = vand.u32 %v137, 15
    %v140 = vsub.s32 0, %v139
    %v141 = vsel %vm135, %v140, %v139
    %vm142 = vcmp.lt.s32.totalorder %v54, 0
    %v143 = vsub.s32 0, %v54
    %v144 = vsel %vm142, %v143, %v54
    %v145 = vshrl.u32 %v144, 4
    %v146 = vand.u32 %v144, 15
    %v147 = vsub.s32 0, %v146
    %v148 = vsel %vm142, %v147, %v146
    %vm149 = vcmp.lt.s32.totalorder %v55, 0
    %v150 = vsub.s32 0, %v55
    %v151 = vsel %vm149, %v150, %v55
    %v152 = vshrl.u32 %v151, 4
    %v153 = vand.u32 %v151, 15
    %v154 = vsub.s32 0, %v153
    %v155 = vsel %vm149, %v154, %v153
    %vm156 = vcmp.lt.s32.totalorder %v56, 0
    %v157 = vsub.s32 0, %v56
    %v158 = vsel %vm156, %v157, %v56
    %v159 = vshrl.u32 %v158, 4
    %v160 = vand.u32 %v158, 15
    %v161 = vsub.s32 0, %v160
    %v162 = vsel %vm156, %v161, %v160
    %vm163 = vcmp.lt.s32.totalorder %v57, 0
    %v164 = vsub.s32 0, %v57
    %v165 = vsel %vm163, %v164, %v57
    %v166 = vshrl.u32 %v165, 4
    %v167 = vand.u32 %v165, 15
    %v168 = vsub.s32 0, %v167
    %v169 = vsel %vm163, %v168, %v167
    %vm170 = vcmp.ne.s32.totalorder %v64, 0
    %vm171 = vcmp.ne.s32.totalorder %v71, 0
    %vm172 = vcmp.ne.s32.totalorder %v78, 0
    %vm173 = vcmp.ne.s32.totalorder %v85, 0
    %vm174 = vcmp.ne.s32.totalorder %v92, 0
    %vm175 = vcmp.ne.s32.totalorder %v99, 0
    %vm176 = vcmp.ne.s32.totalorder %v106, 0
    %vm177 = vcmp.ne.s32.totalorder %v113, 0
    %vm178 = vcmp.ne.s32.totalorder %v120, 0
    %vm179 = vcmp.ne.s32.totalorder %v127, 0
    %vm180 = vcmp.ne.s32.totalorder %v134, 0
    %vm181 = vcmp.ne.s32.totalorder %v141, 0
    %vm182 = vcmp.ne.s32.totalorder %v148, 0
    %vm183 = vcmp.ne.s32.totalorder %v155, 0
    %vm184 = vcmp.ne.s32.totalorder %v162, 0
    %vm185 = vcmp.ne.s32.totalorder %v169, 0
    %vm186 = vcmp.lt.s32.totalorder %v64, 0
    %vm187 = vcmp.lt.s32.totalorder %v71, 0
    %vm188 = vcmp.lt.s32.totalorder %v78, 0
    %vm189 = vcmp.lt.s32.totalorder %v85, 0
    %vm190 = vcmp.lt.s32.totalorder %v92, 0
    %vm191 = vcmp.lt.s32.totalorder %v99, 0
    %vm192 = vcmp.lt.s32.totalorder %v106, 0
    %vm193 = vcmp.lt.s32.totalorder %v113, 0
    %vm194 = vcmp.lt.s32.totalorder %v120, 0
    %vm195 = vcmp.lt.s32.totalorder %v127, 0
    %vm196 = vcmp.lt.s32.totalorder %v134, 0
    %vm197 = vcmp.lt.s32.totalorder %v141, 0
    %vm198 = vcmp.lt.s32.totalorder %v148, 0
    %vm199 = vcmp.lt.s32.totalorder %v155, 0
    %vm200 = vcmp.lt.s32.totalorder %v162, 0
    %vm201 = vcmp.lt.s32.totalorder %v169, 0
    %vm202 = vmand %vm186, %vm170
    %vm203 = vmand %vm187, %vm171
    %vm204 = vmand %vm188, %vm172
    %vm205 = vmand %vm189, %vm173
    %vm206 = vmand %vm190, %vm174
    %vm207 = vmand %vm191, %vm175
    %vm208 = vmand %vm192, %vm176
    %vm209 = vmand %vm193, %vm177
    %vm210 = vmand %vm194, %vm178
    %vm211 = vmand %vm195, %vm179
    %vm212 = vmand %vm196, %vm180
    %vm213 = vmand %vm197, %vm181
    %vm214 = vmand %vm198, %vm182
    %vm215 = vmand %vm199, %vm183
    %vm216 = vmand %vm200, %vm184
    %vm217 = vmand %vm201, %vm185
    %v218 = vadd.s32 %v64, 16
    %v219 = vadd.s32 %v71, 16
    %v220 = vadd.s32 %v78, 16
    %v221 = vadd.s32 %v85, 16
    %v222 = vadd.s32 %v92, 16
    %v223 = vadd.s32 %v99, 16
    %v224 = vadd.s32 %v106, 16
    %v225 = vadd.s32 %v113, 16
    %v226 = vadd.s32 %v120, 16
    %v227 = vadd.s32 %v127, 16
    %v228 = vadd.s32 %v134, 16
    %v229 = vadd.s32 %v141, 16
    %v230 = vadd.s32 %v148, 16
    %v231 = vadd.s32 %v155, 16
    %v232 = vadd.s32 %v162, 16
    %v233 = vadd.s32 %v169, 16
    %v234 = vsel %vm202, %v218, %v64
    %v235 = vsel %vm203, %v219, %v71
    %v236 = vsel %vm204, %v220, %v78
    %v237 = vsel %vm205, %v221, %v85
    %v238 = vsel %vm206, %v222, %v92
    %v239 = vsel %vm207, %v223, %v99
    %v240 = vsel %vm208, %v224, %v106
    %v241 = vsel %vm209, %v225, %v113
    %v242 = vsel %vm210, %v226, %v120
    %v243 = vsel %vm211, %v227, %v127
    %v244 = vsel %vm212, %v228, %v134
    %v245 = vsel %vm213, %v229, %v141
    %v246 = vsel %vm214, %v230, %v148
    %v247 = vsel %vm215, %v231, %v155
    %v248 = vsel %vm216, %v232, %v162
    %v249 = vsel %vm217, %v233, %v169
    %v250 = vadd.s32 %v234, 4294967294
    %v251 = vadd.s32 %v235, 4294967294
    %v252 = vadd.s32 %v236, 4294967294
    %v253 = vadd.s32 %v237, 4294967294
    %v254 = vadd.s32 %v238, 4294967294
    %v255 = vadd.s32 %v239, 4294967294
    %v256 = vadd.s32 %v240, 4294967294
    %v257 = vadd.s32 %v241, 4294967294
    %v258 = vadd.s32 %v242, 4294967294
    %v259 = vadd.s32 %v243, 4294967294
    %v260 = vadd.s32 %v244, 4294967294
    %v261 = vadd.s32 %v245, 4294967294
    %v262 = vadd.s32 %v246, 4294967294
    %v263 = vadd.s32 %v247, 4294967294
    %v264 = vadd.s32 %v248, 4294967294
    %v265 = vadd.s32 %v249, 4294967294
    %vm266 = vcmp.ge.s32.totalorder %v250, 0
    %vm267 = vcmp.ge.s32.totalorder %v251, 0
    %vm268 = vcmp.ge.s32.totalorder %v252, 0
    %vm269 = vcmp.ge.s32.totalorder %v253, 0
    %vm270 = vcmp.ge.s32.totalorder %v254, 0
    %vm271 = vcmp.ge.s32.totalorder %v255, 0
    %vm272 = vcmp.ge.s32.totalorder %v256, 0
    %vm273 = vcmp.ge.s32.totalorder %v257, 0
    %vm274 = vcmp.ge.s32.totalorder %v258, 0
    %vm275 = vcmp.ge.s32.totalorder %v259, 0
    %vm276 = vcmp.ge.s32.totalorder %v260, 0
    %vm277 = vcmp.ge.s32.totalorder %v261, 0
    %vm278 = vcmp.ge.s32.totalorder %v262, 0
    %vm279 = vcmp.ge.s32.totalorder %v263, 0
    %vm280 = vcmp.ge.s32.totalorder %v264, 0
    %vm281 = vcmp.ge.s32.totalorder %v265, 0
    %vm282 = vcmp.lt.s32.totalorder %v250, 16
    %vm283 = vcmp.lt.s32.totalorder %v251, 16
    %vm284 = vcmp.lt.s32.totalorder %v252, 16
    %vm285 = vcmp.lt.s32.totalorder %v253, 16
    %vm286 = vcmp.lt.s32.totalorder %v254, 16
    %vm287 = vcmp.lt.s32.totalorder %v255, 16
    %vm288 = vcmp.lt.s32.totalorder %v256, 16
    %vm289 = vcmp.lt.s32.totalorder %v257, 16
    %vm290 = vcmp.lt.s32.totalorder %v258, 16
    %vm291 = vcmp.lt.s32.totalorder %v259, 16
    %vm292 = vcmp.lt.s32.totalorder %v260, 16
    %vm293 = vcmp.lt.s32.totalorder %v261, 16
    %vm294 = vcmp.lt.s32.totalorder %v262, 16
    %vm295 = vcmp.lt.s32.totalorder %v263, 16
    %vm296 = vcmp.lt.s32.totalorder %v264, 16
    %vm297 = vcmp.lt.s32.totalorder %v265, 16
    %vm298 = vmand %vm266, %vm282
    %vm299 = vmand %vm267, %vm283
    %vm300 = vmand %vm268, %vm284
    %vm301 = vmand %vm269, %vm285
    %vm302 = vmand %vm270, %vm286
    %vm303 = vmand %vm271, %vm287
    %vm304 = vmand %vm272, %vm288
    %vm305 = vmand %vm273, %vm289
    %vm306 = vmand %vm274, %vm290
    %vm307 = vmand %vm275, %vm291
    %vm308 = vmand %vm276, %vm292
    %vm309 = vmand %vm277, %vm293
    %vm310 = vmand %vm278, %vm294
    %vm311 = vmand %vm279, %vm295
    %vm312 = vmand %vm280, %vm296
    %vm313 = vmand %vm281, %vm297
    %v314 = vadd.s32 %v234, 4294967295
    %v315 = vadd.s32 %v235, 4294967295
    %v316 = vadd.s32 %v236, 4294967295
    %v317 = vadd.s32 %v237, 4294967295
    %v318 = vadd.s32 %v238, 4294967295
    %v319 = vadd.s32 %v239, 4294967295
    %v320 = vadd.s32 %v240, 4294967295
    %v321 = vadd.s32 %v241, 4294967295
    %v322 = vadd.s32 %v242, 4294967295
    %v323 = vadd.s32 %v243, 4294967295
    %v324 = vadd.s32 %v244, 4294967295
    %v325 = vadd.s32 %v245, 4294967295
    %v326 = vadd.s32 %v246, 4294967295
    %v327 = vadd.s32 %v247, 4294967295
    %v328 = vadd.s32 %v248, 4294967295
    %v329 = vadd.s32 %v249, 4294967295
    %vm330 = vcmp.ge.s32.totalorder %v314, 0
    %vm331 = vcmp.ge.s32.totalorder %v315, 0
    %vm332 = vcmp.ge.s32.totalorder %v316, 0
    %vm333 = vcmp.ge.s32.totalorder %v317, 0
    %vm334 = vcmp.ge.s32.totalorder %v318, 0
    %vm335 = vcmp.ge.s32.totalorder %v319, 0
    %vm336 = vcmp.ge.s32.totalorder %v320, 0
    %vm337 = vcmp.ge.s32.totalorder %v321, 0
    %vm338 = vcmp.ge.s32.totalorder %v322, 0
    %vm339 = vcmp.ge.s32.totalorder %v323, 0
    %vm340 = vcmp.ge.s32.totalorder %v324, 0
    %vm341 = vcmp.ge.s32.totalorder %v325, 0
    %vm342 = vcmp.ge.s32.totalorder %v326, 0
    %vm343 = vcmp.ge.s32.totalorder %v327, 0
    %vm344 = vcmp.ge.s32.totalorder %v328, 0
    %vm345 = vcmp.ge.s32.totalorder %v329, 0
    %vm346 = vcmp.lt.s32.totalorder %v314, 16
    %vm347 = vcmp.lt.s32.totalorder %v315, 16
    %vm348 = vcmp.lt.s32.totalorder %v316, 16
    %vm349 = vcmp.lt.s32.totalorder %v317, 16
    %vm350 = vcmp.lt.s32.totalorder %v318, 16
    %vm351 = vcmp.lt.s32.totalorder %v319, 16
    %vm352 = vcmp.lt.s32.totalorder %v320, 16
    %vm353 = vcmp.lt.s32.totalorder %v321, 16
    %vm354 = vcmp.lt.s32.totalorder %v322, 16
    %vm355 = vcmp.lt.s32.totalorder %v323, 16
    %vm356 = vcmp.lt.s32.totalorder %v324, 16
    %vm357 = vcmp.lt.s32.totalorder %v325, 16
    %vm358 = vcmp.lt.s32.totalorder %v326, 16
    %vm359 = vcmp.lt.s32.totalorder %v327, 16
    %vm360 = vcmp.lt.s32.totalorder %v328, 16
    %vm361 = vcmp.lt.s32.totalorder %v329, 16
    %vm362 = vmand %vm330, %vm346
    %vm363 = vmand %vm331, %vm347
    %vm364 = vmand %vm332, %vm348
    %vm365 = vmand %vm333, %vm349
    %vm366 = vmand %vm334, %vm350
    %vm367 = vmand %vm335, %vm351
    %vm368 = vmand %vm336, %vm352
    %vm369 = vmand %vm337, %vm353
    %vm370 = vmand %vm338, %vm354
    %vm371 = vmand %vm339, %vm355
    %vm372 = vmand %vm340, %vm356
    %vm373 = vmand %vm341, %vm357
    %vm374 = vmand %vm342, %vm358
    %vm375 = vmand %vm343, %vm359
    %vm376 = vmand %vm344, %vm360
    %vm377 = vmand %vm345, %vm361
    %v378 = vadd.s32 %v234, 1
    %v379 = vadd.s32 %v235, 1
    %v380 = vadd.s32 %v236, 1
    %v381 = vadd.s32 %v237, 1
    %v382 = vadd.s32 %v238, 1
    %v383 = vadd.s32 %v239, 1
    %v384 = vadd.s32 %v240, 1
    %v385 = vadd.s32 %v241, 1
    %v386 = vadd.s32 %v242, 1
    %v387 = vadd.s32 %v243, 1
    %v388 = vadd.s32 %v244, 1
    %v389 = vadd.s32 %v245, 1
    %v390 = vadd.s32 %v246, 1
    %v391 = vadd.s32 %v247, 1
    %v392 = vadd.s32 %v248, 1
    %v393 = vadd.s32 %v249, 1
    %vm394 = vcmp.ge.s32.totalorder %v378, 0
    %vm395 = vcmp.ge.s32.totalorder %v379, 0
    %vm396 = vcmp.ge.s32.totalorder %v380, 0
    %vm397 = vcmp.ge.s32.totalorder %v381, 0
    %vm398 = vcmp.ge.s32.totalorder %v382, 0
    %vm399 = vcmp.ge.s32.totalorder %v383, 0
    %vm400 = vcmp.ge.s32.totalorder %v384, 0
    %vm401 = vcmp.ge.s32.totalorder %v385, 0
    %vm402 = vcmp.ge.s32.totalorder %v386, 0
    %vm403 = vcmp.ge.s32.totalorder %v387, 0
    %vm404 = vcmp.ge.s32.totalorder %v388, 0
    %vm405 = vcmp.ge.s32.totalorder %v389, 0
    %vm406 = vcmp.ge.s32.totalorder %v390, 0
    %vm407 = vcmp.ge.s32.totalorder %v391, 0
    %vm408 = vcmp.ge.s32.totalorder %v392, 0
    %vm409 = vcmp.ge.s32.totalorder %v393, 0
    %vm410 = vcmp.lt.s32.totalorder %v378, 16
    %vm411 = vcmp.lt.s32.totalorder %v379, 16
    %vm412 = vcmp.lt.s32.totalorder %v380, 16
    %vm413 = vcmp.lt.s32.totalorder %v381, 16
    %vm414 = vcmp.lt.s32.totalorder %v382, 16
    %vm415 = vcmp.lt.s32.totalorder %v383, 16
    %vm416 = vcmp.lt.s32.totalorder %v384, 16
    %vm417 = vcmp.lt.s32.totalorder %v385, 16
    %vm418 = vcmp.lt.s32.totalorder %v386, 16
    %vm419 = vcmp.lt.s32.totalorder %v387, 16
    %vm420 = vcmp.lt.s32.totalorder %v388, 16
    %vm421 = vcmp.lt.s32.totalorder %v389, 16
    %vm422 = vcmp.lt.s32.totalorder %v390, 16
    %vm423 = vcmp.lt.s32.totalorder %v391, 16
    %vm424 = vcmp.lt.s32.totalorder %v392, 16
    %vm425 = vcmp.lt.s32.totalorder %v393, 16
    %vm426 = vmand %vm394, %vm410
    %vm427 = vmand %vm395, %vm411
    %vm428 = vmand %vm396, %vm412
    %vm429 = vmand %vm397, %vm413
    %vm430 = vmand %vm398, %vm414
    %vm431 = vmand %vm399, %vm415
    %vm432 = vmand %vm400, %vm416
    %vm433 = vmand %vm401, %vm417
    %vm434 = vmand %vm402, %vm418
    %vm435 = vmand %vm403, %vm419
    %vm436 = vmand %vm404, %vm420
    %vm437 = vmand %vm405, %vm421
    %vm438 = vmand %vm406, %vm422
    %vm439 = vmand %vm407, %vm423
    %vm440 = vmand %vm408, %vm424
    %vm441 = vmand %vm409, %vm425
    %v442 = vadd.s32 %v234, 2
    %v443 = vadd.s32 %v235, 2
    %v444 = vadd.s32 %v236, 2
    %v445 = vadd.s32 %v237, 2
    %v446 = vadd.s32 %v238, 2
    %v447 = vadd.s32 %v239, 2
    %v448 = vadd.s32 %v240, 2
    %v449 = vadd.s32 %v241, 2
    %v450 = vadd.s32 %v242, 2
    %v451 = vadd.s32 %v243, 2
    %v452 = vadd.s32 %v244, 2
    %v453 = vadd.s32 %v245, 2
    %v454 = vadd.s32 %v246, 2
    %v455 = vadd.s32 %v247, 2
    %v456 = vadd.s32 %v248, 2
    %v457 = vadd.s32 %v249, 2
    %vm458 = vcmp.ge.s32.totalorder %v442, 0
    %vm459 = vcmp.ge.s32.totalorder %v443, 0
    %vm460 = vcmp.ge.s32.totalorder %v444, 0
    %vm461 = vcmp.ge.s32.totalorder %v445, 0
    %vm462 = vcmp.ge.s32.totalorder %v446, 0
    %vm463 = vcmp.ge.s32.totalorder %v447, 0
    %vm464 = vcmp.ge.s32.totalorder %v448, 0
    %vm465 = vcmp.ge.s32.totalorder %v449, 0
    %vm466 = vcmp.ge.s32.totalorder %v450, 0
    %vm467 = vcmp.ge.s32.totalorder %v451, 0
    %vm468 = vcmp.ge.s32.totalorder %v452, 0
    %vm469 = vcmp.ge.s32.totalorder %v453, 0
    %vm470 = vcmp.ge.s32.totalorder %v454, 0
    %vm471 = vcmp.ge.s32.totalorder %v455, 0
    %vm472 = vcmp.ge.s32.totalorder %v456, 0
    %vm473 = vcmp.ge.s32.totalorder %v457, 0
    %vm474 = vcmp.lt.s32.totalorder %v442, 16
    %vm475 = vcmp.lt.s32.totalorder %v443, 16
    %vm476 = vcmp.lt.s32.totalorder %v444, 16
    %vm477 = vcmp.lt.s32.totalorder %v445, 16
    %vm478 = vcmp.lt.s32.totalorder %v446, 16
    %vm479 = vcmp.lt.s32.totalorder %v447, 16
    %vm480 = vcmp.lt.s32.totalorder %v448, 16
    %vm481 = vcmp.lt.s32.totalorder %v449, 16
    %vm482 = vcmp.lt.s32.totalorder %v450, 16
    %vm483 = vcmp.lt.s32.totalorder %v451, 16
    %vm484 = vcmp.lt.s32.totalorder %v452, 16
    %vm485 = vcmp.lt.s32.totalorder %v453, 16
    %vm486 = vcmp.lt.s32.totalorder %v454, 16
    %vm487 = vcmp.lt.s32.totalorder %v455, 16
    %vm488 = vcmp.lt.s32.totalorder %v456, 16
    %vm489 = vcmp.lt.s32.totalorder %v457, 16
    %vm490 = vmand %vm458, %vm474
    %vm491 = vmand %vm459, %vm475
    %vm492 = vmand %vm460, %vm476
    %vm493 = vmand %vm461, %vm477
    %vm494 = vmand %vm462, %vm478
    %vm495 = vmand %vm463, %vm479
    %vm496 = vmand %vm464, %vm480
    %vm497 = vmand %vm465, %vm481
    %vm498 = vmand %vm466, %vm482
    %vm499 = vmand %vm467, %vm483
    %vm500 = vmand %vm468, %vm484
    %vm501 = vmand %vm469, %vm485
    %vm502 = vmand %vm470, %vm486
    %vm503 = vmand %vm471, %vm487
    %vm504 = vmand %vm472, %vm488
    %vm505 = vmand %vm473, %vm489
    %v506 = vld [vmem:[%s0] sm:$0xf]
    %v507 = vld [vmem:[%s0 + $0x4] sm:$0xf]
    %v508 = vld [vmem:[%s0 + $0x8] sm:$0xf]
    %v509 = vld [vmem:[%s0 + $0xc] sm:$0xf]
    %v510 = vld [vmem:[%s0 + $0x10] sm:$0xf]
    %v511 = vld [vmem:[%s0 + $0x14] sm:$0xf]
    %v512 = vld [vmem:[%s0 + $0x18] sm:$0xf]
    %v513 = vld [vmem:[%s0 + $0x1c] sm:$0xf]
    %v514 = vld [vmem:[%s0 + $0x20] sm:$0xf]
    %v515 = vld [vmem:[%s0 + $0x24] sm:$0xf]
    %v516 = vld [vmem:[%s0 + $0x28] sm:$0xf]
    %v517 = vld [vmem:[%s0 + $0x2c] sm:$0xf]
    %v518 = vld [vmem:[%s0 + $0x30] sm:$0xf]
    %v519 = vld [vmem:[%s0 + $0x34] sm:$0xf]
    %v520 = vld [vmem:[%s0 + $0x38] sm:$0xf]
    %v521 = vld [vmem:[%s0 + $0x3c] sm:$0xf]
    %v522 = vld [vmem:[%s1] sm:$0x3]
    %v539 = vunpack.c.l.b16 %v506
    %v540 = vunpack.c.l.b16 %v507
    %v541 = vunpack.c.l.b16 %v508
    %v542 = vunpack.c.l.b16 %v509
    %v543 = vunpack.c.l.b16 %v510
    %v544 = vunpack.c.l.b16 %v511
    %v545 = vunpack.c.l.b16 %v512
    %v546 = vunpack.c.l.b16 %v513
    %v547 = vunpack.c.l.b16 %v514
    %v548 = vunpack.c.l.b16 %v515
    %v549 = vunpack.c.l.b16 %v516
    %v550 = vunpack.c.l.b16 %v517
    %v551 = vunpack.c.l.b16 %v518
    %v552 = vunpack.c.l.b16 %v519
    %v553 = vunpack.c.l.b16 %v520
    %v554 = vunpack.c.l.b16 %v521
    %v555 = vpack.c.b16 %v540, %v539
    %v556 = vpack.c.b16 %v542, %v541
    %v557 = vpack.c.b16 %v544, %v543
    %v558 = vpack.c.b16 %v546, %v545
    %v559 = vpack.c.b16 %v548, %v547
    %v560 = vpack.c.b16 %v550, %v549
    %v561 = vpack.c.b16 %v552, %v551
    %v562 = vpack.c.b16 %v554, %v553
    %vm563 = vcmask 31744
    %v565 = vsel %vm563, %v555, 0
    %v568 = vsel %vm563, %v556, 0
    %v571 = vsel %vm563, %v557, 0
    %v574 = vsel %vm563, %v558, 0
    %v577 = vsel %vm563, %v559, 0
    %v580 = vsel %vm563, %v560, 0
    %v583 = vsel %vm563, %v561, 0
    %v586 = vsel %vm563, %v562, 0
    %vm588 = vcmask 1041408
    %v590 = vsel %vm588, %v522, 0
    %592 = vmatpush.bf16.msra.mxu0 0
    %593 = vmatpush.bf16.msra.mxu0 0
    %594 = vmatpush.bf16.msra.mxu0 0
    %595 = vmatpush.bf16.msra.mxu0 0
    %596 = vmatpush.bf16.msra.mxu0 0
    %597 = vmatpush.bf16.msra.mxu0 0
    %598 = vmatpush.bf16.msra.mxu0 0
    %599 = vmatpush.bf16.msra.mxu0 %v590
    %600 = vmatmul.bf16.gmra.mxu0 %v565
    %v601 = vpop.f32.mrf.mxu0
    %v602 = vadd.f32 0.0, %v601
    %v603 = vpop.f32.mrf.mxu0
    %v604 = vadd.f32 0.0, %v603
    %605 = vmatmul.bf16.gmra.mxu0 %v568
    %v606 = vpop.f32.mrf.mxu0
    %v607 = vadd.f32 0.0, %v606
    %v608 = vpop.f32.mrf.mxu0
    %v609 = vadd.f32 0.0, %v608
    %610 = vmatmul.bf16.gmra.mxu0 %v571
    %v611 = vpop.f32.mrf.mxu0
    %v612 = vadd.f32 0.0, %v611
    %v613 = vpop.f32.mrf.mxu0
    %v614 = vadd.f32 0.0, %v613
    %615 = vmatmul.bf16.gmra.mxu0 %v574
    %v616 = vpop.f32.mrf.mxu0
    %v617 = vadd.f32 0.0, %v616
    %v618 = vpop.f32.mrf.mxu0
    %v619 = vadd.f32 0.0, %v618
    %620 = vmatmul.bf16.gmra.mxu0 %v577
    %v621 = vpop.f32.mrf.mxu0
    %v622 = vadd.f32 0.0, %v621
    %v623 = vpop.f32.mrf.mxu0
    %v624 = vadd.f32 0.0, %v623
    %625 = vmatmul.bf16.gmra.mxu0 %v580
    %v626 = vpop.f32.mrf.mxu0
    %v627 = vadd.f32 0.0, %v626
    %v628 = vpop.f32.mrf.mxu0
    %v629 = vadd.f32 0.0, %v628
    %630 = vmatmul.bf16.gmra.mxu0 %v583
    %v631 = vpop.f32.mrf.mxu0
    %v632 = vadd.f32 0.0, %v631
    %v633 = vpop.f32.mrf.mxu0
    %v634 = vadd.f32 0.0, %v633
    %635 = vmatmul.bf16.gmra.mxu0 %v586
    %v636 = vpop.f32.mrf.mxu0
    %v637 = vadd.f32 0.0, %v636
    %v638 = vpop.f32.mrf.mxu0
    %v639 = vadd.f32 0.0, %v638
    %640 = vdwg.mxu0
    %v641 = vadd.f32 %v602, %v604
    %v642 = vadd.f32 %v641, %v607
    %v643 = vadd.f32 %v642, %v609
    %v644 = vadd.f32 %v643, %v612
    %v645 = vadd.f32 %v644, %v614
    %v646 = vadd.f32 %v645, %v617
    %v647 = vadd.f32 %v646, %v619
    %v648 = vadd.f32 %v647, %v622
    %v649 = vadd.f32 %v648, %v624
    %v650 = vadd.f32 %v649, %v627
    %v651 = vadd.f32 %v650, %v629
    %v652 = vadd.f32 %v651, %v632
    %v653 = vadd.f32 %v652, %v634
    %v654 = vadd.f32 %v653, %v637
    %v655 = vadd.f32 %v654, %v639
    %v656 = vrot.slane %v655, 4
    %v657 = vadd.f32 %v655, %v656
    %v658 = vrot.slane %v657, 2
    %v659 = vadd.f32 %v657, %v658
    %v660 = vrot.slane %v659, 1
    %v661 = vadd.f32 %v659, %v660
    %v662 = vrcp.pop 128.0
    %v663 = vmul.f32 128.0, %v662
    %v664 = vsub.f32 1.0, %v663
    %v665 = vmul.f32 %v662, %v664
    %v666 = vadd.f32 %v662, %v665
    %vm667 = vweird.f32 %v662
    %v668 = vsel %vm667, %v662, %v666
    %v669 = vmul.f32 %v661, %v668
    %v670 = vmul.f32 %v602, %v602
    %v671 = vmul.f32 %v604, %v604
    %v672 = vmul.f32 %v607, %v607
    %v673 = vmul.f32 %v609, %v609
    %v674 = vmul.f32 %v612, %v612
    %v675 = vmul.f32 %v614, %v614
    %v676 = vmul.f32 %v617, %v617
    %v677 = vmul.f32 %v619, %v619
    %v678 = vmul.f32 %v622, %v622
    %v679 = vmul.f32 %v624, %v624
    %v680 = vmul.f32 %v627, %v627
    %v681 = vmul.f32 %v629, %v629
    %v682 = vmul.f32 %v632, %v632
    %v683 = vmul.f32 %v634, %v634
    %v684 = vmul.f32 %v637, %v637
    %v685 = vmul.f32 %v639, %v639
    %v686 = vadd.f32 %v670, %v671
    %v687 = vadd.f32 %v686, %v672
    %v688 = vadd.f32 %v687, %v673
    %v689 = vadd.f32 %v688, %v674
    %v690 = vadd.f32 %v689, %v675
    %v691 = vadd.f32 %v690, %v676
    %v692 = vadd.f32 %v691, %v677
    %v693 = vadd.f32 %v692, %v678
    %v694 = vadd.f32 %v693, %v679
    %v695 = vadd.f32 %v694, %v680
    %v696 = vadd.f32 %v695, %v681
    %v697 = vadd.f32 %v696, %v682
    %v698 = vadd.f32 %v697, %v683
    %v699 = vadd.f32 %v698, %v684
    %v700 = vadd.f32 %v699, %v685
    %v701 = vrot.slane %v700, 4
    %v702 = vadd.f32 %v700, %v701
    %v703 = vrot.slane %v702, 2
    %v704 = vadd.f32 %v702, %v703
    %v705 = vrot.slane %v704, 1
    %v706 = vadd.f32 %v704, %v705
    %v707 = vmul.f32 %v706, %v668
    %v708 = vmul.f32 %v669, %v669
    %v709 = vsub.f32 %v707, %v708
    %v710 = vld [vmem:[%s4] sm:$0x1]
    %v711 = vadd.f32 %v709, 1e-05
    %v712 = vrsqrt.pop %v711
    %v713 = vmul.f32 %v712, %v711
    %v714 = vmul.f32 %v713, %v712
    %v715 = vmul.f32 0.5, %v714
    %v716 = vsub.f32 1.5, %v715
    %v717 = vmul.f32 %v712, %v716
    %vm718 = vweird.f32 %v711
    %vm719 = vweird.f32 %v712
    %vm720 = vmor %vm718, %vm719
    %v721 = vsel %vm720, %v712, %v717
    %v722 = vmul.f32 %v710, %v721
    %v723 = vld [vmem:[%s5] sm:$0x1]
    %v724 = vmul.f32 %v669, %v722
    %v725 = vsub.f32 %v723, %v724
    %v727 = vperm.slane %v722, 0
    %v729 = vmul.f32 %v602, %v727
    %v730 = vmul.f32 %v604, %v727
    %v731 = vmul.f32 %v607, %v727
    %v732 = vmul.f32 %v609, %v727
    %v733 = vmul.f32 %v612, %v727
    %v734 = vmul.f32 %v614, %v727
    %v735 = vmul.f32 %v617, %v727
    %v736 = vmul.f32 %v619, %v727
    %v737 = vmul.f32 %v622, %v727
    %v738 = vmul.f32 %v624, %v727
    %v739 = vmul.f32 %v627, %v727
    %v740 = vmul.f32 %v629, %v727
    %v741 = vmul.f32 %v632, %v727
    %v742 = vmul.f32 %v634, %v727
    %v743 = vmul.f32 %v637, %v727
    %v744 = vmul.f32 %v639, %v727
    %v746 = vperm.slane %v725, 0
    %v748 = vadd.f32 %v729, %v746
    %v749 = vadd.f32 %v730, %v746
    %v750 = vadd.f32 %v731, %v746
    %v751 = vadd.f32 %v732, %v746
    %v752 = vadd.f32 %v733, %v746
    %v753 = vadd.f32 %v734, %v746
    %v754 = vadd.f32 %v735, %v746
    %v755 = vadd.f32 %v736, %v746
    %v756 = vadd.f32 %v737, %v746
    %v757 = vadd.f32 %v738, %v746
    %v758 = vadd.f32 %v739, %v746
    %v759 = vadd.f32 %v740, %v746
    %v760 = vadd.f32 %v741, %v746
    %v761 = vadd.f32 %v742, %v746
    %v762 = vadd.f32 %v743, %v746
    %v763 = vadd.f32 %v744, %v746
    %v764 = vpack.c.bf16 %v749, %v748
    %v765 = vpack.c.bf16 %v751, %v750
    %v766 = vpack.c.bf16 %v753, %v752
    %v767 = vpack.c.bf16 %v755, %v754
    %v768 = vpack.c.bf16 %v757, %v756
    %v769 = vpack.c.bf16 %v759, %v758
    %v770 = vpack.c.bf16 %v761, %v760
    %v771 = vpack.c.bf16 %v763, %v762
    %s772 = scalar_lea.vmem [#allocation3], 128
    %v773 = vld [vmem:[%s772] sm:$0xf]
    %v774 = vld [vmem:[%s772 + $0x4] sm:$0xf]
    %v775 = vld [vmem:[%s772 + $0x8] sm:$0xf]
    %v776 = vld [vmem:[%s772 + $0xc] sm:$0xf]
    %v777 = vld [vmem:[%s772 + $0x10] sm:$0xf]
    %v778 = vld [vmem:[%s772 + $0x14] sm:$0xf]
    %v779 = vld [vmem:[%s772 + $0x18] sm:$0xf]
    %v780 = vld [vmem:[%s772 + $0x1c] sm:$0xf]
    %v781 = vld [vmem:[%s772 + $0x20] sm:$0xf]
    %v782 = vld [vmem:[%s772 + $0x24] sm:$0xf]
    %v783 = vld [vmem:[%s772 + $0x28] sm:$0xf]
    %v784 = vld [vmem:[%s772 + $0x2c] sm:$0xf]
    %v785 = vld [vmem:[%s772 + $0x30] sm:$0xf]
    %v786 = vld [vmem:[%s772 + $0x34] sm:$0xf]
    %v787 = vld [vmem:[%s772 + $0x38] sm:$0xf]
    %v788 = vld [vmem:[%s772 + $0x3c] sm:$0xf]
    %v789 = vrot.slane %v748, 6
    %v790 = vrot.slane %v749, 6
    %v791 = vrot.slane %v750, 6
    %v792 = vrot.slane %v751, 6
    %v793 = vrot.slane %v752, 6
    %v794 = vrot.slane %v753, 6
    %v795 = vrot.slane %v754, 6
    %v796 = vrot.slane %v755, 6
    %v797 = vrot.slane %v756, 6
    %v798 = vrot.slane %v757, 6
    %v799 = vrot.slane %v758, 6
    %v800 = vrot.slane %v759, 6
    %v801 = vrot.slane %v760, 6
    %v802 = vrot.slane %v761, 6
    %v803 = vrot.slane %v762, 6
    %v804 = vrot.slane %v763, 6
    %vm805 = vcmp.lt.s32.totalorder %v42, 2
    %v806 = vsel %vm805, %v803, %v804
    %v807 = vsel %vm805, %v802, %v803
    %v808 = vsel %vm805, %v801, %v802
    %v809 = vsel %vm805, %v800, %v801
    %v810 = vsel %vm805, %v799, %v800
    %v811 = vsel %vm805, %v798, %v799
    %v812 = vsel %vm805, %v797, %v798
    %v813 = vsel %vm805, %v796, %v797
    %v814 = vsel %vm805, %v795, %v796
    %v815 = vsel %vm805, %v794, %v795
    %v816 = vsel %vm805, %v793, %v794
    %v817 = vsel %vm805, %v792, %v793
    %v818 = vsel %vm805, %v791, %v792
    %v819 = vsel %vm805, %v790, %v791
    %v820 = vsel %vm805, %v789, %v790
    %v821 = vsel %vm805, %v804, %v789
    %v822 = vsel %vm298, 1, 0
    %v823 = vsel %vm299, 1, 0
    %v824 = vsel %vm300, 1, 0
    %v825 = vsel %vm301, 1, 0
    %v826 = vsel %vm302, 1, 0
    %v827 = vsel %vm303, 1, 0
    %v828 = vsel %vm304, 1, 0
    %v829 = vsel %vm305, 1, 0
    %v830 = vsel %vm306, 1, 0
    %v831 = vsel %vm307, 1, 0
    %v832 = vsel %vm308, 1, 0
    %v833 = vsel %vm309, 1, 0
    %v834 = vsel %vm310, 1, 0
    %v835 = vsel %vm311, 1, 0
    %v836 = vsel %vm312, 1, 0
    %v837 = vsel %vm313, 1, 0
    %vm838 = vcmp.eq.s32.totalorder %v822, 1
    %vm839 = vcmp.eq.s32.totalorder %v823, 1
    %vm840 = vcmp.eq.s32.totalorder %v824, 1
    %vm841 = vcmp.eq.s32.totalorder %v825, 1
    %vm842 = vcmp.eq.s32.totalorder %v826, 1
    %vm843 = vcmp.eq.s32.totalorder %v827, 1
    %vm844 = vcmp.eq.s32.totalorder %v828, 1
    %vm845 = vcmp.eq.s32.totalorder %v829, 1
    %vm846 = vcmp.eq.s32.totalorder %v830, 1
    %vm847 = vcmp.eq.s32.totalorder %v831, 1
    %vm848 = vcmp.eq.s32.totalorder %v832, 1
    %vm849 = vcmp.eq.s32.totalorder %v833, 1
    %vm850 = vcmp.eq.s32.totalorder %v834, 1
    %vm851 = vcmp.eq.s32.totalorder %v835, 1
    %vm852 = vcmp.eq.s32.totalorder %v836, 1
    %vm853 = vcmp.eq.s32.totalorder %v837, 1
    %v854 = vsel %vm838, %v821, 0.0
    %v855 = vsel %vm839, %v820, 0.0
    %v856 = vsel %vm840, %v819, 0.0
    %v857 = vsel %vm841, %v818, 0.0
    %v858 = vsel %vm842, %v817, 0.0
    %v859 = vsel %vm843, %v816, 0.0
    %v860 = vsel %vm844, %v815, 0.0
    %v861 = vsel %vm845, %v814, 0.0
    %v862 = vsel %vm846, %v813, 0.0
    %v863 = vsel %vm847, %v812, 0.0
    %v864 = vsel %vm848, %v811, 0.0
    %v865 = vsel %vm849, %v810, 0.0
    %v866 = vsel %vm850, %v809, 0.0
    %v867 = vsel %vm851, %v808, 0.0
    %v868 = vsel %vm852, %v807, 0.0
    %v869 = vsel %vm853, %v806, 0.0
    %v870 = vpack.c.bf16 %v855, %v854
    %v871 = vpack.c.bf16 %v857, %v856
    %v872 = vpack.c.bf16 %v859, %v858
    %v873 = vpack.c.bf16 %v861, %v860
    %v874 = vpack.c.bf16 %v863, %v862
    %v875 = vpack.c.bf16 %v865, %v864
    %v876 = vpack.c.bf16 %v867, %v866
    %v877 = vpack.c.bf16 %v869, %v868
    %v878 = vld [vmem:[#allocation3] sm:$0xf]
    %v879 = vld [vmem:[#allocation3 + $0x4] sm:$0xf]
    %v880 = vld [vmem:[#allocation3 + $0x8] sm:$0xf]
    %v881 = vld [vmem:[#allocation3 + $0xc] sm:$0xf]
    %v882 = vld [vmem:[#allocation3 + $0x10] sm:$0xf]
    %v883 = vld [vmem:[#allocation3 + $0x14] sm:$0xf]
    %v884 = vld [vmem:[#allocation3 + $0x18] sm:$0xf]
    %v885 = vld [vmem:[#allocation3 + $0x1c] sm:$0xf]
    %v886 = vld [vmem:[#allocation3 + $0x20] sm:$0xf]
    %v887 = vld [vmem:[#allocation3 + $0x24] sm:$0xf]
    %v888 = vld [vmem:[#allocation3 + $0x28] sm:$0xf]
    %v889 = vld [vmem:[#allocation3 + $0x2c] sm:$0xf]
    %v890 = vld [vmem:[#allocation3 + $0x30] sm:$0xf]
    %v891 = vld [vmem:[#allocation3 + $0x34] sm:$0xf]
    %v892 = vld [vmem:[#allocation3 + $0x38] sm:$0xf]
    %v893 = vld [vmem:[#allocation3 + $0x3c] sm:$0xf]
    %v910 = vunpack.c.l.b16 %v878
    %v911 = vunpack.c.l.b16 %v879
    %v912 = vunpack.c.l.b16 %v880
    %v913 = vunpack.c.l.b16 %v881
    %v914 = vunpack.c.l.b16 %v882
    %v915 = vunpack.c.l.b16 %v883
    %v916 = vunpack.c.l.b16 %v884
    %v917 = vunpack.c.l.b16 %v885
    %v918 = vunpack.c.l.b16 %v886
    %v919 = vunpack.c.l.b16 %v887
    %v920 = vunpack.c.l.b16 %v888
    %v921 = vunpack.c.l.b16 %v889
    %v922 = vunpack.c.l.b16 %v890
    %v923 = vunpack.c.l.b16 %v891
    %v924 = vunpack.c.l.b16 %v892
    %v925 = vunpack.c.l.b16 %v893
    %v926 = vpack.c.b16 %v911, %v910
    %v927 = vpack.c.b16 %v913, %v912
    %v928 = vpack.c.b16 %v915, %v914
    %v929 = vpack.c.b16 %v917, %v916
    %v930 = vpack.c.b16 %v919, %v918
    %v931 = vpack.c.b16 %v921, %v920
    %v932 = vpack.c.b16 %v923, %v922
    %v933 = vpack.c.b16 %v925, %v924
    %942 = vmatpush.bf16.msra.mxu0 %v933
    %943 = vmatpush.bf16.msra.mxu0 %v932
    %944 = vmatpush.bf16.msra.mxu0 %v931
    %945 = vmatpush.bf16.msra.mxu0 %v930
    %946 = vmatpush.bf16.msra.mxu0 %v929
    %947 = vmatpush.bf16.msra.mxu0 %v928
    %948 = vmatpush.bf16.msra.mxu0 %v927
    %949 = vmatpush.bf16.msra.mxu0 %v926
    %950 = vmatmul.bf16.gmra.mxu0 %v870
    %v951 = vpop.f32.mrf.mxu0
    %v952 = vadd.f32 0.0, %v951
    %v953 = vpop.f32.mrf.mxu0
    %v954 = vadd.f32 0.0, %v953
    %955 = vmatmul.bf16.gmra.mxu0 %v871
    %v956 = vpop.f32.mrf.mxu0
    %v957 = vadd.f32 0.0, %v956
    %v958 = vpop.f32.mrf.mxu0
    %v959 = vadd.f32 0.0, %v958
    %960 = vmatmul.bf16.gmra.mxu0 %v872
    %v961 = vpop.f32.mrf.mxu0
    %v962 = vadd.f32 0.0, %v961
    %v963 = vpop.f32.mrf.mxu0
    %v964 = vadd.f32 0.0, %v963
    %965 = vmatmul.bf16.gmra.mxu0 %v873
    %v966 = vpop.f32.mrf.mxu0
    %v967 = vadd.f32 0.0, %v966
    %v968 = vpop.f32.mrf.mxu0
    %v969 = vadd.f32 0.0, %v968
    %970 = vmatmul.bf16.gmra.mxu0 %v874
    %v971 = vpop.f32.mrf.mxu0
    %v972 = vadd.f32 0.0, %v971
    %v973 = vpop.f32.mrf.mxu0
    %v974 = vadd.f32 0.0, %v973
    %975 = vmatmul.bf16.gmra.mxu0 %v875
    %v976 = vpop.f32.mrf.mxu0
    %v977 = vadd.f32 0.0, %v976
    %v978 = vpop.f32.mrf.mxu0
    %v979 = vadd.f32 0.0, %v978
    %980 = vmatmul.bf16.gmra.mxu0 %v876
    %v981 = vpop.f32.mrf.mxu0
    %v982 = vadd.f32 0.0, %v981
    %v983 = vpop.f32.mrf.mxu0
    %v984 = vadd.f32 0.0, %v983
    %985 = vmatmul.bf16.gmra.mxu0 %v877
    %v986 = vpop.f32.mrf.mxu0
    %v987 = vadd.f32 0.0, %v986
    %v988 = vpop.f32.mrf.mxu0
    %v989 = vadd.f32 0.0, %v988
    %990 = vdwg.mxu0
    %v1007 = vunpack.c.l.b16 %v773
    %v1008 = vunpack.c.l.b16 %v774
    %v1009 = vunpack.c.l.b16 %v775
    %v1010 = vunpack.c.l.b16 %v776
    %v1011 = vunpack.c.l.b16 %v777
    %v1012 = vunpack.c.l.b16 %v778
    %v1013 = vunpack.c.l.b16 %v779
    %v1014 = vunpack.c.l.b16 %v780
    %v1015 = vunpack.c.l.b16 %v781
    %v1016 = vunpack.c.l.b16 %v782
    %v1017 = vunpack.c.l.b16 %v783
    %v1018 = vunpack.c.l.b16 %v784
    %v1019 = vunpack.c.l.b16 %v785
    %v1020 = vunpack.c.l.b16 %v786
    %v1021 = vunpack.c.l.b16 %v787
    %v1022 = vunpack.c.l.b16 %v788
    %v1023 = vpack.c.b16 %v1008, %v1007
    %v1024 = vpack.c.b16 %v1010, %v1009
    %v1025 = vpack.c.b16 %v1012, %v1011
    %v1026 = vpack.c.b16 %v1014, %v1013
    %v1027 = vpack.c.b16 %v1016, %v1015
    %v1028 = vpack.c.b16 %v1018, %v1017
    %v1029 = vpack.c.b16 %v1020, %v1019
    %v1030 = vpack.c.b16 %v1022, %v1021
    %1039 = vmatpush.bf16.msra.mxu0 %v1030
    %1040 = vmatpush.bf16.msra.mxu0 %v1029
    %1041 = vmatpush.bf16.msra.mxu0 %v1028
    %1042 = vmatpush.bf16.msra.mxu0 %v1027
    %1043 = vmatpush.bf16.msra.mxu0 %v1026
    %1044 = vmatpush.bf16.msra.mxu0 %v1025
    %1045 = vmatpush.bf16.msra.mxu0 %v1024
    %1046 = vmatpush.bf16.msra.mxu0 %v1023
    %1047 = vmatmul.bf16.gmra.mxu0 %v764
    %v1048 = vpop.f32.mrf.mxu0
    %v1049 = vadd.f32 %v952, %v1048
    %v1050 = vpop.f32.mrf.mxu0
    %v1051 = vadd.f32 %v954, %v1050
    %1052 = vmatmul.bf16.gmra.mxu0 %v765
    %v1053 = vpop.f32.mrf.mxu0
    %v1054 = vadd.f32 %v957, %v1053
    %v1055 = vpop.f32.mrf.mxu0
    %v1056 = vadd.f32 %v959, %v1055
    %1057 = vmatmul.bf16.gmra.mxu0 %v766
    %v1058 = vpop.f32.mrf.mxu0
    %v1059 = vadd.f32 %v962, %v1058
    %v1060 = vpop.f32.mrf.mxu0
    %v1061 = vadd.f32 %v964, %v1060
    %1062 = vmatmul.bf16.gmra.mxu0 %v767
    %v1063 = vpop.f32.mrf.mxu0
    %v1064 = vadd.f32 %v967, %v1063
    %v1065 = vpop.f32.mrf.mxu0
    %v1066 = vadd.f32 %v969, %v1065
    %1067 = vmatmul.bf16.gmra.mxu0 %v768
    %v1068 = vpop.f32.mrf.mxu0
    %v1069 = vadd.f32 %v972, %v1068
    %v1070 = vpop.f32.mrf.mxu0
    %v1071 = vadd.f32 %v974, %v1070
    %1072 = vmatmul.bf16.gmra.mxu0 %v769
    %v1073 = vpop.f32.mrf.mxu0
    %v1074 = vadd.f32 %v977, %v1073
    %v1075 = vpop.f32.mrf.mxu0
    %v1076 = vadd.f32 %v979, %v1075
    %1077 = vmatmul.bf16.gmra.mxu0 %v770
    %v1078 = vpop.f32.mrf.mxu0
    %v1079 = vadd.f32 %v982, %v1078
    %v1080 = vpop.f32.mrf.mxu0
    %v1081 = vadd.f32 %v984, %v1080
    %1082 = vmatmul.bf16.gmra.mxu0 %v771
    %v1083 = vpop.f32.mrf.mxu0
    %v1084 = vadd.f32 %v987, %v1083
    %v1085 = vpop.f32.mrf.mxu0
    %v1086 = vadd.f32 %v989, %v1085
    %1087 = vdwg.mxu0
    %v1088 = vrot.slane %v748, 7
    %v1089 = vrot.slane %v749, 7
    %v1090 = vrot.slane %v750, 7
    %v1091 = vrot.slane %v751, 7
    %v1092 = vrot.slane %v752, 7
    %v1093 = vrot.slane %v753, 7
    %v1094 = vrot.slane %v754, 7
    %v1095 = vrot.slane %v755, 7
    %v1096 = vrot.slane %v756, 7
    %v1097 = vrot.slane %v757, 7
    %v1098 = vrot.slane %v758, 7
    %v1099 = vrot.slane %v759, 7
    %v1100 = vrot.slane %v760, 7
    %v1101 = vrot.slane %v761, 7
    %v1102 = vrot.slane %v762, 7
    %v1103 = vrot.slane %v763, 7
    %vm1104 = vcmp.lt.s32.totalorder %v42, 1
    %v1105 = vsel %vm1104, %v1102, %v1103
    %v1106 = vsel %vm1104, %v1101, %v1102
    %v1107 = vsel %vm1104, %v1100, %v1101
    %v1108 = vsel %vm1104, %v1099, %v1100
    %v1109 = vsel %vm1104, %v1098, %v1099
    %v1110 = vsel %vm1104, %v1097, %v1098
    %v1111 = vsel %vm1104, %v1096, %v1097
    %v1112 = vsel %vm1104, %v1095, %v1096
    %v1113 = vsel %vm1104, %v1094, %v1095
    %v1114 = vsel %vm1104, %v1093, %v1094
    %v1115 = vsel %vm1104, %v1092, %v1093
    %v1116 = vsel %vm1104, %v1091, %v1092
    %v1117 = vsel %vm1104, %v1090, %v1091
    %v1118 = vsel %vm1104, %v1089, %v1090
    %v1119 = vsel %vm1104, %v1088, %v1089
    %v1120 = vsel %vm1104, %v1103, %v1088
    %v1121 = vsel %vm362, 1, 0
    %v1122 = vsel %vm363, 1, 0
    %v1123 = vsel %vm364, 1, 0
    %v1124 = vsel %vm365, 1, 0
    %v1125 = vsel %vm366, 1, 0
    %v1126 = vsel %vm367, 1, 0
    %v1127 = vsel %vm368, 1, 0
    %v1128 = vsel %vm369, 1, 0
    %v1129 = vsel %vm370, 1, 0
    %v1130 = vsel %vm371, 1, 0
    %v1131 = vsel %vm372, 1, 0
    %v1132 = vsel %vm373, 1, 0
    %v1133 = vsel %vm374, 1, 0
    %v1134 = vsel %vm375, 1, 0
    %v1135 = vsel %vm376, 1, 0
    %v1136 = vsel %vm377, 1, 0
    %vm1137 = vcmp.eq.s32.totalorder %v1121, 1
    %vm1138 = vcmp.eq.s32.totalorder %v1122, 1
    %vm1139 = vcmp.eq.s32.totalorder %v1123, 1
    %vm1140 = vcmp.eq.s32.totalorder %v1124, 1
    %vm1141 = vcmp.eq.s32.totalorder %v1125, 1
    %vm1142 = vcmp.eq.s32.totalorder %v1126, 1
    %vm1143 = vcmp.eq.s32.totalorder %v1127, 1
    %vm1144 = vcmp.eq.s32.totalorder %v1128, 1
    %vm1145 = vcmp.eq.s32.totalorder %v1129, 1
    %vm1146 = vcmp.eq.s32.totalorder %v1130, 1
    %vm1147 = vcmp.eq.s32.totalorder %v1131, 1
    %vm1148 = vcmp.eq.s32.totalorder %v1132, 1
    %vm1149 = vcmp.eq.s32.totalorder %v1133, 1
    %vm1150 = vcmp.eq.s32.totalorder %v1134, 1
    %vm1151 = vcmp.eq.s32.totalorder %v1135, 1
    %vm1152 = vcmp.eq.s32.totalorder %v1136, 1
    %v1153 = vsel %vm1137, %v1120, 0.0
    %v1154 = vsel %vm1138, %v1119, 0.0
    %v1155 = vsel %vm1139, %v1118, 0.0
    %v1156 = vsel %vm1140, %v1117, 0.0
    %v1157 = vsel %vm1141, %v1116, 0.0
    %v1158 = vsel %vm1142, %v1115, 0.0
    %v1159 = vsel %vm1143, %v1114, 0.0
    %v1160 = vsel %vm1144, %v1113, 0.0
    %v1161 = vsel %vm1145, %v1112, 0.0
    %v1162 = vsel %vm1146, %v1111, 0.0
    %v1163 = vsel %vm1147, %v1110, 0.0
    %v1164 = vsel %vm1148, %v1109, 0.0
    %v1165 = vsel %vm1149, %v1108, 0.0
    %v1166 = vsel %vm1150, %v1107, 0.0
    %v1167 = vsel %vm1151, %v1106, 0.0
    %v1168 = vsel %vm1152, %v1105, 0.0
    %v1169 = vpack.c.bf16 %v1154, %v1153
    %v1170 = vpack.c.bf16 %v1156, %v1155
    %v1171 = vpack.c.bf16 %v1158, %v1157
    %v1172 = vpack.c.bf16 %v1160, %v1159
    %v1173 = vpack.c.bf16 %v1162, %v1161
    %v1174 = vpack.c.bf16 %v1164, %v1163
    %v1175 = vpack.c.bf16 %v1166, %v1165
    %v1176 = vpack.c.bf16 %v1168, %v1167
    %s1177 = scalar_lea.vmem [#allocation3], 64
    %v1178 = vld [vmem:[%s1177] sm:$0xf]
    %v1179 = vld [vmem:[%s1177 + $0x4] sm:$0xf]
    %v1180 = vld [vmem:[%s1177 + $0x8] sm:$0xf]
    %v1181 = vld [vmem:[%s1177 + $0xc] sm:$0xf]
    %v1182 = vld [vmem:[%s1177 + $0x10] sm:$0xf]
    %v1183 = vld [vmem:[%s1177 + $0x14] sm:$0xf]
    %v1184 = vld [vmem:[%s1177 + $0x18] sm:$0xf]
    %v1185 = vld [vmem:[%s1177 + $0x1c] sm:$0xf]
    %v1186 = vld [vmem:[%s1177 + $0x20] sm:$0xf]
    %v1187 = vld [vmem:[%s1177 + $0x24] sm:$0xf]
    %v1188 = vld [vmem:[%s1177 + $0x28] sm:$0xf]
    %v1189 = vld [vmem:[%s1177 + $0x2c] sm:$0xf]
    %v1190 = vld [vmem:[%s1177 + $0x30] sm:$0xf]
    %v1191 = vld [vmem:[%s1177 + $0x34] sm:$0xf]
    %v1192 = vld [vmem:[%s1177 + $0x38] sm:$0xf]
    %v1193 = vld [vmem:[%s1177 + $0x3c] sm:$0xf]
    %v1210 = vunpack.c.l.b16 %v1178
    %v1211 = vunpack.c.l.b16 %v1179
    %v1212 = vunpack.c.l.b16 %v1180
    %v1213 = vunpack.c.l.b16 %v1181
    %v1214 = vunpack.c.l.b16 %v1182
    %v1215 = vunpack.c.l.b16 %v1183
    %v1216 = vunpack.c.l.b16 %v1184
    %v1217 = vunpack.c.l.b16 %v1185
    %v1218 = vunpack.c.l.b16 %v1186
    %v1219 = vunpack.c.l.b16 %v1187
    %v1220 = vunpack.c.l.b16 %v1188
    %v1221 = vunpack.c.l.b16 %v1189
    %v1222 = vunpack.c.l.b16 %v1190
    %v1223 = vunpack.c.l.b16 %v1191
    %v1224 = vunpack.c.l.b16 %v1192
    %v1225 = vunpack.c.l.b16 %v1193
    %v1226 = vpack.c.b16 %v1211, %v1210
    %v1227 = vpack.c.b16 %v1213, %v1212
    %v1228 = vpack.c.b16 %v1215, %v1214
    %v1229 = vpack.c.b16 %v1217, %v1216
    %v1230 = vpack.c.b16 %v1219, %v1218
    %v1231 = vpack.c.b16 %v1221, %v1220
    %v1232 = vpack.c.b16 %v1223, %v1222
    %v1233 = vpack.c.b16 %v1225, %v1224
    %1242 = vmatpush.bf16.msra.mxu0 %v1233
    %1243 = vmatpush.bf16.msra.mxu0 %v1232
    %1244 = vmatpush.bf16.msra.mxu0 %v1231
    %1245 = vmatpush.bf16.msra.mxu0 %v1230
    %1246 = vmatpush.bf16.msra.mxu0 %v1229
    %1247 = vmatpush.bf16.msra.mxu0 %v1228
    %1248 = vmatpush.bf16.msra.mxu0 %v1227
    %1249 = vmatpush.bf16.msra.mxu0 %v1226
    %1250 = vmatmul.bf16.gmra.mxu0 %v1169
    %v1251 = vpop.f32.mrf.mxu0
    %v1252 = vadd.f32 0.0, %v1251
    %v1253 = vpop.f32.mrf.mxu0
    %v1254 = vadd.f32 0.0, %v1253
    %1255 = vmatmul.bf16.gmra.mxu0 %v1170
    %v1256 = vpop.f32.mrf.mxu0
    %v1257 = vadd.f32 0.0, %v1256
    %v1258 = vpop.f32.mrf.mxu0
    %v1259 = vadd.f32 0.0, %v1258
    %1260 = vmatmul.bf16.gmra.mxu0 %v1171
    %v1261 = vpop.f32.mrf.mxu0
    %v1262 = vadd.f32 0.0, %v1261
    %v1263 = vpop.f32.mrf.mxu0
    %v1264 = vadd.f32 0.0, %v1263
    %1265 = vmatmul.bf16.gmra.mxu0 %v1172
    %v1266 = vpop.f32.mrf.mxu0
    %v1267 = vadd.f32 0.0, %v1266
    %v1268 = vpop.f32.mrf.mxu0
    %v1269 = vadd.f32 0.0, %v1268
    %1270 = vmatmul.bf16.gmra.mxu0 %v1173
    %v1271 = vpop.f32.mrf.mxu0
    %v1272 = vadd.f32 0.0, %v1271
    %v1273 = vpop.f32.mrf.mxu0
    %v1274 = vadd.f32 0.0, %v1273
    %1275 = vmatmul.bf16.gmra.mxu0 %v1174
    %v1276 = vpop.f32.mrf.mxu0
    %v1277 = vadd.f32 0.0, %v1276
    %v1278 = vpop.f32.mrf.mxu0
    %v1279 = vadd.f32 0.0, %v1278
    %1280 = vmatmul.bf16.gmra.mxu0 %v1175
    %v1281 = vpop.f32.mrf.mxu0
    %v1282 = vadd.f32 0.0, %v1281
    %v1283 = vpop.f32.mrf.mxu0
    %v1284 = vadd.f32 0.0, %v1283
    %1285 = vmatmul.bf16.gmra.mxu0 %v1176
    %v1286 = vpop.f32.mrf.mxu0
    %v1287 = vadd.f32 0.0, %v1286
    %v1288 = vpop.f32.mrf.mxu0
    %v1289 = vadd.f32 0.0, %v1288
    %1290 = vdwg.mxu0
    %v1291 = vadd.f32 %v1049, %v1252
    %v1292 = vadd.f32 %v1051, %v1254
    %v1293 = vadd.f32 %v1054, %v1257
    %v1294 = vadd.f32 %v1056, %v1259
    %v1295 = vadd.f32 %v1059, %v1262
    %v1296 = vadd.f32 %v1061, %v1264
    %v1297 = vadd.f32 %v1064, %v1267
    %v1298 = vadd.f32 %v1066, %v1269
    %v1299 = vadd.f32 %v1069, %v1272
    %v1300 = vadd.f32 %v1071, %v1274
    %v1301 = vadd.f32 %v1074, %v1277
    %v1302 = vadd.f32 %v1076, %v1279
    %v1303 = vadd.f32 %v1079, %v1282
    %v1304 = vadd.f32 %v1081, %v1284
    %v1305 = vadd.f32 %v1084, %v1287
    %v1306 = vadd.f32 %v1086, %v1289
    %v1307 = vrot.slane %v748, 1
    %v1308 = vrot.slane %v749, 1
    %v1309 = vrot.slane %v750, 1
    %v1310 = vrot.slane %v751, 1
    %v1311 = vrot.slane %v752, 1
    %v1312 = vrot.slane %v753, 1
    %v1313 = vrot.slane %v754, 1
    %v1314 = vrot.slane %v755, 1
    %v1315 = vrot.slane %v756, 1
    %v1316 = vrot.slane %v757, 1
    %v1317 = vrot.slane %v758, 1
    %v1318 = vrot.slane %v759, 1
    %v1319 = vrot.slane %v760, 1
    %v1320 = vrot.slane %v761, 1
    %v1321 = vrot.slane %v762, 1
    %v1322 = vrot.slane %v763, 1
    %vm1323 = vcmp.lt.s32.totalorder %v42, 7
    %v1324 = vsel %vm1323, %v1321, %v1322
    %v1325 = vsel %vm1323, %v1320, %v1321
    %v1326 = vsel %vm1323, %v1319, %v1320
    %v1327 = vsel %vm1323, %v1318, %v1319
    %v1328 = vsel %vm1323, %v1317, %v1318
    %v1329 = vsel %vm1323, %v1316, %v1317
    %v1330 = vsel %vm1323, %v1315, %v1316
    %v1331 = vsel %vm1323, %v1314, %v1315
    %v1332 = vsel %vm1323, %v1313, %v1314
    %v1333 = vsel %vm1323, %v1312, %v1313
    %v1334 = vsel %vm1323, %v1311, %v1312
    %v1335 = vsel %vm1323, %v1310, %v1311
    %v1336 = vsel %vm1323, %v1309, %v1310
    %v1337 = vsel %vm1323, %v1308, %v1309
    %v1338 = vsel %vm1323, %v1307, %v1308
    %v1339 = vsel %vm1323, %v1322, %v1307
    %v1340 = vsel %vm426, 1, 0
    %v1341 = vsel %vm427, 1, 0
    %v1342 = vsel %vm428, 1, 0
    %v1343 = vsel %vm429, 1, 0
    %v1344 = vsel %vm430, 1, 0
    %v1345 = vsel %vm431, 1, 0
    %v1346 = vsel %vm432, 1, 0
    %v1347 = vsel %vm433, 1, 0
    %v1348 = vsel %vm434, 1, 0
    %v1349 = vsel %vm435, 1, 0
    %v1350 = vsel %vm436, 1, 0
    %v1351 = vsel %vm437, 1, 0
    %v1352 = vsel %vm438, 1, 0
    %v1353 = vsel %vm439, 1, 0
    %v1354 = vsel %vm440, 1, 0
    %v1355 = vsel %vm441, 1, 0
    %vm1356 = vcmp.eq.s32.totalorder %v1340, 1
    %vm1357 = vcmp.eq.s32.totalorder %v1341, 1
    %vm1358 = vcmp.eq.s32.totalorder %v1342, 1
    %vm1359 = vcmp.eq.s32.totalorder %v1343, 1
    %vm1360 = vcmp.eq.s32.totalorder %v1344, 1
    %vm1361 = vcmp.eq.s32.totalorder %v1345, 1
    %vm1362 = vcmp.eq.s32.totalorder %v1346, 1
    %vm1363 = vcmp.eq.s32.totalorder %v1347, 1
    %vm1364 = vcmp.eq.s32.totalorder %v1348, 1
    %vm1365 = vcmp.eq.s32.totalorder %v1349, 1
    %vm1366 = vcmp.eq.s32.totalorder %v1350, 1
    %vm1367 = vcmp.eq.s32.totalorder %v1351, 1
    %vm1368 = vcmp.eq.s32.totalorder %v1352, 1
    %vm1369 = vcmp.eq.s32.totalorder %v1353, 1
    %vm1370 = vcmp.eq.s32.totalorder %v1354, 1
    %vm1371 = vcmp.eq.s32.totalorder %v1355, 1
    %v1372 = vsel %vm1356, %v1338, 0.0
    %v1373 = vsel %vm1357, %v1337, 0.0
    %v1374 = vsel %vm1358, %v1336, 0.0
    %v1375 = vsel %vm1359, %v1335, 0.0
    %v1376 = vsel %vm1360, %v1334, 0.0
    %v1377 = vsel %vm1361, %v1333, 0.0
    %v1378 = vsel %vm1362, %v1332, 0.0
    %v1379 = vsel %vm1363, %v1331, 0.0
    %v1380 = vsel %vm1364, %v1330, 0.0
    %v1381 = vsel %vm1365, %v1329, 0.0
    %v1382 = vsel %vm1366, %v1328, 0.0
    %v1383 = vsel %vm1367, %v1327, 0.0
    %v1384 = vsel %vm1368, %v1326, 0.0
    %v1385 = vsel %vm1369, %v1325, 0.0
    %v1386 = vsel %vm1370, %v1324, 0.0
    %v1387 = vsel %vm1371, %v1339, 0.0
    %v1388 = vpack.c.bf16 %v1373, %v1372
    %v1389 = vpack.c.bf16 %v1375, %v1374
    %v1390 = vpack.c.bf16 %v1377, %v1376
    %v1391 = vpack.c.bf16 %v1379, %v1378
    %v1392 = vpack.c.bf16 %v1381, %v1380
    %v1393 = vpack.c.bf16 %v1383, %v1382
    %v1394 = vpack.c.bf16 %v1385, %v1384
    %v1395 = vpack.c.bf16 %v1387, %v1386
    %s1396 = scalar_lea.vmem [#allocation3], 192
    %v1397 = vld [vmem:[%s1396] sm:$0xf]
    %v1398 = vld [vmem:[%s1396 + $0x4] sm:$0xf]
    %v1399 = vld [vmem:[%s1396 + $0x8] sm:$0xf]
    %v1400 = vld [vmem:[%s1396 + $0xc] sm:$0xf]
    %v1401 = vld [vmem:[%s1396 + $0x10] sm:$0xf]
    %v1402 = vld [vmem:[%s1396 + $0x14] sm:$0xf]
    %v1403 = vld [vmem:[%s1396 + $0x18] sm:$0xf]
    %v1404 = vld [vmem:[%s1396 + $0x1c] sm:$0xf]
    %v1405 = vld [vmem:[%s1396 + $0x20] sm:$0xf]
    %v1406 = vld [vmem:[%s1396 + $0x24] sm:$0xf]
    %v1407 = vld [vmem:[%s1396 + $0x28] sm:$0xf]
    %v1408 = vld [vmem:[%s1396 + $0x2c] sm:$0xf]
    %v1409 = vld [vmem:[%s1396 + $0x30] sm:$0xf]
    %v1410 = vld [vmem:[%s1396 + $0x34] sm:$0xf]
    %v1411 = vld [vmem:[%s1396 + $0x38] sm:$0xf]
    %v1412 = vld [vmem:[%s1396 + $0x3c] sm:$0xf]
    %v1429 = vunpack.c.l.b16 %v1397
    %v1430 = vunpack.c.l.b16 %v1398
    %v1431 = vunpack.c.l.b16 %v1399
    %v1432 = vunpack.c.l.b16 %v1400
    %v1433 = vunpack.c.l.b16 %v1401
    %v1434 = vunpack.c.l.b16 %v1402
    %v1435 = vunpack.c.l.b16 %v1403
    %v1436 = vunpack.c.l.b16 %v1404
    %v1437 = vunpack.c.l.b16 %v1405
    %v1438 = vunpack.c.l.b16 %v1406
    %v1439 = vunpack.c.l.b16 %v1407
    %v1440 = vunpack.c.l.b16 %v1408
    %v1441 = vunpack.c.l.b16 %v1409
    %v1442 = vunpack.c.l.b16 %v1410
    %v1443 = vunpack.c.l.b16 %v1411
    %v1444 = vunpack.c.l.b16 %v1412
    %v1445 = vpack.c.b16 %v1430, %v1429
    %v1446 = vpack.c.b16 %v1432, %v1431
    %v1447 = vpack.c.b16 %v1434, %v1433
    %v1448 = vpack.c.b16 %v1436, %v1435
    %v1449 = vpack.c.b16 %v1438, %v1437
    %v1450 = vpack.c.b16 %v1440, %v1439
    %v1451 = vpack.c.b16 %v1442, %v1441
    %v1452 = vpack.c.b16 %v1444, %v1443
    %1461 = vmatpush.bf16.msra.mxu0 %v1452
    %1462 = vmatpush.bf16.msra.mxu0 %v1451
    %1463 = vmatpush.bf16.msra.mxu0 %v1450
    %1464 = vmatpush.bf16.msra.mxu0 %v1449
    %1465 = vmatpush.bf16.msra.mxu0 %v1448
    %1466 = vmatpush.bf16.msra.mxu0 %v1447
    %1467 = vmatpush.bf16.msra.mxu0 %v1446
    %1468 = vmatpush.bf16.msra.mxu0 %v1445
    %1469 = vmatmul.bf16.gmra.mxu0 %v1388
    %v1470 = vpop.f32.mrf.mxu0
    %v1471 = vadd.f32 0.0, %v1470
    %v1472 = vpop.f32.mrf.mxu0
    %v1473 = vadd.f32 0.0, %v1472
    %1474 = vmatmul.bf16.gmra.mxu0 %v1389
    %v1475 = vpop.f32.mrf.mxu0
    %v1476 = vadd.f32 0.0, %v1475
    %v1477 = vpop.f32.mrf.mxu0
    %v1478 = vadd.f32 0.0, %v1477
    %1479 = vmatmul.bf16.gmra.mxu0 %v1390
    %v1480 = vpop.f32.mrf.mxu0
    %v1481 = vadd.f32 0.0, %v1480
    %v1482 = vpop.f32.mrf.mxu0
    %v1483 = vadd.f32 0.0, %v1482
    %1484 = vmatmul.bf16.gmra.mxu0 %v1391
    %v1485 = vpop.f32.mrf.mxu0
    %v1486 = vadd.f32 0.0, %v1485
    %v1487 = vpop.f32.mrf.mxu0
    %v1488 = vadd.f32 0.0, %v1487
    %1489 = vmatmul.bf16.gmra.mxu0 %v1392
    %v1490 = vpop.f32.mrf.mxu0
    %v1491 = vadd.f32 0.0, %v1490
    %v1492 = vpop.f32.mrf.mxu0
    %v1493 = vadd.f32 0.0, %v1492
    %1494 = vmatmul.bf16.gmra.mxu0 %v1393
    %v1495 = vpop.f32.mrf.mxu0
    %v1496 = vadd.f32 0.0, %v1495
    %v1497 = vpop.f32.mrf.mxu0
    %v1498 = vadd.f32 0.0, %v1497
    %1499 = vmatmul.bf16.gmra.mxu0 %v1394
    %v1500 = vpop.f32.mrf.mxu0
    %v1501 = vadd.f32 0.0, %v1500
    %v1502 = vpop.f32.mrf.mxu0
    %v1503 = vadd.f32 0.0, %v1502
    %1504 = vmatmul.bf16.gmra.mxu0 %v1395
    %v1505 = vpop.f32.mrf.mxu0
    %v1506 = vadd.f32 0.0, %v1505
    %v1507 = vpop.f32.mrf.mxu0
    %v1508 = vadd.f32 0.0, %v1507
    %1509 = vdwg.mxu0
    %v1510 = vadd.f32 %v1291, %v1471
    %v1511 = vadd.f32 %v1292, %v1473
    %v1512 = vadd.f32 %v1293, %v1476
    %v1513 = vadd.f32 %v1294, %v1478
    %v1514 = vadd.f32 %v1295, %v1481
    %v1515 = vadd.f32 %v1296, %v1483
    %v1516 = vadd.f32 %v1297, %v1486
    %v1517 = vadd.f32 %v1298, %v1488
    %v1518 = vadd.f32 %v1299, %v1491
    %v1519 = vadd.f32 %v1300, %v1493
    %v1520 = vadd.f32 %v1301, %v1496
    %v1521 = vadd.f32 %v1302, %v1498
    %v1522 = vadd.f32 %v1303, %v1501
    %v1523 = vadd.f32 %v1304, %v1503
    %v1524 = vadd.f32 %v1305, %v1506
    %v1525 = vadd.f32 %v1306, %v1508
    %v1526 = vrot.slane %v748, 2
    %v1527 = vrot.slane %v749, 2
    %v1528 = vrot.slane %v750, 2
    %v1529 = vrot.slane %v751, 2
    %v1530 = vrot.slane %v752, 2
    %v1531 = vrot.slane %v753, 2
    %v1532 = vrot.slane %v754, 2
    %v1533 = vrot.slane %v755, 2
    %v1534 = vrot.slane %v756, 2
    %v1535 = vrot.slane %v757, 2
    %v1536 = vrot.slane %v758, 2
    %v1537 = vrot.slane %v759, 2
    %v1538 = vrot.slane %v760, 2
    %v1539 = vrot.slane %v761, 2
    %v1540 = vrot.slane %v762, 2
    %v1541 = vrot.slane %v763, 2
    %vm1542 = vcmp.lt.s32.totalorder %v42, 6
    %v1543 = vsel %vm1542, %v1540, %v1541
    %v1544 = vsel %vm1542, %v1539, %v1540
    %v1545 = vsel %vm1542, %v1538, %v1539
    %v1546 = vsel %vm1542, %v1537, %v1538
    %v1547 = vsel %vm1542, %v1536, %v1537
    %v1548 = vsel %vm1542, %v1535, %v1536
    %v1549 = vsel %vm1542, %v1534, %v1535
    %v1550 = vsel %vm1542, %v1533, %v1534
    %v1551 = vsel %vm1542, %v1532, %v1533
    %v1552 = vsel %vm1542, %v1531, %v1532
    %v1553 = vsel %vm1542, %v1530, %v1531
    %v1554 = vsel %vm1542, %v1529, %v1530
    %v1555 = vsel %vm1542, %v1528, %v1529
    %v1556 = vsel %vm1542, %v1527, %v1528
    %v1557 = vsel %vm1542, %v1526, %v1527
    %v1558 = vsel %vm1542, %v1541, %v1526
    %v1559 = vsel %vm490, 1, 0
    %v1560 = vsel %vm491, 1, 0
    %v1561 = vsel %vm492, 1, 0
    %v1562 = vsel %vm493, 1, 0
    %v1563 = vsel %vm494, 1, 0
    %v1564 = vsel %vm495, 1, 0
    %v1565 = vsel %vm496, 1, 0
    %v1566 = vsel %vm497, 1, 0
    %v1567 = vsel %vm498, 1, 0
    %v1568 = vsel %vm499, 1, 0
    %v1569 = vsel %vm500, 1, 0
    %v1570 = vsel %vm501, 1, 0
    %v1571 = vsel %vm502, 1, 0
    %v1572 = vsel %vm503, 1, 0
    %v1573 = vsel %vm504, 1, 0
    %v1574 = vsel %vm505, 1, 0
    %vm1575 = vcmp.eq.s32.totalorder %v1559, 1
    %vm1576 = vcmp.eq.s32.totalorder %v1560, 1
    %vm1577 = vcmp.eq.s32.totalorder %v1561, 1
    %vm1578 = vcmp.eq.s32.totalorder %v1562, 1
    %vm1579 = vcmp.eq.s32.totalorder %v1563, 1
    %vm1580 = vcmp.eq.s32.totalorder %v1564, 1
    %vm1581 = vcmp.eq.s32.totalorder %v1565, 1
    %vm1582 = vcmp.eq.s32.totalorder %v1566, 1
    %vm1583 = vcmp.eq.s32.totalorder %v1567, 1
    %vm1584 = vcmp.eq.s32.totalorder %v1568, 1
    %vm1585 = vcmp.eq.s32.totalorder %v1569, 1
    %vm1586 = vcmp.eq.s32.totalorder %v1570, 1
    %vm1587 = vcmp.eq.s32.totalorder %v1571, 1
    %vm1588 = vcmp.eq.s32.totalorder %v1572, 1
    %vm1589 = vcmp.eq.s32.totalorder %v1573, 1
    %vm1590 = vcmp.eq.s32.totalorder %v1574, 1
    %v1591 = vsel %vm1575, %v1557, 0.0
    %v1592 = vsel %vm1576, %v1556, 0.0
    %v1593 = vsel %vm1577, %v1555, 0.0
    %v1594 = vsel %vm1578, %v1554, 0.0
    %v1595 = vsel %vm1579, %v1553, 0.0
    %v1596 = vsel %vm1580, %v1552, 0.0
    %v1597 = vsel %vm1581, %v1551, 0.0
    %v1598 = vsel %vm1582, %v1550, 0.0
    %v1599 = vsel %vm1583, %v1549, 0.0
    %v1600 = vsel %vm1584, %v1548, 0.0
    %v1601 = vsel %vm1585, %v1547, 0.0
    %v1602 = vsel %vm1586, %v1546, 0.0
    %v1603 = vsel %vm1587, %v1545, 0.0
    %v1604 = vsel %vm1588, %v1544, 0.0
    %v1605 = vsel %vm1589, %v1543, 0.0
    %v1606 = vsel %vm1590, %v1558, 0.0
    %v1607 = vpack.c.bf16 %v1592, %v1591
    %v1608 = vpack.c.bf16 %v1594, %v1593
    %v1609 = vpack.c.bf16 %v1596, %v1595
    %v1610 = vpack.c.bf16 %v1598, %v1597
    %v1611 = vpack.c.bf16 %v1600, %v1599
    %v1612 = vpack.c.bf16 %v1602, %v1601
    %v1613 = vpack.c.bf16 %v1604, %v1603
    %v1614 = vpack.c.bf16 %v1606, %v1605
    %s1615 = scalar_lea.vmem [#allocation3], 256
    %v1616 = vld [vmem:[%s1615] sm:$0xf]
    %v1617 = vld [vmem:[%s1615 + $0x4] sm:$0xf]
    %v1618 = vld [vmem:[%s1615 + $0x8] sm:$0xf]
    %v1619 = vld [vmem:[%s1615 + $0xc] sm:$0xf]
    %v1620 = vld [vmem:[%s1615 + $0x10] sm:$0xf]
    %v1621 = vld [vmem:[%s1615 + $0x14] sm:$0xf]
    %v1622 = vld [vmem:[%s1615 + $0x18] sm:$0xf]
    %v1623 = vld [vmem:[%s1615 + $0x1c] sm:$0xf]
    %v1624 = vld [vmem:[%s1615 + $0x20] sm:$0xf]
    %v1625 = vld [vmem:[%s1615 + $0x24] sm:$0xf]
    %v1626 = vld [vmem:[%s1615 + $0x28] sm:$0xf]
    %v1627 = vld [vmem:[%s1615 + $0x2c] sm:$0xf]
    %v1628 = vld [vmem:[%s1615 + $0x30] sm:$0xf]
    %v1629 = vld [vmem:[%s1615 + $0x34] sm:$0xf]
    %v1630 = vld [vmem:[%s1615 + $0x38] sm:$0xf]
    %v1631 = vld [vmem:[%s1615 + $0x3c] sm:$0xf]
    %v1648 = vunpack.c.l.b16 %v1616
    %v1649 = vunpack.c.l.b16 %v1617
    %v1650 = vunpack.c.l.b16 %v1618
    %v1651 = vunpack.c.l.b16 %v1619
    %v1652 = vunpack.c.l.b16 %v1620
    %v1653 = vunpack.c.l.b16 %v1621
    %v1654 = vunpack.c.l.b16 %v1622
    %v1655 = vunpack.c.l.b16 %v1623
    %v1656 = vunpack.c.l.b16 %v1624
    %v1657 = vunpack.c.l.b16 %v1625
    %v1658 = vunpack.c.l.b16 %v1626
    %v1659 = vunpack.c.l.b16 %v1627
    %v1660 = vunpack.c.l.b16 %v1628
    %v1661 = vunpack.c.l.b16 %v1629
    %v1662 = vunpack.c.l.b16 %v1630
    %v1663 = vunpack.c.l.b16 %v1631
    %v1664 = vpack.c.b16 %v1649, %v1648
    %v1665 = vpack.c.b16 %v1651, %v1650
    %v1666 = vpack.c.b16 %v1653, %v1652
    %v1667 = vpack.c.b16 %v1655, %v1654
    %v1668 = vpack.c.b16 %v1657, %v1656
    %v1669 = vpack.c.b16 %v1659, %v1658
    %v1670 = vpack.c.b16 %v1661, %v1660
    %v1671 = vpack.c.b16 %v1663, %v1662
    %1680 = vmatpush.bf16.msra.mxu0 %v1671
    %1681 = vmatpush.bf16.msra.mxu0 %v1670
    %1682 = vmatpush.bf16.msra.mxu0 %v1669
    %1683 = vmatpush.bf16.msra.mxu0 %v1668
    %1684 = vmatpush.bf16.msra.mxu0 %v1667
    %1685 = vmatpush.bf16.msra.mxu0 %v1666
    %1686 = vmatpush.bf16.msra.mxu0 %v1665
    %1687 = vmatpush.bf16.msra.mxu0 %v1664
    %1688 = vmatmul.bf16.gmra.mxu0 %v1607
    %v1689 = vpop.f32.mrf.mxu0
    %v1690 = vadd.f32 0.0, %v1689
    %v1691 = vpop.f32.mrf.mxu0
    %v1692 = vadd.f32 0.0, %v1691
    %1693 = vmatmul.bf16.gmra.mxu0 %v1608
    %v1694 = vpop.f32.mrf.mxu0
    %v1695 = vadd.f32 0.0, %v1694
    %v1696 = vpop.f32.mrf.mxu0
    %v1697 = vadd.f32 0.0, %v1696
    %1698 = vmatmul.bf16.gmra.mxu0 %v1609
    %v1699 = vpop.f32.mrf.mxu0
    %v1700 = vadd.f32 0.0, %v1699
    %v1701 = vpop.f32.mrf.mxu0
    %v1702 = vadd.f32 0.0, %v1701
    %1703 = vmatmul.bf16.gmra.mxu0 %v1610
    %v1704 = vpop.f32.mrf.mxu0
    %v1705 = vadd.f32 0.0, %v1704
    %v1706 = vpop.f32.mrf.mxu0
    %v1707 = vadd.f32 0.0, %v1706
    %1708 = vmatmul.bf16.gmra.mxu0 %v1611
    %v1709 = vpop.f32.mrf.mxu0
    %v1710 = vadd.f32 0.0, %v1709
    %v1711 = vpop.f32.mrf.mxu0
    %v1712 = vadd.f32 0.0, %v1711
    %1713 = vmatmul.bf16.gmra.mxu0 %v1612
    %v1714 = vpop.f32.mrf.mxu0
    %v1715 = vadd.f32 0.0, %v1714
    %v1716 = vpop.f32.mrf.mxu0
    %v1717 = vadd.f32 0.0, %v1716
    %1718 = vmatmul.bf16.gmra.mxu0 %v1613
    %v1719 = vpop.f32.mrf.mxu0
    %v1720 = vadd.f32 0.0, %v1719
    %v1721 = vpop.f32.mrf.mxu0
    %v1722 = vadd.f32 0.0, %v1721
    %1723 = vmatmul.bf16.gmra.mxu0 %v1614
    %v1724 = vpop.f32.mrf.mxu0
    %v1725 = vadd.f32 0.0, %v1724
    %v1726 = vpop.f32.mrf.mxu0
    %v1727 = vadd.f32 0.0, %v1726
    %1728 = vdwg.mxu0
    %v1729 = vadd.f32 %v1510, %v1690
    %v1730 = vadd.f32 %v1511, %v1692
    %v1731 = vadd.f32 %v1512, %v1695
    %v1732 = vadd.f32 %v1513, %v1697
    %v1733 = vadd.f32 %v1514, %v1700
    %v1734 = vadd.f32 %v1515, %v1702
    %v1735 = vadd.f32 %v1516, %v1705
    %v1736 = vadd.f32 %v1517, %v1707
    %v1737 = vadd.f32 %v1518, %v1710
    %v1738 = vadd.f32 %v1519, %v1712
    %v1739 = vadd.f32 %v1520, %v1715
    %v1740 = vadd.f32 %v1521, %v1717
    %v1741 = vadd.f32 %v1522, %v1720
    %v1742 = vadd.f32 %v1523, %v1722
    %v1743 = vadd.f32 %v1524, %v1725
    %v1744 = vadd.f32 %v1525, %v1727
    %v1745 = vld [vmem:[%s3] sm:$0x1]
    %v1747 = vperm.slane %v1745, 0
    %v1749 = vadd.f32 %v1729, %v1747
    %v1750 = vadd.f32 %v1730, %v1747
    %v1751 = vadd.f32 %v1731, %v1747
    %v1752 = vadd.f32 %v1732, %v1747
    %v1753 = vadd.f32 %v1733, %v1747
    %v1754 = vadd.f32 %v1734, %v1747
    %v1755 = vadd.f32 %v1735, %v1747
    %v1756 = vadd.f32 %v1736, %v1747
    %v1757 = vadd.f32 %v1737, %v1747
    %v1758 = vadd.f32 %v1738, %v1747
    %v1759 = vadd.f32 %v1739, %v1747
    %v1760 = vadd.f32 %v1740, %v1747
    %v1761 = vadd.f32 %v1741, %v1747
    %v1762 = vadd.f32 %v1742, %v1747
    %v1763 = vadd.f32 %v1743, %v1747
    %v1764 = vadd.f32 %v1744, %v1747
    %v1765 = vmax.f32 %v1749, 0.0
    %v1766 = vmax.f32 %v1750, 0.0
    %v1767 = vmax.f32 %v1751, 0.0
    %v1768 = vmax.f32 %v1752, 0.0
    %v1769 = vmax.f32 %v1753, 0.0
    %v1770 = vmax.f32 %v1754, 0.0
    %v1771 = vmax.f32 %v1755, 0.0
    %v1772 = vmax.f32 %v1756, 0.0
    %v1773 = vmax.f32 %v1757, 0.0
    %v1774 = vmax.f32 %v1758, 0.0
    %v1775 = vmax.f32 %v1759, 0.0
    %v1776 = vmax.f32 %v1760, 0.0
    %v1777 = vmax.f32 %v1761, 0.0
    %v1778 = vmax.f32 %v1762, 0.0
    %v1779 = vmax.f32 %v1763, 0.0
    %v1780 = vmax.f32 %v1764, 0.0
    %v1781 = vadd.f32 %v1765, %v1766
    %v1782 = vadd.f32 %v1781, %v1767
    %v1783 = vadd.f32 %v1782, %v1768
    %v1784 = vadd.f32 %v1783, %v1769
    %v1785 = vadd.f32 %v1784, %v1770
    %v1786 = vadd.f32 %v1785, %v1771
    %v1787 = vadd.f32 %v1786, %v1772
    %v1788 = vadd.f32 %v1787, %v1773
    %v1789 = vadd.f32 %v1788, %v1774
    %v1790 = vadd.f32 %v1789, %v1775
    %v1791 = vadd.f32 %v1790, %v1776
    %v1792 = vadd.f32 %v1791, %v1777
    %v1793 = vadd.f32 %v1792, %v1778
    %v1794 = vadd.f32 %v1793, %v1779
    %v1795 = vadd.f32 %v1794, %v1780
    %v1796 = vrot.slane %v1795, 4
    %v1797 = vadd.f32 %v1795, %v1796
    %v1798 = vrot.slane %v1797, 2
    %v1799 = vadd.f32 %v1797, %v1798
    %v1800 = vrot.slane %v1799, 1
    %v1801 = vadd.f32 %v1799, %v1800
    %v1802 = vmul.f32 %v1801, %v668
    %v1803 = vmul.f32 %v1765, %v1765
    %v1804 = vmul.f32 %v1766, %v1766
    %v1805 = vmul.f32 %v1767, %v1767
    %v1806 = vmul.f32 %v1768, %v1768
    %v1807 = vmul.f32 %v1769, %v1769
    %v1808 = vmul.f32 %v1770, %v1770
    %v1809 = vmul.f32 %v1771, %v1771
    %v1810 = vmul.f32 %v1772, %v1772
    %v1811 = vmul.f32 %v1773, %v1773
    %v1812 = vmul.f32 %v1774, %v1774
    %v1813 = vmul.f32 %v1775, %v1775
    %v1814 = vmul.f32 %v1776, %v1776
    %v1815 = vmul.f32 %v1777, %v1777
    %v1816 = vmul.f32 %v1778, %v1778
    %v1817 = vmul.f32 %v1779, %v1779
    %v1818 = vmul.f32 %v1780, %v1780
    %v1819 = vadd.f32 %v1803, %v1804
    %v1820 = vadd.f32 %v1819, %v1805
    %v1821 = vadd.f32 %v1820, %v1806
    %v1822 = vadd.f32 %v1821, %v1807
    %v1823 = vadd.f32 %v1822, %v1808
    %v1824 = vadd.f32 %v1823, %v1809
    %v1825 = vadd.f32 %v1824, %v1810
    %v1826 = vadd.f32 %v1825, %v1811
    %v1827 = vadd.f32 %v1826, %v1812
    %v1828 = vadd.f32 %v1827, %v1813
    %v1829 = vadd.f32 %v1828, %v1814
    %v1830 = vadd.f32 %v1829, %v1815
    %v1831 = vadd.f32 %v1830, %v1816
    %v1832 = vadd.f32 %v1831, %v1817
    %v1833 = vadd.f32 %v1832, %v1818
    %v1834 = vrot.slane %v1833, 4
    %v1835 = vadd.f32 %v1833, %v1834
    %v1836 = vrot.slane %v1835, 2
    %v1837 = vadd.f32 %v1835, %v1836
    %v1838 = vrot.slane %v1837, 1
    %v1839 = vadd.f32 %v1837, %v1838
    %v1840 = vmul.f32 %v1839, %v668
    %v1841 = vmul.f32 %v1802, %v1802
    %v1842 = vsub.f32 %v1840, %v1841
    %s1843 = scalar_lea.vmem %s4, 1
    %v1844 = vld [vmem:[%s1843] sm:$0x1]
    %v1845 = vadd.f32 %v1842, 1e-05
    %v1846 = vrsqrt.pop %v1845
    %v1847 = vmul.f32 %v1846, %v1845
    %v1848 = vmul.f32 %v1847, %v1846
    %v1849 = vmul.f32 0.5, %v1848
    %v1850 = vsub.f32 1.5, %v1849
    %v1851 = vmul.f32 %v1846, %v1850
    %vm1852 = vweird.f32 %v1845
    %vm1853 = vweird.f32 %v1846
    %vm1854 = vmor %vm1852, %vm1853
    %v1855 = vsel %vm1854, %v1846, %v1851
    %v1856 = vmul.f32 %v1844, %v1855
    %s1857 = scalar_lea.vmem %s5, 1
    %v1858 = vld [vmem:[%s1857] sm:$0x1]
    %v1859 = vmul.f32 %v1802, %v1856
    %v1860 = vsub.f32 %v1858, %v1859
    %v1862 = vperm.slane %v1856, 0
    %v1864 = vmul.f32 %v1765, %v1862
    %v1865 = vmul.f32 %v1766, %v1862
    %v1866 = vmul.f32 %v1767, %v1862
    %v1867 = vmul.f32 %v1768, %v1862
    %v1868 = vmul.f32 %v1769, %v1862
    %v1869 = vmul.f32 %v1770, %v1862
    %v1870 = vmul.f32 %v1771, %v1862
    %v1871 = vmul.f32 %v1772, %v1862
    %v1872 = vmul.f32 %v1773, %v1862
    %v1873 = vmul.f32 %v1774, %v1862
    %v1874 = vmul.f32 %v1775, %v1862
    %v1875 = vmul.f32 %v1776, %v1862
    %v1876 = vmul.f32 %v1777, %v1862
    %v1877 = vmul.f32 %v1778, %v1862
    %v1878 = vmul.f32 %v1779, %v1862
    %v1879 = vmul.f32 %v1780, %v1862
    %v1881 = vperm.slane %v1860, 0
    %v1883 = vadd.f32 %v1864, %v1881
    %v1884 = vadd.f32 %v1865, %v1881
    %v1885 = vadd.f32 %v1866, %v1881
    %v1886 = vadd.f32 %v1867, %v1881
    %v1887 = vadd.f32 %v1868, %v1881
    %v1888 = vadd.f32 %v1869, %v1881
    %v1889 = vadd.f32 %v1870, %v1881
    %v1890 = vadd.f32 %v1871, %v1881
    %v1891 = vadd.f32 %v1872, %v1881
    %v1892 = vadd.f32 %v1873, %v1881
    %v1893 = vadd.f32 %v1874, %v1881
    %v1894 = vadd.f32 %v1875, %v1881
    %v1895 = vadd.f32 %v1876, %v1881
    %v1896 = vadd.f32 %v1877, %v1881
    %v1897 = vadd.f32 %v1878, %v1881
    %v1898 = vadd.f32 %v1879, %v1881
    %v1899 = vpack.c.bf16 %v1884, %v1883
    %v1900 = vpack.c.bf16 %v1886, %v1885
    %v1901 = vpack.c.bf16 %v1888, %v1887
    %v1902 = vpack.c.bf16 %v1890, %v1889
    %v1903 = vpack.c.bf16 %v1892, %v1891
    %v1904 = vpack.c.bf16 %v1894, %v1893
    %v1905 = vpack.c.bf16 %v1896, %v1895
    %v1906 = vpack.c.bf16 %v1898, %v1897
    %s1907 = scalar_lea.vmem [#allocation3], 448
    %v1908 = vld [vmem:[%s1907] sm:$0xf]
    %v1909 = vld [vmem:[%s1907 + $0x4] sm:$0xf]
    %v1910 = vld [vmem:[%s1907 + $0x8] sm:$0xf]
    %v1911 = vld [vmem:[%s1907 + $0xc] sm:$0xf]
    %v1912 = vld [vmem:[%s1907 + $0x10] sm:$0xf]
    %v1913 = vld [vmem:[%s1907 + $0x14] sm:$0xf]
    %v1914 = vld [vmem:[%s1907 + $0x18] sm:$0xf]
    %v1915 = vld [vmem:[%s1907 + $0x1c] sm:$0xf]
    %v1916 = vld [vmem:[%s1907 + $0x20] sm:$0xf]
    %v1917 = vld [vmem:[%s1907 + $0x24] sm:$0xf]
    %v1918 = vld [vmem:[%s1907 + $0x28] sm:$0xf]
    %v1919 = vld [vmem:[%s1907 + $0x2c] sm:$0xf]
    %v1920 = vld [vmem:[%s1907 + $0x30] sm:$0xf]
    %v1921 = vld [vmem:[%s1907 + $0x34] sm:$0xf]
    %v1922 = vld [vmem:[%s1907 + $0x38] sm:$0xf]
    %v1923 = vld [vmem:[%s1907 + $0x3c] sm:$0xf]
    %v1924 = vrot.slane %v1883, 6
    %v1925 = vrot.slane %v1884, 6
    %v1926 = vrot.slane %v1885, 6
    %v1927 = vrot.slane %v1886, 6
    %v1928 = vrot.slane %v1887, 6
    %v1929 = vrot.slane %v1888, 6
    %v1930 = vrot.slane %v1889, 6
    %v1931 = vrot.slane %v1890, 6
    %v1932 = vrot.slane %v1891, 6
    %v1933 = vrot.slane %v1892, 6
    %v1934 = vrot.slane %v1893, 6
    %v1935 = vrot.slane %v1894, 6
    %v1936 = vrot.slane %v1895, 6
    %v1937 = vrot.slane %v1896, 6
    %v1938 = vrot.slane %v1897, 6
    %v1939 = vrot.slane %v1898, 6
    %v1940 = vsel %vm805, %v1938, %v1939
    %v1941 = vsel %vm805, %v1937, %v1938
    %v1942 = vsel %vm805, %v1936, %v1937
    %v1943 = vsel %vm805, %v1935, %v1936
    %v1944 = vsel %vm805, %v1934, %v1935
    %v1945 = vsel %vm805, %v1933, %v1934
    %v1946 = vsel %vm805, %v1932, %v1933
    %v1947 = vsel %vm805, %v1931, %v1932
    %v1948 = vsel %vm805, %v1930, %v1931
    %v1949 = vsel %vm805, %v1929, %v1930
    %v1950 = vsel %vm805, %v1928, %v1929
    %v1951 = vsel %vm805, %v1927, %v1928
    %v1952 = vsel %vm805, %v1926, %v1927
    %v1953 = vsel %vm805, %v1925, %v1926
    %v1954 = vsel %vm805, %v1924, %v1925
    %v1955 = vsel %vm805, %v1939, %v1924
    %v1956 = vsel %vm838, %v1955, 0.0
    %v1957 = vsel %vm839, %v1954, 0.0
    %v1958 = vsel %vm840, %v1953, 0.0
    %v1959 = vsel %vm841, %v1952, 0.0
    %v1960 = vsel %vm842, %v1951, 0.0
    %v1961 = vsel %vm843, %v1950, 0.0
    %v1962 = vsel %vm844, %v1949, 0.0
    %v1963 = vsel %vm845, %v1948, 0.0
    %v1964 = vsel %vm846, %v1947, 0.0
    %v1965 = vsel %vm847, %v1946, 0.0
    %v1966 = vsel %vm848, %v1945, 0.0
    %v1967 = vsel %vm849, %v1944, 0.0
    %v1968 = vsel %vm850, %v1943, 0.0
    %v1969 = vsel %vm851, %v1942, 0.0
    %v1970 = vsel %vm852, %v1941, 0.0
    %v1971 = vsel %vm853, %v1940, 0.0
    %v1972 = vpack.c.bf16 %v1957, %v1956
    %v1973 = vpack.c.bf16 %v1959, %v1958
    %v1974 = vpack.c.bf16 %v1961, %v1960
    %v1975 = vpack.c.bf16 %v1963, %v1962
    %v1976 = vpack.c.bf16 %v1965, %v1964
    %v1977 = vpack.c.bf16 %v1967, %v1966
    %v1978 = vpack.c.bf16 %v1969, %v1968
    %v1979 = vpack.c.bf16 %v1971, %v1970
    %s1980 = scalar_lea.vmem [#allocation3], 320
    %v1981 = vld [vmem:[%s1980] sm:$0xf]
    %v1982 = vld [vmem:[%s1980 + $0x4] sm:$0xf]
    %v1983 = vld [vmem:[%s1980 + $0x8] sm:$0xf]
    %v1984 = vld [vmem:[%s1980 + $0xc] sm:$0xf]
    %v1985 = vld [vmem:[%s1980 + $0x10] sm:$0xf]
    %v1986 = vld [vmem:[%s1980 + $0x14] sm:$0xf]
    %v1987 = vld [vmem:[%s1980 + $0x18] sm:$0xf]
    %v1988 = vld [vmem:[%s1980 + $0x1c] sm:$0xf]
    %v1989 = vld [vmem:[%s1980 + $0x20] sm:$0xf]
    %v1990 = vld [vmem:[%s1980 + $0x24] sm:$0xf]
    %v1991 = vld [vmem:[%s1980 + $0x28] sm:$0xf]
    %v1992 = vld [vmem:[%s1980 + $0x2c] sm:$0xf]
    %v1993 = vld [vmem:[%s1980 + $0x30] sm:$0xf]
    %v1994 = vld [vmem:[%s1980 + $0x34] sm:$0xf]
    %v1995 = vld [vmem:[%s1980 + $0x38] sm:$0xf]
    %v1996 = vld [vmem:[%s1980 + $0x3c] sm:$0xf]
    %v2013 = vunpack.c.l.b16 %v1981
    %v2014 = vunpack.c.l.b16 %v1982
    %v2015 = vunpack.c.l.b16 %v1983
    %v2016 = vunpack.c.l.b16 %v1984
    %v2017 = vunpack.c.l.b16 %v1985
    %v2018 = vunpack.c.l.b16 %v1986
    %v2019 = vunpack.c.l.b16 %v1987
    %v2020 = vunpack.c.l.b16 %v1988
    %v2021 = vunpack.c.l.b16 %v1989
    %v2022 = vunpack.c.l.b16 %v1990
    %v2023 = vunpack.c.l.b16 %v1991
    %v2024 = vunpack.c.l.b16 %v1992
    %v2025 = vunpack.c.l.b16 %v1993
    %v2026 = vunpack.c.l.b16 %v1994
    %v2027 = vunpack.c.l.b16 %v1995
    %v2028 = vunpack.c.l.b16 %v1996
    %v2029 = vpack.c.b16 %v2014, %v2013
    %v2030 = vpack.c.b16 %v2016, %v2015
    %v2031 = vpack.c.b16 %v2018, %v2017
    %v2032 = vpack.c.b16 %v2020, %v2019
    %v2033 = vpack.c.b16 %v2022, %v2021
    %v2034 = vpack.c.b16 %v2024, %v2023
    %v2035 = vpack.c.b16 %v2026, %v2025
    %v2036 = vpack.c.b16 %v2028, %v2027
    %2045 = vmatpush.bf16.msra.mxu0 %v2036
    %2046 = vmatpush.bf16.msra.mxu0 %v2035
    %2047 = vmatpush.bf16.msra.mxu0 %v2034
    %2048 = vmatpush.bf16.msra.mxu0 %v2033
    %2049 = vmatpush.bf16.msra.mxu0 %v2032
    %2050 = vmatpush.bf16.msra.mxu0 %v2031
    %2051 = vmatpush.bf16.msra.mxu0 %v2030
    %2052 = vmatpush.bf16.msra.mxu0 %v2029
    %2053 = vmatmul.bf16.gmra.mxu0 %v1972
    %v2054 = vpop.f32.mrf.mxu0
    %v2055 = vadd.f32 0.0, %v2054
    %v2056 = vpop.f32.mrf.mxu0
    %v2057 = vadd.f32 0.0, %v2056
    %2058 = vmatmul.bf16.gmra.mxu0 %v1973
    %v2059 = vpop.f32.mrf.mxu0
    %v2060 = vadd.f32 0.0, %v2059
    %v2061 = vpop.f32.mrf.mxu0
    %v2062 = vadd.f32 0.0, %v2061
    %2063 = vmatmul.bf16.gmra.mxu0 %v1974
    %v2064 = vpop.f32.mrf.mxu0
    %v2065 = vadd.f32 0.0, %v2064
    %v2066 = vpop.f32.mrf.mxu0
    %v2067 = vadd.f32 0.0, %v2066
    %2068 = vmatmul.bf16.gmra.mxu0 %v1975
    %v2069 = vpop.f32.mrf.mxu0
    %v2070 = vadd.f32 0.0, %v2069
    %v2071 = vpop.f32.mrf.mxu0
    %v2072 = vadd.f32 0.0, %v2071
    %2073 = vmatmul.bf16.gmra.mxu0 %v1976
    %v2074 = vpop.f32.mrf.mxu0
    %v2075 = vadd.f32 0.0, %v2074
    %v2076 = vpop.f32.mrf.mxu0
    %v2077 = vadd.f32 0.0, %v2076
    %2078 = vmatmul.bf16.gmra.mxu0 %v1977
    %v2079 = vpop.f32.mrf.mxu0
    %v2080 = vadd.f32 0.0, %v2079
    %v2081 = vpop.f32.mrf.mxu0
    %v2082 = vadd.f32 0.0, %v2081
    %2083 = vmatmul.bf16.gmra.mxu0 %v1978
    %v2084 = vpop.f32.mrf.mxu0
    %v2085 = vadd.f32 0.0, %v2084
    %v2086 = vpop.f32.mrf.mxu0
    %v2087 = vadd.f32 0.0, %v2086
    %2088 = vmatmul.bf16.gmra.mxu0 %v1979
    %v2089 = vpop.f32.mrf.mxu0
    %v2090 = vadd.f32 0.0, %v2089
    %v2091 = vpop.f32.mrf.mxu0
    %v2092 = vadd.f32 0.0, %v2091
    %2093 = vdwg.mxu0
    %v2110 = vunpack.c.l.b16 %v1908
    %v2111 = vunpack.c.l.b16 %v1909
    %v2112 = vunpack.c.l.b16 %v1910
    %v2113 = vunpack.c.l.b16 %v1911
    %v2114 = vunpack.c.l.b16 %v1912
    %v2115 = vunpack.c.l.b16 %v1913
    %v2116 = vunpack.c.l.b16 %v1914
    %v2117 = vunpack.c.l.b16 %v1915
    %v2118 = vunpack.c.l.b16 %v1916
    %v2119 = vunpack.c.l.b16 %v1917
    %v2120 = vunpack.c.l.b16 %v1918
    %v2121 = vunpack.c.l.b16 %v1919
    %v2122 = vunpack.c.l.b16 %v1920
    %v2123 = vunpack.c.l.b16 %v1921
    %v2124 = vunpack.c.l.b16 %v1922
    %v2125 = vunpack.c.l.b16 %v1923
    %v2126 = vpack.c.b16 %v2111, %v2110
    %v2127 = vpack.c.b16 %v2113, %v2112
    %v2128 = vpack.c.b16 %v2115, %v2114
    %v2129 = vpack.c.b16 %v2117, %v2116
    %v2130 = vpack.c.b16 %v2119, %v2118
    %v2131 = vpack.c.b16 %v2121, %v2120
    %v2132 = vpack.c.b16 %v2123, %v2122
    %v2133 = vpack.c.b16 %v2125, %v2124
    %2142 = vmatpush.bf16.msra.mxu0 %v2133
    %2143 = vmatpush.bf16.msra.mxu0 %v2132
    %2144 = vmatpush.bf16.msra.mxu0 %v2131
    %2145 = vmatpush.bf16.msra.mxu0 %v2130
    %2146 = vmatpush.bf16.msra.mxu0 %v2129
    %2147 = vmatpush.bf16.msra.mxu0 %v2128
    %2148 = vmatpush.bf16.msra.mxu0 %v2127
    %2149 = vmatpush.bf16.msra.mxu0 %v2126
    %2150 = vmatmul.bf16.gmra.mxu0 %v1899
    %v2151 = vpop.f32.mrf.mxu0
    %v2152 = vadd.f32 %v2055, %v2151
    %v2153 = vpop.f32.mrf.mxu0
    %v2154 = vadd.f32 %v2057, %v2153
    %2155 = vmatmul.bf16.gmra.mxu0 %v1900
    %v2156 = vpop.f32.mrf.mxu0
    %v2157 = vadd.f32 %v2060, %v2156
    %v2158 = vpop.f32.mrf.mxu0
    %v2159 = vadd.f32 %v2062, %v2158
    %2160 = vmatmul.bf16.gmra.mxu0 %v1901
    %v2161 = vpop.f32.mrf.mxu0
    %v2162 = vadd.f32 %v2065, %v2161
    %v2163 = vpop.f32.mrf.mxu0
    %v2164 = vadd.f32 %v2067, %v2163
    %2165 = vmatmul.bf16.gmra.mxu0 %v1902
    %v2166 = vpop.f32.mrf.mxu0
    %v2167 = vadd.f32 %v2070, %v2166
    %v2168 = vpop.f32.mrf.mxu0
    %v2169 = vadd.f32 %v2072, %v2168
    %2170 = vmatmul.bf16.gmra.mxu0 %v1903
    %v2171 = vpop.f32.mrf.mxu0
    %v2172 = vadd.f32 %v2075, %v2171
    %v2173 = vpop.f32.mrf.mxu0
    %v2174 = vadd.f32 %v2077, %v2173
    %2175 = vmatmul.bf16.gmra.mxu0 %v1904
    %v2176 = vpop.f32.mrf.mxu0
    %v2177 = vadd.f32 %v2080, %v2176
    %v2178 = vpop.f32.mrf.mxu0
    %v2179 = vadd.f32 %v2082, %v2178
    %2180 = vmatmul.bf16.gmra.mxu0 %v1905
    %v2181 = vpop.f32.mrf.mxu0
    %v2182 = vadd.f32 %v2085, %v2181
    %v2183 = vpop.f32.mrf.mxu0
    %v2184 = vadd.f32 %v2087, %v2183
    %2185 = vmatmul.bf16.gmra.mxu0 %v1906
    %v2186 = vpop.f32.mrf.mxu0
    %v2187 = vadd.f32 %v2090, %v2186
    %v2188 = vpop.f32.mrf.mxu0
    %v2189 = vadd.f32 %v2092, %v2188
    %2190 = vdwg.mxu0
    %v2191 = vrot.slane %v1883, 7
    %v2192 = vrot.slane %v1884, 7
    %v2193 = vrot.slane %v1885, 7
    %v2194 = vrot.slane %v1886, 7
    %v2195 = vrot.slane %v1887, 7
    %v2196 = vrot.slane %v1888, 7
    %v2197 = vrot.slane %v1889, 7
    %v2198 = vrot.slane %v1890, 7
    %v2199 = vrot.slane %v1891, 7
    %v2200 = vrot.slane %v1892, 7
    %v2201 = vrot.slane %v1893, 7
    %v2202 = vrot.slane %v1894, 7
    %v2203 = vrot.slane %v1895, 7
    %v2204 = vrot.slane %v1896, 7
    %v2205 = vrot.slane %v1897, 7
    %v2206 = vrot.slane %v1898, 7
    %v2207 = vsel %vm1104, %v2205, %v2206
    %v2208 = vsel %vm1104, %v2204, %v2205
    %v2209 = vsel %vm1104, %v2203, %v2204
    %v2210 = vsel %vm1104, %v2202, %v2203
    %v2211 = vsel %vm1104, %v2201, %v2202
    %v2212 = vsel %vm1104, %v2200, %v2201
    %v2213 = vsel %vm1104, %v2199, %v2200
    %v2214 = vsel %vm1104, %v2198, %v2199
    %v2215 = vsel %vm1104, %v2197, %v2198
    %v2216 = vsel %vm1104, %v2196, %v2197
    %v2217 = vsel %vm1104, %v2195, %v2196
    %v2218 = vsel %vm1104, %v2194, %v2195
    %v2219 = vsel %vm1104, %v2193, %v2194
    %v2220 = vsel %vm1104, %v2192, %v2193
    %v2221 = vsel %vm1104, %v2191, %v2192
    %v2222 = vsel %vm1104, %v2206, %v2191
    %v2223 = vsel %vm1137, %v2222, 0.0
    %v2224 = vsel %vm1138, %v2221, 0.0
    %v2225 = vsel %vm1139, %v2220, 0.0
    %v2226 = vsel %vm1140, %v2219, 0.0
    %v2227 = vsel %vm1141, %v2218, 0.0
    %v2228 = vsel %vm1142, %v2217, 0.0
    %v2229 = vsel %vm1143, %v2216, 0.0
    %v2230 = vsel %vm1144, %v2215, 0.0
    %v2231 = vsel %vm1145, %v2214, 0.0
    %v2232 = vsel %vm1146, %v2213, 0.0
    %v2233 = vsel %vm1147, %v2212, 0.0
    %v2234 = vsel %vm1148, %v2211, 0.0
    %v2235 = vsel %vm1149, %v2210, 0.0
    %v2236 = vsel %vm1150, %v2209, 0.0
    %v2237 = vsel %vm1151, %v2208, 0.0
    %v2238 = vsel %vm1152, %v2207, 0.0
    %v2239 = vpack.c.bf16 %v2224, %v2223
    %v2240 = vpack.c.bf16 %v2226, %v2225
    %v2241 = vpack.c.bf16 %v2228, %v2227
    %v2242 = vpack.c.bf16 %v2230, %v2229
    %v2243 = vpack.c.bf16 %v2232, %v2231
    %v2244 = vpack.c.bf16 %v2234, %v2233
    %v2245 = vpack.c.bf16 %v2236, %v2235
    %v2246 = vpack.c.bf16 %v2238, %v2237
    %s2247 = scalar_lea.vmem [#allocation3], 384
    %v2248 = vld [vmem:[%s2247] sm:$0xf]
    %v2249 = vld [vmem:[%s2247 + $0x4] sm:$0xf]
    %v2250 = vld [vmem:[%s2247 + $0x8] sm:$0xf]
    %v2251 = vld [vmem:[%s2247 + $0xc] sm:$0xf]
    %v2252 = vld [vmem:[%s2247 + $0x10] sm:$0xf]
    %v2253 = vld [vmem:[%s2247 + $0x14] sm:$0xf]
    %v2254 = vld [vmem:[%s2247 + $0x18] sm:$0xf]
    %v2255 = vld [vmem:[%s2247 + $0x1c] sm:$0xf]
    %v2256 = vld [vmem:[%s2247 + $0x20] sm:$0xf]
    %v2257 = vld [vmem:[%s2247 + $0x24] sm:$0xf]
    %v2258 = vld [vmem:[%s2247 + $0x28] sm:$0xf]
    %v2259 = vld [vmem:[%s2247 + $0x2c] sm:$0xf]
    %v2260 = vld [vmem:[%s2247 + $0x30] sm:$0xf]
    %v2261 = vld [vmem:[%s2247 + $0x34] sm:$0xf]
    %v2262 = vld [vmem:[%s2247 + $0x38] sm:$0xf]
    %v2263 = vld [vmem:[%s2247 + $0x3c] sm:$0xf]
    %v2280 = vunpack.c.l.b16 %v2248
    %v2281 = vunpack.c.l.b16 %v2249
    %v2282 = vunpack.c.l.b16 %v2250
    %v2283 = vunpack.c.l.b16 %v2251
    %v2284 = vunpack.c.l.b16 %v2252
    %v2285 = vunpack.c.l.b16 %v2253
    %v2286 = vunpack.c.l.b16 %v2254
    %v2287 = vunpack.c.l.b16 %v2255
    %v2288 = vunpack.c.l.b16 %v2256
    %v2289 = vunpack.c.l.b16 %v2257
    %v2290 = vunpack.c.l.b16 %v2258
    %v2291 = vunpack.c.l.b16 %v2259
    %v2292 = vunpack.c.l.b16 %v2260
    %v2293 = vunpack.c.l.b16 %v2261
    %v2294 = vunpack.c.l.b16 %v2262
    %v2295 = vunpack.c.l.b16 %v2263
    %v2296 = vpack.c.b16 %v2281, %v2280
    %v2297 = vpack.c.b16 %v2283, %v2282
    %v2298 = vpack.c.b16 %v2285, %v2284
    %v2299 = vpack.c.b16 %v2287, %v2286
    %v2300 = vpack.c.b16 %v2289, %v2288
    %v2301 = vpack.c.b16 %v2291, %v2290
    %v2302 = vpack.c.b16 %v2293, %v2292
    %v2303 = vpack.c.b16 %v2295, %v2294
    %2312 = vmatpush.bf16.msra.mxu0 %v2303
    %2313 = vmatpush.bf16.msra.mxu0 %v2302
    %2314 = vmatpush.bf16.msra.mxu0 %v2301
    %2315 = vmatpush.bf16.msra.mxu0 %v2300
    %2316 = vmatpush.bf16.msra.mxu0 %v2299
    %2317 = vmatpush.bf16.msra.mxu0 %v2298
    %2318 = vmatpush.bf16.msra.mxu0 %v2297
    %2319 = vmatpush.bf16.msra.mxu0 %v2296
    %2320 = vmatmul.bf16.gmra.mxu0 %v2239
    %v2321 = vpop.f32.mrf.mxu0
    %v2322 = vadd.f32 0.0, %v2321
    %v2323 = vpop.f32.mrf.mxu0
    %v2324 = vadd.f32 0.0, %v2323
    %2325 = vmatmul.bf16.gmra.mxu0 %v2240
    %v2326 = vpop.f32.mrf.mxu0
    %v2327 = vadd.f32 0.0, %v2326
    %v2328 = vpop.f32.mrf.mxu0
    %v2329 = vadd.f32 0.0, %v2328
    %2330 = vmatmul.bf16.gmra.mxu0 %v2241
    %v2331 = vpop.f32.mrf.mxu0
    %v2332 = vadd.f32 0.0, %v2331
    %v2333 = vpop.f32.mrf.mxu0
    %v2334 = vadd.f32 0.0, %v2333
    %2335 = vmatmul.bf16.gmra.mxu0 %v2242
    %v2336 = vpop.f32.mrf.mxu0
    %v2337 = vadd.f32 0.0, %v2336
    %v2338 = vpop.f32.mrf.mxu0
    %v2339 = vadd.f32 0.0, %v2338
    %2340 = vmatmul.bf16.gmra.mxu0 %v2243
    %v2341 = vpop.f32.mrf.mxu0
    %v2342 = vadd.f32 0.0, %v2341
    %v2343 = vpop.f32.mrf.mxu0
    %v2344 = vadd.f32 0.0, %v2343
    %2345 = vmatmul.bf16.gmra.mxu0 %v2244
    %v2346 = vpop.f32.mrf.mxu0
    %v2347 = vadd.f32 0.0, %v2346
    %v2348 = vpop.f32.mrf.mxu0
    %v2349 = vadd.f32 0.0, %v2348
    %2350 = vmatmul.bf16.gmra.mxu0 %v2245
    %v2351 = vpop.f32.mrf.mxu0
    %v2352 = vadd.f32 0.0, %v2351
    %v2353 = vpop.f32.mrf.mxu0
    %v2354 = vadd.f32 0.0, %v2353
    %2355 = vmatmul.bf16.gmra.mxu0 %v2246
    %v2356 = vpop.f32.mrf.mxu0
    %v2357 = vadd.f32 0.0, %v2356
    %v2358 = vpop.f32.mrf.mxu0
    %v2359 = vadd.f32 0.0, %v2358
    %2360 = vdwg.mxu0
    %v2361 = vadd.f32 %v2152, %v2322
    %v2362 = vadd.f32 %v2154, %v2324
    %v2363 = vadd.f32 %v2157, %v2327
    %v2364 = vadd.f32 %v2159, %v2329
    %v2365 = vadd.f32 %v2162, %v2332
    %v2366 = vadd.f32 %v2164, %v2334
    %v2367 = vadd.f32 %v2167, %v2337
    %v2368 = vadd.f32 %v2169, %v2339
    %v2369 = vadd.f32 %v2172, %v2342
    %v2370 = vadd.f32 %v2174, %v2344
    %v2371 = vadd.f32 %v2177, %v2347
    %v2372 = vadd.f32 %v2179, %v2349
    %v2373 = vadd.f32 %v2182, %v2352
    %v2374 = vadd.f32 %v2184, %v2354
    %v2375 = vadd.f32 %v2187, %v2357
    %v2376 = vadd.f32 %v2189, %v2359
    %v2377 = vrot.slane %v1883, 1
    %v2378 = vrot.slane %v1884, 1
    %v2379 = vrot.slane %v1885, 1
    %v2380 = vrot.slane %v1886, 1
    %v2381 = vrot.slane %v1887, 1
    %v2382 = vrot.slane %v1888, 1
    %v2383 = vrot.slane %v1889, 1
    %v2384 = vrot.slane %v1890, 1
    %v2385 = vrot.slane %v1891, 1
    %v2386 = vrot.slane %v1892, 1
    %v2387 = vrot.slane %v1893, 1
    %v2388 = vrot.slane %v1894, 1
    %v2389 = vrot.slane %v1895, 1
    %v2390 = vrot.slane %v1896, 1
    %v2391 = vrot.slane %v1897, 1
    %v2392 = vrot.slane %v1898, 1
    %v2393 = vsel %vm1323, %v2391, %v2392
    %v2394 = vsel %vm1323, %v2390, %v2391
    %v2395 = vsel %vm1323, %v2389, %v2390
    %v2396 = vsel %vm1323, %v2388, %v2389
    %v2397 = vsel %vm1323, %v2387, %v2388
    %v2398 = vsel %vm1323, %v2386, %v2387
    %v2399 = vsel %vm1323, %v2385, %v2386
    %v2400 = vsel %vm1323, %v2384, %v2385
    %v2401 = vsel %vm1323, %v2383, %v2384
    %v2402 = vsel %vm1323, %v2382, %v2383
    %v2403 = vsel %vm1323, %v2381, %v2382
    %v2404 = vsel %vm1323, %v2380, %v2381
    %v2405 = vsel %vm1323, %v2379, %v2380
    %v2406 = vsel %vm1323, %v2378, %v2379
    %v2407 = vsel %vm1323, %v2377, %v2378
    %v2408 = vsel %vm1323, %v2392, %v2377
    %v2409 = vsel %vm1356, %v2407, 0.0
    %v2410 = vsel %vm1357, %v2406, 0.0
    %v2411 = vsel %vm1358, %v2405, 0.0
    %v2412 = vsel %vm1359, %v2404, 0.0
    %v2413 = vsel %vm1360, %v2403, 0.0
    %v2414 = vsel %vm1361, %v2402, 0.0
    %v2415 = vsel %vm1362, %v2401, 0.0
    %v2416 = vsel %vm1363, %v2400, 0.0
    %v2417 = vsel %vm1364, %v2399, 0.0
    %v2418 = vsel %vm1365, %v2398, 0.0
    %v2419 = vsel %vm1366, %v2397, 0.0
    %v2420 = vsel %vm1367, %v2396, 0.0
    %v2421 = vsel %vm1368, %v2395, 0.0
    %v2422 = vsel %vm1369, %v2394, 0.0
    %v2423 = vsel %vm1370, %v2393, 0.0
    %v2424 = vsel %vm1371, %v2408, 0.0
    %v2425 = vpack.c.bf16 %v2410, %v2409
    %v2426 = vpack.c.bf16 %v2412, %v2411
    %v2427 = vpack.c.bf16 %v2414, %v2413
    %v2428 = vpack.c.bf16 %v2416, %v2415
    %v2429 = vpack.c.bf16 %v2418, %v2417
    %v2430 = vpack.c.bf16 %v2420, %v2419
    %v2431 = vpack.c.bf16 %v2422, %v2421
    %v2432 = vpack.c.bf16 %v2424, %v2423
    %s2433 = scalar_lea.vmem [#allocation3], 512
    %v2434 = vld [vmem:[%s2433] sm:$0xf]
    %v2435 = vld [vmem:[%s2433 + $0x4] sm:$0xf]
    %v2436 = vld [vmem:[%s2433 + $0x8] sm:$0xf]
    %v2437 = vld [vmem:[%s2433 + $0xc] sm:$0xf]
    %v2438 = vld [vmem:[%s2433 + $0x10] sm:$0xf]
    %v2439 = vld [vmem:[%s2433 + $0x14] sm:$0xf]
    %v2440 = vld [vmem:[%s2433 + $0x18] sm:$0xf]
    %v2441 = vld [vmem:[%s2433 + $0x1c] sm:$0xf]
    %v2442 = vld [vmem:[%s2433 + $0x20] sm:$0xf]
    %v2443 = vld [vmem:[%s2433 + $0x24] sm:$0xf]
    %v2444 = vld [vmem:[%s2433 + $0x28] sm:$0xf]
    %v2445 = vld [vmem:[%s2433 + $0x2c] sm:$0xf]
    %v2446 = vld [vmem:[%s2433 + $0x30] sm:$0xf]
    %v2447 = vld [vmem:[%s2433 + $0x34] sm:$0xf]
    %v2448 = vld [vmem:[%s2433 + $0x38] sm:$0xf]
    %v2449 = vld [vmem:[%s2433 + $0x3c] sm:$0xf]
    %v2466 = vunpack.c.l.b16 %v2434
    %v2467 = vunpack.c.l.b16 %v2435
    %v2468 = vunpack.c.l.b16 %v2436
    %v2469 = vunpack.c.l.b16 %v2437
    %v2470 = vunpack.c.l.b16 %v2438
    %v2471 = vunpack.c.l.b16 %v2439
    %v2472 = vunpack.c.l.b16 %v2440
    %v2473 = vunpack.c.l.b16 %v2441
    %v2474 = vunpack.c.l.b16 %v2442
    %v2475 = vunpack.c.l.b16 %v2443
    %v2476 = vunpack.c.l.b16 %v2444
    %v2477 = vunpack.c.l.b16 %v2445
    %v2478 = vunpack.c.l.b16 %v2446
    %v2479 = vunpack.c.l.b16 %v2447
    %v2480 = vunpack.c.l.b16 %v2448
    %v2481 = vunpack.c.l.b16 %v2449
    %v2482 = vpack.c.b16 %v2467, %v2466
    %v2483 = vpack.c.b16 %v2469, %v2468
    %v2484 = vpack.c.b16 %v2471, %v2470
    %v2485 = vpack.c.b16 %v2473, %v2472
    %v2486 = vpack.c.b16 %v2475, %v2474
    %v2487 = vpack.c.b16 %v2477, %v2476
    %v2488 = vpack.c.b16 %v2479, %v2478
    %v2489 = vpack.c.b16 %v2481, %v2480
    %2498 = vmatpush.bf16.msra.mxu0 %v2489
    %2499 = vmatpush.bf16.msra.mxu0 %v2488
    %2500 = vmatpush.bf16.msra.mxu0 %v2487
    %2501 = vmatpush.bf16.msra.mxu0 %v2486
    %2502 = vmatpush.bf16.msra.mxu0 %v2485
    %2503 = vmatpush.bf16.msra.mxu0 %v2484
    %2504 = vmatpush.bf16.msra.mxu0 %v2483
    %2505 = vmatpush.bf16.msra.mxu0 %v2482
    %2506 = vmatmul.bf16.gmra.mxu0 %v2425
    %v2507 = vpop.f32.mrf.mxu0
    %v2508 = vadd.f32 0.0, %v2507
    %v2509 = vpop.f32.mrf.mxu0
    %v2510 = vadd.f32 0.0, %v2509
    %2511 = vmatmul.bf16.gmra.mxu0 %v2426
    %v2512 = vpop.f32.mrf.mxu0
    %v2513 = vadd.f32 0.0, %v2512
    %v2514 = vpop.f32.mrf.mxu0
    %v2515 = vadd.f32 0.0, %v2514
    %2516 = vmatmul.bf16.gmra.mxu0 %v2427
    %v2517 = vpop.f32.mrf.mxu0
    %v2518 = vadd.f32 0.0, %v2517
    %v2519 = vpop.f32.mrf.mxu0
    %v2520 = vadd.f32 0.0, %v2519
    %2521 = vmatmul.bf16.gmra.mxu0 %v2428
    %v2522 = vpop.f32.mrf.mxu0
    %v2523 = vadd.f32 0.0, %v2522
    %v2524 = vpop.f32.mrf.mxu0
    %v2525 = vadd.f32 0.0, %v2524
    %2526 = vmatmul.bf16.gmra.mxu0 %v2429
    %v2527 = vpop.f32.mrf.mxu0
    %v2528 = vadd.f32 0.0, %v2527
    %v2529 = vpop.f32.mrf.mxu0
    %v2530 = vadd.f32 0.0, %v2529
    %2531 = vmatmul.bf16.gmra.mxu0 %v2430
    %v2532 = vpop.f32.mrf.mxu0
    %v2533 = vadd.f32 0.0, %v2532
    %v2534 = vpop.f32.mrf.mxu0
    %v2535 = vadd.f32 0.0, %v2534
    %2536 = vmatmul.bf16.gmra.mxu0 %v2431
    %v2537 = vpop.f32.mrf.mxu0
    %v2538 = vadd.f32 0.0, %v2537
    %v2539 = vpop.f32.mrf.mxu0
    %v2540 = vadd.f32 0.0, %v2539
    %2541 = vmatmul.bf16.gmra.mxu0 %v2432
    %v2542 = vpop.f32.mrf.mxu0
    %v2543 = vadd.f32 0.0, %v2542
    %v2544 = vpop.f32.mrf.mxu0
    %v2545 = vadd.f32 0.0, %v2544
    %2546 = vdwg.mxu0
    %v2547 = vadd.f32 %v2361, %v2508
    %v2548 = vadd.f32 %v2362, %v2510
    %v2549 = vadd.f32 %v2363, %v2513
    %v2550 = vadd.f32 %v2364, %v2515
    %v2551 = vadd.f32 %v2365, %v2518
    %v2552 = vadd.f32 %v2366, %v2520
    %v2553 = vadd.f32 %v2367, %v2523
    %v2554 = vadd.f32 %v2368, %v2525
    %v2555 = vadd.f32 %v2369, %v2528
    %v2556 = vadd.f32 %v2370, %v2530
    %v2557 = vadd.f32 %v2371, %v2533
    %v2558 = vadd.f32 %v2372, %v2535
    %v2559 = vadd.f32 %v2373, %v2538
    %v2560 = vadd.f32 %v2374, %v2540
    %v2561 = vadd.f32 %v2375, %v2543
    %v2562 = vadd.f32 %v2376, %v2545
    %v2563 = vrot.slane %v1883, 2
    %v2564 = vrot.slane %v1884, 2
    %v2565 = vrot.slane %v1885, 2
    %v2566 = vrot.slane %v1886, 2
    %v2567 = vrot.slane %v1887, 2
    %v2568 = vrot.slane %v1888, 2
    %v2569 = vrot.slane %v1889, 2
    %v2570 = vrot.slane %v1890, 2
    %v2571 = vrot.slane %v1891, 2
    %v2572 = vrot.slane %v1892, 2
    %v2573 = vrot.slane %v1893, 2
    %v2574 = vrot.slane %v1894, 2
    %v2575 = vrot.slane %v1895, 2
    %v2576 = vrot.slane %v1896, 2
    %v2577 = vrot.slane %v1897, 2
    %v2578 = vrot.slane %v1898, 2
    %v2579 = vsel %vm1542, %v2577, %v2578
    %v2580 = vsel %vm1542, %v2576, %v2577
    %v2581 = vsel %vm1542, %v2575, %v2576
    %v2582 = vsel %vm1542, %v2574, %v2575
    %v2583 = vsel %vm1542, %v2573, %v2574
    %v2584 = vsel %vm1542, %v2572, %v2573
    %v2585 = vsel %vm1542, %v2571, %v2572
    %v2586 = vsel %vm1542, %v2570, %v2571
    %v2587 = vsel %vm1542, %v2569, %v2570
    %v2588 = vsel %vm1542, %v2568, %v2569
    %v2589 = vsel %vm1542, %v2567, %v2568
    %v2590 = vsel %vm1542, %v2566, %v2567
    %v2591 = vsel %vm1542, %v2565, %v2566
    %v2592 = vsel %vm1542, %v2564, %v2565
    %v2593 = vsel %vm1542, %v2563, %v2564
    %v2594 = vsel %vm1542, %v2578, %v2563
    %v2595 = vsel %vm1575, %v2593, 0.0
    %v2596 = vsel %vm1576, %v2592, 0.0
    %v2597 = vsel %vm1577, %v2591, 0.0
    %v2598 = vsel %vm1578, %v2590, 0.0
    %v2599 = vsel %vm1579, %v2589, 0.0
    %v2600 = vsel %vm1580, %v2588, 0.0
    %v2601 = vsel %vm1581, %v2587, 0.0
    %v2602 = vsel %vm1582, %v2586, 0.0
    %v2603 = vsel %vm1583, %v2585, 0.0
    %v2604 = vsel %vm1584, %v2584, 0.0
    %v2605 = vsel %vm1585, %v2583, 0.0
    %v2606 = vsel %vm1586, %v2582, 0.0
    %v2607 = vsel %vm1587, %v2581, 0.0
    %v2608 = vsel %vm1588, %v2580, 0.0
    %v2609 = vsel %vm1589, %v2579, 0.0
    %v2610 = vsel %vm1590, %v2594, 0.0
    %v2611 = vpack.c.bf16 %v2596, %v2595
    %v2612 = vpack.c.bf16 %v2598, %v2597
    %v2613 = vpack.c.bf16 %v2600, %v2599
    %v2614 = vpack.c.bf16 %v2602, %v2601
    %v2615 = vpack.c.bf16 %v2604, %v2603
    %v2616 = vpack.c.bf16 %v2606, %v2605
    %v2617 = vpack.c.bf16 %v2608, %v2607
    %v2618 = vpack.c.bf16 %v2610, %v2609
    %s2619 = scalar_lea.vmem [#allocation3], 576
    %v2620 = vld [vmem:[%s2619] sm:$0xf]
    %v2621 = vld [vmem:[%s2619 + $0x4] sm:$0xf]
    %v2622 = vld [vmem:[%s2619 + $0x8] sm:$0xf]
    %v2623 = vld [vmem:[%s2619 + $0xc] sm:$0xf]
    %v2624 = vld [vmem:[%s2619 + $0x10] sm:$0xf]
    %v2625 = vld [vmem:[%s2619 + $0x14] sm:$0xf]
    %v2626 = vld [vmem:[%s2619 + $0x18] sm:$0xf]
    %v2627 = vld [vmem:[%s2619 + $0x1c] sm:$0xf]
    %v2628 = vld [vmem:[%s2619 + $0x20] sm:$0xf]
    %v2629 = vld [vmem:[%s2619 + $0x24] sm:$0xf]
    %v2630 = vld [vmem:[%s2619 + $0x28] sm:$0xf]
    %v2631 = vld [vmem:[%s2619 + $0x2c] sm:$0xf]
    %v2632 = vld [vmem:[%s2619 + $0x30] sm:$0xf]
    %v2633 = vld [vmem:[%s2619 + $0x34] sm:$0xf]
    %v2634 = vld [vmem:[%s2619 + $0x38] sm:$0xf]
    %v2635 = vld [vmem:[%s2619 + $0x3c] sm:$0xf]
    %v2652 = vunpack.c.l.b16 %v2620
    %v2653 = vunpack.c.l.b16 %v2621
    %v2654 = vunpack.c.l.b16 %v2622
    %v2655 = vunpack.c.l.b16 %v2623
    %v2656 = vunpack.c.l.b16 %v2624
    %v2657 = vunpack.c.l.b16 %v2625
    %v2658 = vunpack.c.l.b16 %v2626
    %v2659 = vunpack.c.l.b16 %v2627
    %v2660 = vunpack.c.l.b16 %v2628
    %v2661 = vunpack.c.l.b16 %v2629
    %v2662 = vunpack.c.l.b16 %v2630
    %v2663 = vunpack.c.l.b16 %v2631
    %v2664 = vunpack.c.l.b16 %v2632
    %v2665 = vunpack.c.l.b16 %v2633
    %v2666 = vunpack.c.l.b16 %v2634
    %v2667 = vunpack.c.l.b16 %v2635
    %v2668 = vpack.c.b16 %v2653, %v2652
    %v2669 = vpack.c.b16 %v2655, %v2654
    %v2670 = vpack.c.b16 %v2657, %v2656
    %v2671 = vpack.c.b16 %v2659, %v2658
    %v2672 = vpack.c.b16 %v2661, %v2660
    %v2673 = vpack.c.b16 %v2663, %v2662
    %v2674 = vpack.c.b16 %v2665, %v2664
    %v2675 = vpack.c.b16 %v2667, %v2666
    %2684 = vmatpush.bf16.msra.mxu0 %v2675
    %2685 = vmatpush.bf16.msra.mxu0 %v2674
    %2686 = vmatpush.bf16.msra.mxu0 %v2673
    %2687 = vmatpush.bf16.msra.mxu0 %v2672
    %2688 = vmatpush.bf16.msra.mxu0 %v2671
    %2689 = vmatpush.bf16.msra.mxu0 %v2670
    %2690 = vmatpush.bf16.msra.mxu0 %v2669
    %2691 = vmatpush.bf16.msra.mxu0 %v2668
    %2692 = vmatmul.bf16.gmra.mxu0 %v2611
    %v2693 = vpop.f32.mrf.mxu0
    %v2694 = vadd.f32 0.0, %v2693
    %v2695 = vpop.f32.mrf.mxu0
    %v2696 = vadd.f32 0.0, %v2695
    %2697 = vmatmul.bf16.gmra.mxu0 %v2612
    %v2698 = vpop.f32.mrf.mxu0
    %v2699 = vadd.f32 0.0, %v2698
    %v2700 = vpop.f32.mrf.mxu0
    %v2701 = vadd.f32 0.0, %v2700
    %2702 = vmatmul.bf16.gmra.mxu0 %v2613
    %v2703 = vpop.f32.mrf.mxu0
    %v2704 = vadd.f32 0.0, %v2703
    %v2705 = vpop.f32.mrf.mxu0
    %v2706 = vadd.f32 0.0, %v2705
    %2707 = vmatmul.bf16.gmra.mxu0 %v2614
    %v2708 = vpop.f32.mrf.mxu0
    %v2709 = vadd.f32 0.0, %v2708
    %v2710 = vpop.f32.mrf.mxu0
    %v2711 = vadd.f32 0.0, %v2710
    %2712 = vmatmul.bf16.gmra.mxu0 %v2615
    %v2713 = vpop.f32.mrf.mxu0
    %v2714 = vadd.f32 0.0, %v2713
    %v2715 = vpop.f32.mrf.mxu0
    %v2716 = vadd.f32 0.0, %v2715
    %2717 = vmatmul.bf16.gmra.mxu0 %v2616
    %v2718 = vpop.f32.mrf.mxu0
    %v2719 = vadd.f32 0.0, %v2718
    %v2720 = vpop.f32.mrf.mxu0
    %v2721 = vadd.f32 0.0, %v2720
    %2722 = vmatmul.bf16.gmra.mxu0 %v2617
    %v2723 = vpop.f32.mrf.mxu0
    %v2724 = vadd.f32 0.0, %v2723
    %v2725 = vpop.f32.mrf.mxu0
    %v2726 = vadd.f32 0.0, %v2725
    %2727 = vmatmul.bf16.gmra.mxu0 %v2618
    %v2728 = vpop.f32.mrf.mxu0
    %v2729 = vadd.f32 0.0, %v2728
    %v2730 = vpop.f32.mrf.mxu0
    %v2731 = vadd.f32 0.0, %v2730
    %2732 = vdwg.mxu0
    %v2733 = vadd.f32 %v2547, %v2694
    %v2734 = vadd.f32 %v2548, %v2696
    %v2735 = vadd.f32 %v2549, %v2699
    %v2736 = vadd.f32 %v2550, %v2701
    %v2737 = vadd.f32 %v2551, %v2704
    %v2738 = vadd.f32 %v2552, %v2706
    %v2739 = vadd.f32 %v2553, %v2709
    %v2740 = vadd.f32 %v2554, %v2711
    %v2741 = vadd.f32 %v2555, %v2714
    %v2742 = vadd.f32 %v2556, %v2716
    %v2743 = vadd.f32 %v2557, %v2719
    %v2744 = vadd.f32 %v2558, %v2721
    %v2745 = vadd.f32 %v2559, %v2724
    %v2746 = vadd.f32 %v2560, %v2726
    %v2747 = vadd.f32 %v2561, %v2729
    %v2748 = vadd.f32 %v2562, %v2731
    %v2749 = vadd.f32 %v2733, %v2734
    %v2750 = vadd.f32 %v2749, %v2735
    %v2751 = vadd.f32 %v2750, %v2736
    %v2752 = vadd.f32 %v2751, %v2737
    %v2753 = vadd.f32 %v2752, %v2738
    %v2754 = vadd.f32 %v2753, %v2739
    %v2755 = vadd.f32 %v2754, %v2740
    %v2756 = vadd.f32 %v2755, %v2741
    %v2757 = vadd.f32 %v2756, %v2742
    %v2758 = vadd.f32 %v2757, %v2743
    %v2759 = vadd.f32 %v2758, %v2744
    %v2760 = vadd.f32 %v2759, %v2745
    %v2761 = vadd.f32 %v2760, %v2746
    %v2762 = vadd.f32 %v2761, %v2747
    %v2763 = vadd.f32 %v2762, %v2748
    %v2764 = vrot.slane %v2763, 4
    %v2765 = vadd.f32 %v2763, %v2764
    %v2766 = vrot.slane %v2765, 2
    %v2767 = vadd.f32 %v2765, %v2766
    %v2768 = vrot.slane %v2767, 1
    %v2769 = vadd.f32 %v2767, %v2768
    %v2770 = vmul.f32 %v2769, %v668
    %v2771 = vmul.f32 %v2733, %v2733
    %v2772 = vmul.f32 %v2734, %v2734
    %v2773 = vmul.f32 %v2735, %v2735
    %v2774 = vmul.f32 %v2736, %v2736
    %v2775 = vmul.f32 %v2737, %v2737
    %v2776 = vmul.f32 %v2738, %v2738
    %v2777 = vmul.f32 %v2739, %v2739
    %v2778 = vmul.f32 %v2740, %v2740
    %v2779 = vmul.f32 %v2741, %v2741
    %v2780 = vmul.f32 %v2742, %v2742
    %v2781 = vmul.f32 %v2743, %v2743
    %v2782 = vmul.f32 %v2744, %v2744
    %v2783 = vmul.f32 %v2745, %v2745
    %v2784 = vmul.f32 %v2746, %v2746
    %v2785 = vmul.f32 %v2747, %v2747
    %v2786 = vmul.f32 %v2748, %v2748
    %v2787 = vadd.f32 %v2771, %v2772
    %v2788 = vadd.f32 %v2787, %v2773
    %v2789 = vadd.f32 %v2788, %v2774
    %v2790 = vadd.f32 %v2789, %v2775
    %v2791 = vadd.f32 %v2790, %v2776
    %v2792 = vadd.f32 %v2791, %v2777
    %v2793 = vadd.f32 %v2792, %v2778
    %v2794 = vadd.f32 %v2793, %v2779
    %v2795 = vadd.f32 %v2794, %v2780
    %v2796 = vadd.f32 %v2795, %v2781
    %v2797 = vadd.f32 %v2796, %v2782
    %v2798 = vadd.f32 %v2797, %v2783
    %v2799 = vadd.f32 %v2798, %v2784
    %v2800 = vadd.f32 %v2799, %v2785
    %v2801 = vadd.f32 %v2800, %v2786
    %v2802 = vrot.slane %v2801, 4
    %v2803 = vadd.f32 %v2801, %v2802
    %v2804 = vrot.slane %v2803, 2
    %v2805 = vadd.f32 %v2803, %v2804
    %v2806 = vrot.slane %v2805, 1
    %v2807 = vadd.f32 %v2805, %v2806
    %v2808 = vmul.f32 %v2807, %v668
    %v2809 = vmul.f32 %v2770, %v2770
    %v2810 = vsub.f32 %v2808, %v2809
    %s2811 = scalar_lea.vmem %s4, 2
    %v2812 = vld [vmem:[%s2811] sm:$0x1]
    %v2813 = vadd.f32 %v2810, 1e-05
    %v2814 = vrsqrt.pop %v2813
    %v2815 = vmul.f32 %v2814, %v2813
    %v2816 = vmul.f32 %v2815, %v2814
    %v2817 = vmul.f32 0.5, %v2816
    %v2818 = vsub.f32 1.5, %v2817
    %v2819 = vmul.f32 %v2814, %v2818
    %vm2820 = vweird.f32 %v2813
    %vm2821 = vweird.f32 %v2814
    %vm2822 = vmor %vm2820, %vm2821
    %v2823 = vsel %vm2822, %v2814, %v2819
    %v2824 = vmul.f32 %v2812, %v2823
    %s2825 = scalar_lea.vmem %s5, 2
    %v2826 = vld [vmem:[%s2825] sm:$0x1]
    %v2827 = vmul.f32 %v2770, %v2824
    %v2828 = vsub.f32 %v2826, %v2827
    %v2830 = vperm.slane %v2824, 0
    %v2832 = vmul.f32 %v2733, %v2830
    %v2833 = vmul.f32 %v2734, %v2830
    %v2834 = vmul.f32 %v2735, %v2830
    %v2835 = vmul.f32 %v2736, %v2830
    %v2836 = vmul.f32 %v2737, %v2830
    %v2837 = vmul.f32 %v2738, %v2830
    %v2838 = vmul.f32 %v2739, %v2830
    %v2839 = vmul.f32 %v2740, %v2830
    %v2840 = vmul.f32 %v2741, %v2830
    %v2841 = vmul.f32 %v2742, %v2830
    %v2842 = vmul.f32 %v2743, %v2830
    %v2843 = vmul.f32 %v2744, %v2830
    %v2844 = vmul.f32 %v2745, %v2830
    %v2845 = vmul.f32 %v2746, %v2830
    %v2846 = vmul.f32 %v2747, %v2830
    %v2847 = vmul.f32 %v2748, %v2830
    %v2849 = vperm.slane %v2828, 0
    %v2851 = vadd.f32 %v2832, %v2849
    %v2852 = vadd.f32 %v2833, %v2849
    %v2853 = vadd.f32 %v2834, %v2849
    %v2854 = vadd.f32 %v2835, %v2849
    %v2855 = vadd.f32 %v2836, %v2849
    %v2856 = vadd.f32 %v2837, %v2849
    %v2857 = vadd.f32 %v2838, %v2849
    %v2858 = vadd.f32 %v2839, %v2849
    %v2859 = vadd.f32 %v2840, %v2849
    %v2860 = vadd.f32 %v2841, %v2849
    %v2861 = vadd.f32 %v2842, %v2849
    %v2862 = vadd.f32 %v2843, %v2849
    %v2863 = vadd.f32 %v2844, %v2849
    %v2864 = vadd.f32 %v2845, %v2849
    %v2865 = vadd.f32 %v2846, %v2849
    %v2866 = vadd.f32 %v2847, %v2849
    %v2867 = vadd.f32 %v748, %v2851
    %v2868 = vadd.f32 %v749, %v2852
    %v2869 = vadd.f32 %v750, %v2853
    %v2870 = vadd.f32 %v751, %v2854
    %v2871 = vadd.f32 %v752, %v2855
    %v2872 = vadd.f32 %v753, %v2856
    %v2873 = vadd.f32 %v754, %v2857
    %v2874 = vadd.f32 %v755, %v2858
    %v2875 = vadd.f32 %v756, %v2859
    %v2876 = vadd.f32 %v757, %v2860
    %v2877 = vadd.f32 %v758, %v2861
    %v2878 = vadd.f32 %v759, %v2862
    %v2879 = vadd.f32 %v760, %v2863
    %v2880 = vadd.f32 %v761, %v2864
    %v2881 = vadd.f32 %v762, %v2865
    %v2882 = vadd.f32 %v763, %v2866
    %v2883 = vpack.c.bf16 %v2868, %v2867
    %v2884 = vpack.c.bf16 %v2870, %v2869
    %v2885 = vpack.c.bf16 %v2872, %v2871
    %v2886 = vpack.c.bf16 %v2874, %v2873
    %v2887 = vpack.c.bf16 %v2876, %v2875
    %v2888 = vpack.c.bf16 %v2878, %v2877
    %v2889 = vpack.c.bf16 %v2880, %v2879
    %v2890 = vpack.c.bf16 %v2882, %v2881
    %s2891 = scalar_lea.vmem [#allocation3], 768
    %v2892 = vld [vmem:[%s2891] sm:$0xf]
    %v2893 = vld [vmem:[%s2891 + $0x4] sm:$0xf]
    %v2894 = vld [vmem:[%s2891 + $0x8] sm:$0xf]
    %v2895 = vld [vmem:[%s2891 + $0xc] sm:$0xf]
    %v2896 = vld [vmem:[%s2891 + $0x10] sm:$0xf]
    %v2897 = vld [vmem:[%s2891 + $0x14] sm:$0xf]
    %v2898 = vld [vmem:[%s2891 + $0x18] sm:$0xf]
    %v2899 = vld [vmem:[%s2891 + $0x1c] sm:$0xf]
    %v2900 = vld [vmem:[%s2891 + $0x20] sm:$0xf]
    %v2901 = vld [vmem:[%s2891 + $0x24] sm:$0xf]
    %v2902 = vld [vmem:[%s2891 + $0x28] sm:$0xf]
    %v2903 = vld [vmem:[%s2891 + $0x2c] sm:$0xf]
    %v2904 = vld [vmem:[%s2891 + $0x30] sm:$0xf]
    %v2905 = vld [vmem:[%s2891 + $0x34] sm:$0xf]
    %v2906 = vld [vmem:[%s2891 + $0x38] sm:$0xf]
    %v2907 = vld [vmem:[%s2891 + $0x3c] sm:$0xf]
    %v2908 = vrot.slane %v2867, 6
    %v2909 = vrot.slane %v2868, 6
    %v2910 = vrot.slane %v2869, 6
    %v2911 = vrot.slane %v2870, 6
    %v2912 = vrot.slane %v2871, 6
    %v2913 = vrot.slane %v2872, 6
    %v2914 = vrot.slane %v2873, 6
    %v2915 = vrot.slane %v2874, 6
    %v2916 = vrot.slane %v2875, 6
    %v2917 = vrot.slane %v2876, 6
    %v2918 = vrot.slane %v2877, 6
    %v2919 = vrot.slane %v2878, 6
    %v2920 = vrot.slane %v2879, 6
    %v2921 = vrot.slane %v2880, 6
    %v2922 = vrot.slane %v2881, 6
    %v2923 = vrot.slane %v2882, 6
    %v2924 = vsel %vm805, %v2922, %v2923
    %v2925 = vsel %vm805, %v2921, %v2922
    %v2926 = vsel %vm805, %v2920, %v2921
    %v2927 = vsel %vm805, %v2919, %v2920
    %v2928 = vsel %vm805, %v2918, %v2919
    %v2929 = vsel %vm805, %v2917, %v2918
    %v2930 = vsel %vm805, %v2916, %v2917
    %v2931 = vsel %vm805, %v2915, %v2916
    %v2932 = vsel %vm805, %v2914, %v2915
    %v2933 = vsel %vm805, %v2913, %v2914
    %v2934 = vsel %vm805, %v2912, %v2913
    %v2935 = vsel %vm805, %v2911, %v2912
    %v2936 = vsel %vm805, %v2910, %v2911
    %v2937 = vsel %vm805, %v2909, %v2910
    %v2938 = vsel %vm805, %v2908, %v2909
    %v2939 = vsel %vm805, %v2923, %v2908
    %v2940 = vsel %vm838, %v2939, 0.0
    %v2941 = vsel %vm839, %v2938, 0.0
    %v2942 = vsel %vm840, %v2937, 0.0
    %v2943 = vsel %vm841, %v2936, 0.0
    %v2944 = vsel %vm842, %v2935, 0.0
    %v2945 = vsel %vm843, %v2934, 0.0
    %v2946 = vsel %vm844, %v2933, 0.0
    %v2947 = vsel %vm845, %v2932, 0.0
    %v2948 = vsel %vm846, %v2931, 0.0
    %v2949 = vsel %vm847, %v2930, 0.0
    %v2950 = vsel %vm848, %v2929, 0.0
    %v2951 = vsel %vm849, %v2928, 0.0
    %v2952 = vsel %vm850, %v2927, 0.0
    %v2953 = vsel %vm851, %v2926, 0.0
    %v2954 = vsel %vm852, %v2925, 0.0
    %v2955 = vsel %vm853, %v2924, 0.0
    %v2956 = vpack.c.bf16 %v2941, %v2940
    %v2957 = vpack.c.bf16 %v2943, %v2942
    %v2958 = vpack.c.bf16 %v2945, %v2944
    %v2959 = vpack.c.bf16 %v2947, %v2946
    %v2960 = vpack.c.bf16 %v2949, %v2948
    %v2961 = vpack.c.bf16 %v2951, %v2950
    %v2962 = vpack.c.bf16 %v2953, %v2952
    %v2963 = vpack.c.bf16 %v2955, %v2954
    %s2964 = scalar_lea.vmem [#allocation3], 640
    %v2965 = vld [vmem:[%s2964] sm:$0xf]
    %v2966 = vld [vmem:[%s2964 + $0x4] sm:$0xf]
    %v2967 = vld [vmem:[%s2964 + $0x8] sm:$0xf]
    %v2968 = vld [vmem:[%s2964 + $0xc] sm:$0xf]
    %v2969 = vld [vmem:[%s2964 + $0x10] sm:$0xf]
    %v2970 = vld [vmem:[%s2964 + $0x14] sm:$0xf]
    %v2971 = vld [vmem:[%s2964 + $0x18] sm:$0xf]
    %v2972 = vld [vmem:[%s2964 + $0x1c] sm:$0xf]
    %v2973 = vld [vmem:[%s2964 + $0x20] sm:$0xf]
    %v2974 = vld [vmem:[%s2964 + $0x24] sm:$0xf]
    %v2975 = vld [vmem:[%s2964 + $0x28] sm:$0xf]
    %v2976 = vld [vmem:[%s2964 + $0x2c] sm:$0xf]
    %v2977 = vld [vmem:[%s2964 + $0x30] sm:$0xf]
    %v2978 = vld [vmem:[%s2964 + $0x34] sm:$0xf]
    %v2979 = vld [vmem:[%s2964 + $0x38] sm:$0xf]
    %v2980 = vld [vmem:[%s2964 + $0x3c] sm:$0xf]
    %v2997 = vunpack.c.l.b16 %v2965
    %v2998 = vunpack.c.l.b16 %v2966
    %v2999 = vunpack.c.l.b16 %v2967
    %v3000 = vunpack.c.l.b16 %v2968
    %v3001 = vunpack.c.l.b16 %v2969
    %v3002 = vunpack.c.l.b16 %v2970
    %v3003 = vunpack.c.l.b16 %v2971
    %v3004 = vunpack.c.l.b16 %v2972
    %v3005 = vunpack.c.l.b16 %v2973
    %v3006 = vunpack.c.l.b16 %v2974
    %v3007 = vunpack.c.l.b16 %v2975
    %v3008 = vunpack.c.l.b16 %v2976
    %v3009 = vunpack.c.l.b16 %v2977
    %v3010 = vunpack.c.l.b16 %v2978
    %v3011 = vunpack.c.l.b16 %v2979
    %v3012 = vunpack.c.l.b16 %v2980
    %v3013 = vpack.c.b16 %v2998, %v2997
    %v3014 = vpack.c.b16 %v3000, %v2999
    %v3015 = vpack.c.b16 %v3002, %v3001
    %v3016 = vpack.c.b16 %v3004, %v3003
    %v3017 = vpack.c.b16 %v3006, %v3005
    %v3018 = vpack.c.b16 %v3008, %v3007
    %v3019 = vpack.c.b16 %v3010, %v3009
    %v3020 = vpack.c.b16 %v3012, %v3011
    %3029 = vmatpush.bf16.msra.mxu0 %v3020
    %3030 = vmatpush.bf16.msra.mxu0 %v3019
    %3031 = vmatpush.bf16.msra.mxu0 %v3018
    %3032 = vmatpush.bf16.msra.mxu0 %v3017
    %3033 = vmatpush.bf16.msra.mxu0 %v3016
    %3034 = vmatpush.bf16.msra.mxu0 %v3015
    %3035 = vmatpush.bf16.msra.mxu0 %v3014
    %3036 = vmatpush.bf16.msra.mxu0 %v3013
    %3037 = vmatmul.bf16.gmra.mxu0 %v2956
    %v3038 = vpop.f32.mrf.mxu0
    %v3039 = vadd.f32 0.0, %v3038
    %v3040 = vpop.f32.mrf.mxu0
    %v3041 = vadd.f32 0.0, %v3040
    %3042 = vmatmul.bf16.gmra.mxu0 %v2957
    %v3043 = vpop.f32.mrf.mxu0
    %v3044 = vadd.f32 0.0, %v3043
    %v3045 = vpop.f32.mrf.mxu0
    %v3046 = vadd.f32 0.0, %v3045
    %3047 = vmatmul.bf16.gmra.mxu0 %v2958
    %v3048 = vpop.f32.mrf.mxu0
    %v3049 = vadd.f32 0.0, %v3048
    %v3050 = vpop.f32.mrf.mxu0
    %v3051 = vadd.f32 0.0, %v3050
    %3052 = vmatmul.bf16.gmra.mxu0 %v2959
    %v3053 = vpop.f32.mrf.mxu0
    %v3054 = vadd.f32 0.0, %v3053
    %v3055 = vpop.f32.mrf.mxu0
    %v3056 = vadd.f32 0.0, %v3055
    %3057 = vmatmul.bf16.gmra.mxu0 %v2960
    %v3058 = vpop.f32.mrf.mxu0
    %v3059 = vadd.f32 0.0, %v3058
    %v3060 = vpop.f32.mrf.mxu0
    %v3061 = vadd.f32 0.0, %v3060
    %3062 = vmatmul.bf16.gmra.mxu0 %v2961
    %v3063 = vpop.f32.mrf.mxu0
    %v3064 = vadd.f32 0.0, %v3063
    %v3065 = vpop.f32.mrf.mxu0
    %v3066 = vadd.f32 0.0, %v3065
    %3067 = vmatmul.bf16.gmra.mxu0 %v2962
    %v3068 = vpop.f32.mrf.mxu0
    %v3069 = vadd.f32 0.0, %v3068
    %v3070 = vpop.f32.mrf.mxu0
    %v3071 = vadd.f32 0.0, %v3070
    %3072 = vmatmul.bf16.gmra.mxu0 %v2963
    %v3073 = vpop.f32.mrf.mxu0
    %v3074 = vadd.f32 0.0, %v3073
    %v3075 = vpop.f32.mrf.mxu0
    %v3076 = vadd.f32 0.0, %v3075
    %3077 = vdwg.mxu0
    %v3094 = vunpack.c.l.b16 %v2892
    %v3095 = vunpack.c.l.b16 %v2893
    %v3096 = vunpack.c.l.b16 %v2894
    %v3097 = vunpack.c.l.b16 %v2895
    %v3098 = vunpack.c.l.b16 %v2896
    %v3099 = vunpack.c.l.b16 %v2897
    %v3100 = vunpack.c.l.b16 %v2898
    %v3101 = vunpack.c.l.b16 %v2899
    %v3102 = vunpack.c.l.b16 %v2900
    %v3103 = vunpack.c.l.b16 %v2901
    %v3104 = vunpack.c.l.b16 %v2902
    %v3105 = vunpack.c.l.b16 %v2903
    %v3106 = vunpack.c.l.b16 %v2904
    %v3107 = vunpack.c.l.b16 %v2905
    %v3108 = vunpack.c.l.b16 %v2906
    %v3109 = vunpack.c.l.b16 %v2907
    %v3110 = vpack.c.b16 %v3095, %v3094
    %v3111 = vpack.c.b16 %v3097, %v3096
    %v3112 = vpack.c.b16 %v3099, %v3098
    %v3113 = vpack.c.b16 %v3101, %v3100
    %v3114 = vpack.c.b16 %v3103, %v3102
    %v3115 = vpack.c.b16 %v3105, %v3104
    %v3116 = vpack.c.b16 %v3107, %v3106
    %v3117 = vpack.c.b16 %v3109, %v3108
    %3126 = vmatpush.bf16.msra.mxu0 %v3117
    %3127 = vmatpush.bf16.msra.mxu0 %v3116
    %3128 = vmatpush.bf16.msra.mxu0 %v3115
    %3129 = vmatpush.bf16.msra.mxu0 %v3114
    %3130 = vmatpush.bf16.msra.mxu0 %v3113
    %3131 = vmatpush.bf16.msra.mxu0 %v3112
    %3132 = vmatpush.bf16.msra.mxu0 %v3111
    %3133 = vmatpush.bf16.msra.mxu0 %v3110
    %3134 = vmatmul.bf16.gmra.mxu0 %v2883
    %v3135 = vpop.f32.mrf.mxu0
    %v3136 = vadd.f32 %v3039, %v3135
    %v3137 = vpop.f32.mrf.mxu0
    %v3138 = vadd.f32 %v3041, %v3137
    %3139 = vmatmul.bf16.gmra.mxu0 %v2884
    %v3140 = vpop.f32.mrf.mxu0
    %v3141 = vadd.f32 %v3044, %v3140
    %v3142 = vpop.f32.mrf.mxu0
    %v3143 = vadd.f32 %v3046, %v3142
    %3144 = vmatmul.bf16.gmra.mxu0 %v2885
    %v3145 = vpop.f32.mrf.mxu0
    %v3146 = vadd.f32 %v3049, %v3145
    %v3147 = vpop.f32.mrf.mxu0
    %v3148 = vadd.f32 %v3051, %v3147
    %3149 = vmatmul.bf16.gmra.mxu0 %v2886
    %v3150 = vpop.f32.mrf.mxu0
    %v3151 = vadd.f32 %v3054, %v3150
    %v3152 = vpop.f32.mrf.mxu0
    %v3153 = vadd.f32 %v3056, %v3152
    %3154 = vmatmul.bf16.gmra.mxu0 %v2887
    %v3155 = vpop.f32.mrf.mxu0
    %v3156 = vadd.f32 %v3059, %v3155
    %v3157 = vpop.f32.mrf.mxu0
    %v3158 = vadd.f32 %v3061, %v3157
    %3159 = vmatmul.bf16.gmra.mxu0 %v2888
    %v3160 = vpop.f32.mrf.mxu0
    %v3161 = vadd.f32 %v3064, %v3160
    %v3162 = vpop.f32.mrf.mxu0
    %v3163 = vadd.f32 %v3066, %v3162
    %3164 = vmatmul.bf16.gmra.mxu0 %v2889
    %v3165 = vpop.f32.mrf.mxu0
    %v3166 = vadd.f32 %v3069, %v3165
    %v3167 = vpop.f32.mrf.mxu0
    %v3168 = vadd.f32 %v3071, %v3167
    %3169 = vmatmul.bf16.gmra.mxu0 %v2890
    %v3170 = vpop.f32.mrf.mxu0
    %v3171 = vadd.f32 %v3074, %v3170
    %v3172 = vpop.f32.mrf.mxu0
    %v3173 = vadd.f32 %v3076, %v3172
    %3174 = vdwg.mxu0
    %v3175 = vrot.slane %v2867, 7
    %v3176 = vrot.slane %v2868, 7
    %v3177 = vrot.slane %v2869, 7
    %v3178 = vrot.slane %v2870, 7
    %v3179 = vrot.slane %v2871, 7
    %v3180 = vrot.slane %v2872, 7
    %v3181 = vrot.slane %v2873, 7
    %v3182 = vrot.slane %v2874, 7
    %v3183 = vrot.slane %v2875, 7
    %v3184 = vrot.slane %v2876, 7
    %v3185 = vrot.slane %v2877, 7
    %v3186 = vrot.slane %v2878, 7
    %v3187 = vrot.slane %v2879, 7
    %v3188 = vrot.slane %v2880, 7
    %v3189 = vrot.slane %v2881, 7
    %v3190 = vrot.slane %v2882, 7
    %v3191 = vsel %vm1104, %v3189, %v3190
    %v3192 = vsel %vm1104, %v3188, %v3189
    %v3193 = vsel %vm1104, %v3187, %v3188
    %v3194 = vsel %vm1104, %v3186, %v3187
    %v3195 = vsel %vm1104, %v3185, %v3186
    %v3196 = vsel %vm1104, %v3184, %v3185
    %v3197 = vsel %vm1104, %v3183, %v3184
    %v3198 = vsel %vm1104, %v3182, %v3183
    %v3199 = vsel %vm1104, %v3181, %v3182
    %v3200 = vsel %vm1104, %v3180, %v3181
    %v3201 = vsel %vm1104, %v3179, %v3180
    %v3202 = vsel %vm1104, %v3178, %v3179
    %v3203 = vsel %vm1104, %v3177, %v3178
    %v3204 = vsel %vm1104, %v3176, %v3177
    %v3205 = vsel %vm1104, %v3175, %v3176
    %v3206 = vsel %vm1104, %v3190, %v3175
    %v3207 = vsel %vm1137, %v3206, 0.0
    %v3208 = vsel %vm1138, %v3205, 0.0
    %v3209 = vsel %vm1139, %v3204, 0.0
    %v3210 = vsel %vm1140, %v3203, 0.0
    %v3211 = vsel %vm1141, %v3202, 0.0
    %v3212 = vsel %vm1142, %v3201, 0.0
    %v3213 = vsel %vm1143, %v3200, 0.0
    %v3214 = vsel %vm1144, %v3199, 0.0
    %v3215 = vsel %vm1145, %v3198, 0.0
    %v3216 = vsel %vm1146, %v3197, 0.0
    %v3217 = vsel %vm1147, %v3196, 0.0
    %v3218 = vsel %vm1148, %v3195, 0.0
    %v3219 = vsel %vm1149, %v3194, 0.0
    %v3220 = vsel %vm1150, %v3193, 0.0
    %v3221 = vsel %vm1151, %v3192, 0.0
    %v3222 = vsel %vm1152, %v3191, 0.0
    %v3223 = vpack.c.bf16 %v3208, %v3207
    %v3224 = vpack.c.bf16 %v3210, %v3209
    %v3225 = vpack.c.bf16 %v3212, %v3211
    %v3226 = vpack.c.bf16 %v3214, %v3213
    %v3227 = vpack.c.bf16 %v3216, %v3215
    %v3228 = vpack.c.bf16 %v3218, %v3217
    %v3229 = vpack.c.bf16 %v3220, %v3219
    %v3230 = vpack.c.bf16 %v3222, %v3221
    %s3231 = scalar_lea.vmem [#allocation3], 704
    %v3232 = vld [vmem:[%s3231] sm:$0xf]
    %v3233 = vld [vmem:[%s3231 + $0x4] sm:$0xf]
    %v3234 = vld [vmem:[%s3231 + $0x8] sm:$0xf]
    %v3235 = vld [vmem:[%s3231 + $0xc] sm:$0xf]
    %v3236 = vld [vmem:[%s3231 + $0x10] sm:$0xf]
    %v3237 = vld [vmem:[%s3231 + $0x14] sm:$0xf]
    %v3238 = vld [vmem:[%s3231 + $0x18] sm:$0xf]
    %v3239 = vld [vmem:[%s3231 + $0x1c] sm:$0xf]
    %v3240 = vld [vmem:[%s3231 + $0x20] sm:$0xf]
    %v3241 = vld [vmem:[%s3231 + $0x24] sm:$0xf]
    %v3242 = vld [vmem:[%s3231 + $0x28] sm:$0xf]
    %v3243 = vld [vmem:[%s3231 + $0x2c] sm:$0xf]
    %v3244 = vld [vmem:[%s3231 + $0x30] sm:$0xf]
    %v3245 = vld [vmem:[%s3231 + $0x34] sm:$0xf]
    %v3246 = vld [vmem:[%s3231 + $0x38] sm:$0xf]
    %v3247 = vld [vmem:[%s3231 + $0x3c] sm:$0xf]
    %v3264 = vunpack.c.l.b16 %v3232
    %v3265 = vunpack.c.l.b16 %v3233
    %v3266 = vunpack.c.l.b16 %v3234
    %v3267 = vunpack.c.l.b16 %v3235
    %v3268 = vunpack.c.l.b16 %v3236
    %v3269 = vunpack.c.l.b16 %v3237
    %v3270 = vunpack.c.l.b16 %v3238
    %v3271 = vunpack.c.l.b16 %v3239
    %v3272 = vunpack.c.l.b16 %v3240
    %v3273 = vunpack.c.l.b16 %v3241
    %v3274 = vunpack.c.l.b16 %v3242
    %v3275 = vunpack.c.l.b16 %v3243
    %v3276 = vunpack.c.l.b16 %v3244
    %v3277 = vunpack.c.l.b16 %v3245
    %v3278 = vunpack.c.l.b16 %v3246
    %v3279 = vunpack.c.l.b16 %v3247
    %v3280 = vpack.c.b16 %v3265, %v3264
    %v3281 = vpack.c.b16 %v3267, %v3266
    %v3282 = vpack.c.b16 %v3269, %v3268
    %v3283 = vpack.c.b16 %v3271, %v3270
    %v3284 = vpack.c.b16 %v3273, %v3272
    %v3285 = vpack.c.b16 %v3275, %v3274
    %v3286 = vpack.c.b16 %v3277, %v3276
    %v3287 = vpack.c.b16 %v3279, %v3278
    %3296 = vmatpush.bf16.msra.mxu0 %v3287
    %3297 = vmatpush.bf16.msra.mxu0 %v3286
    %3298 = vmatpush.bf16.msra.mxu0 %v3285
    %3299 = vmatpush.bf16.msra.mxu0 %v3284
    %3300 = vmatpush.bf16.msra.mxu0 %v3283
    %3301 = vmatpush.bf16.msra.mxu0 %v3282
    %3302 = vmatpush.bf16.msra.mxu0 %v3281
    %3303 = vmatpush.bf16.msra.mxu0 %v3280
    %3304 = vmatmul.bf16.gmra.mxu0 %v3223
    %v3305 = vpop.f32.mrf.mxu0
    %v3306 = vadd.f32 0.0, %v3305
    %v3307 = vpop.f32.mrf.mxu0
    %v3308 = vadd.f32 0.0, %v3307
    %3309 = vmatmul.bf16.gmra.mxu0 %v3224
    %v3310 = vpop.f32.mrf.mxu0
    %v3311 = vadd.f32 0.0, %v3310
    %v3312 = vpop.f32.mrf.mxu0
    %v3313 = vadd.f32 0.0, %v3312
    %3314 = vmatmul.bf16.gmra.mxu0 %v3225
    %v3315 = vpop.f32.mrf.mxu0
    %v3316 = vadd.f32 0.0, %v3315
    %v3317 = vpop.f32.mrf.mxu0
    %v3318 = vadd.f32 0.0, %v3317
    %3319 = vmatmul.bf16.gmra.mxu0 %v3226
    %v3320 = vpop.f32.mrf.mxu0
    %v3321 = vadd.f32 0.0, %v3320
    %v3322 = vpop.f32.mrf.mxu0
    %v3323 = vadd.f32 0.0, %v3322
    %3324 = vmatmul.bf16.gmra.mxu0 %v3227
    %v3325 = vpop.f32.mrf.mxu0
    %v3326 = vadd.f32 0.0, %v3325
    %v3327 = vpop.f32.mrf.mxu0
    %v3328 = vadd.f32 0.0, %v3327
    %3329 = vmatmul.bf16.gmra.mxu0 %v3228
    %v3330 = vpop.f32.mrf.mxu0
    %v3331 = vadd.f32 0.0, %v3330
    %v3332 = vpop.f32.mrf.mxu0
    %v3333 = vadd.f32 0.0, %v3332
    %3334 = vmatmul.bf16.gmra.mxu0 %v3229
    %v3335 = vpop.f32.mrf.mxu0
    %v3336 = vadd.f32 0.0, %v3335
    %v3337 = vpop.f32.mrf.mxu0
    %v3338 = vadd.f32 0.0, %v3337
    %3339 = vmatmul.bf16.gmra.mxu0 %v3230
    %v3340 = vpop.f32.mrf.mxu0
    %v3341 = vadd.f32 0.0, %v3340
    %v3342 = vpop.f32.mrf.mxu0
    %v3343 = vadd.f32 0.0, %v3342
    %3344 = vdwg.mxu0
    %v3345 = vadd.f32 %v3136, %v3306
    %v3346 = vadd.f32 %v3138, %v3308
    %v3347 = vadd.f32 %v3141, %v3311
    %v3348 = vadd.f32 %v3143, %v3313
    %v3349 = vadd.f32 %v3146, %v3316
    %v3350 = vadd.f32 %v3148, %v3318
    %v3351 = vadd.f32 %v3151, %v3321
    %v3352 = vadd.f32 %v3153, %v3323
    %v3353 = vadd.f32 %v3156, %v3326
    %v3354 = vadd.f32 %v3158, %v3328
    %v3355 = vadd.f32 %v3161, %v3331
    %v3356 = vadd.f32 %v3163, %v3333
    %v3357 = vadd.f32 %v3166, %v3336
    %v3358 = vadd.f32 %v3168, %v3338
    %v3359 = vadd.f32 %v3171, %v3341
    %v3360 = vadd.f32 %v3173, %v3343
    %v3361 = vrot.slane %v2867, 1
    %v3362 = vrot.slane %v2868, 1
    %v3363 = vrot.slane %v2869, 1
    %v3364 = vrot.slane %v2870, 1
    %v3365 = vrot.slane %v2871, 1
    %v3366 = vrot.slane %v2872, 1
    %v3367 = vrot.slane %v2873, 1
    %v3368 = vrot.slane %v2874, 1
    %v3369 = vrot.slane %v2875, 1
    %v3370 = vrot.slane %v2876, 1
    %v3371 = vrot.slane %v2877, 1
    %v3372 = vrot.slane %v2878, 1
    %v3373 = vrot.slane %v2879, 1
    %v3374 = vrot.slane %v2880, 1
    %v3375 = vrot.slane %v2881, 1
    %v3376 = vrot.slane %v2882, 1
    %v3377 = vsel %vm1323, %v3375, %v3376
    %v3378 = vsel %vm1323, %v3374, %v3375
    %v3379 = vsel %vm1323, %v3373, %v3374
    %v3380 = vsel %vm1323, %v3372, %v3373
    %v3381 = vsel %vm1323, %v3371, %v3372
    %v3382 = vsel %vm1323, %v3370, %v3371
    %v3383 = vsel %vm1323, %v3369, %v3370
    %v3384 = vsel %vm1323, %v3368, %v3369
    %v3385 = vsel %vm1323, %v3367, %v3368
    %v3386 = vsel %vm1323, %v3366, %v3367
    %v3387 = vsel %vm1323, %v3365, %v3366
    %v3388 = vsel %vm1323, %v3364, %v3365
    %v3389 = vsel %vm1323, %v3363, %v3364
    %v3390 = vsel %vm1323, %v3362, %v3363
    %v3391 = vsel %vm1323, %v3361, %v3362
    %v3392 = vsel %vm1323, %v3376, %v3361
    %v3393 = vsel %vm1356, %v3391, 0.0
    %v3394 = vsel %vm1357, %v3390, 0.0
    %v3395 = vsel %vm1358, %v3389, 0.0
    %v3396 = vsel %vm1359, %v3388, 0.0
    %v3397 = vsel %vm1360, %v3387, 0.0
    %v3398 = vsel %vm1361, %v3386, 0.0
    %v3399 = vsel %vm1362, %v3385, 0.0
    %v3400 = vsel %vm1363, %v3384, 0.0
    %v3401 = vsel %vm1364, %v3383, 0.0
    %v3402 = vsel %vm1365, %v3382, 0.0
    %v3403 = vsel %vm1366, %v3381, 0.0
    %v3404 = vsel %vm1367, %v3380, 0.0
    %v3405 = vsel %vm1368, %v3379, 0.0
    %v3406 = vsel %vm1369, %v3378, 0.0
    %v3407 = vsel %vm1370, %v3377, 0.0
    %v3408 = vsel %vm1371, %v3392, 0.0
    %v3409 = vpack.c.bf16 %v3394, %v3393
    %v3410 = vpack.c.bf16 %v3396, %v3395
    %v3411 = vpack.c.bf16 %v3398, %v3397
    %v3412 = vpack.c.bf16 %v3400, %v3399
    %v3413 = vpack.c.bf16 %v3402, %v3401
    %v3414 = vpack.c.bf16 %v3404, %v3403
    %v3415 = vpack.c.bf16 %v3406, %v3405
    %v3416 = vpack.c.bf16 %v3408, %v3407
    %s3417 = scalar_lea.vmem [#allocation3], 832
    %v3418 = vld [vmem:[%s3417] sm:$0xf]
    %v3419 = vld [vmem:[%s3417 + $0x4] sm:$0xf]
    %v3420 = vld [vmem:[%s3417 + $0x8] sm:$0xf]
    %v3421 = vld [vmem:[%s3417 + $0xc] sm:$0xf]
    %v3422 = vld [vmem:[%s3417 + $0x10] sm:$0xf]
    %v3423 = vld [vmem:[%s3417 + $0x14] sm:$0xf]
    %v3424 = vld [vmem:[%s3417 + $0x18] sm:$0xf]
    %v3425 = vld [vmem:[%s3417 + $0x1c] sm:$0xf]
    %v3426 = vld [vmem:[%s3417 + $0x20] sm:$0xf]
    %v3427 = vld [vmem:[%s3417 + $0x24] sm:$0xf]
    %v3428 = vld [vmem:[%s3417 + $0x28] sm:$0xf]
    %v3429 = vld [vmem:[%s3417 + $0x2c] sm:$0xf]
    %v3430 = vld [vmem:[%s3417 + $0x30] sm:$0xf]
    %v3431 = vld [vmem:[%s3417 + $0x34] sm:$0xf]
    %v3432 = vld [vmem:[%s3417 + $0x38] sm:$0xf]
    %v3433 = vld [vmem:[%s3417 + $0x3c] sm:$0xf]
    %v3450 = vunpack.c.l.b16 %v3418
    %v3451 = vunpack.c.l.b16 %v3419
    %v3452 = vunpack.c.l.b16 %v3420
    %v3453 = vunpack.c.l.b16 %v3421
    %v3454 = vunpack.c.l.b16 %v3422
    %v3455 = vunpack.c.l.b16 %v3423
    %v3456 = vunpack.c.l.b16 %v3424
    %v3457 = vunpack.c.l.b16 %v3425
    %v3458 = vunpack.c.l.b16 %v3426
    %v3459 = vunpack.c.l.b16 %v3427
    %v3460 = vunpack.c.l.b16 %v3428
    %v3461 = vunpack.c.l.b16 %v3429
    %v3462 = vunpack.c.l.b16 %v3430
    %v3463 = vunpack.c.l.b16 %v3431
    %v3464 = vunpack.c.l.b16 %v3432
    %v3465 = vunpack.c.l.b16 %v3433
    %v3466 = vpack.c.b16 %v3451, %v3450
    %v3467 = vpack.c.b16 %v3453, %v3452
    %v3468 = vpack.c.b16 %v3455, %v3454
    %v3469 = vpack.c.b16 %v3457, %v3456
    %v3470 = vpack.c.b16 %v3459, %v3458
    %v3471 = vpack.c.b16 %v3461, %v3460
    %v3472 = vpack.c.b16 %v3463, %v3462
    %v3473 = vpack.c.b16 %v3465, %v3464
    %3482 = vmatpush.bf16.msra.mxu0 %v3473
    %3483 = vmatpush.bf16.msra.mxu0 %v3472
    %3484 = vmatpush.bf16.msra.mxu0 %v3471
    %3485 = vmatpush.bf16.msra.mxu0 %v3470
    %3486 = vmatpush.bf16.msra.mxu0 %v3469
    %3487 = vmatpush.bf16.msra.mxu0 %v3468
    %3488 = vmatpush.bf16.msra.mxu0 %v3467
    %3489 = vmatpush.bf16.msra.mxu0 %v3466
    %3490 = vmatmul.bf16.gmra.mxu0 %v3409
    %v3491 = vpop.f32.mrf.mxu0
    %v3492 = vadd.f32 0.0, %v3491
    %v3493 = vpop.f32.mrf.mxu0
    %v3494 = vadd.f32 0.0, %v3493
    %3495 = vmatmul.bf16.gmra.mxu0 %v3410
    %v3496 = vpop.f32.mrf.mxu0
    %v3497 = vadd.f32 0.0, %v3496
    %v3498 = vpop.f32.mrf.mxu0
    %v3499 = vadd.f32 0.0, %v3498
    %3500 = vmatmul.bf16.gmra.mxu0 %v3411
    %v3501 = vpop.f32.mrf.mxu0
    %v3502 = vadd.f32 0.0, %v3501
    %v3503 = vpop.f32.mrf.mxu0
    %v3504 = vadd.f32 0.0, %v3503
    %3505 = vmatmul.bf16.gmra.mxu0 %v3412
    %v3506 = vpop.f32.mrf.mxu0
    %v3507 = vadd.f32 0.0, %v3506
    %v3508 = vpop.f32.mrf.mxu0
    %v3509 = vadd.f32 0.0, %v3508
    %3510 = vmatmul.bf16.gmra.mxu0 %v3413
    %v3511 = vpop.f32.mrf.mxu0
    %v3512 = vadd.f32 0.0, %v3511
    %v3513 = vpop.f32.mrf.mxu0
    %v3514 = vadd.f32 0.0, %v3513
    %3515 = vmatmul.bf16.gmra.mxu0 %v3414
    %v3516 = vpop.f32.mrf.mxu0
    %v3517 = vadd.f32 0.0, %v3516
    %v3518 = vpop.f32.mrf.mxu0
    %v3519 = vadd.f32 0.0, %v3518
    %3520 = vmatmul.bf16.gmra.mxu0 %v3415
    %v3521 = vpop.f32.mrf.mxu0
    %v3522 = vadd.f32 0.0, %v3521
    %v3523 = vpop.f32.mrf.mxu0
    %v3524 = vadd.f32 0.0, %v3523
    %3525 = vmatmul.bf16.gmra.mxu0 %v3416
    %v3526 = vpop.f32.mrf.mxu0
    %v3527 = vadd.f32 0.0, %v3526
    %v3528 = vpop.f32.mrf.mxu0
    %v3529 = vadd.f32 0.0, %v3528
    %3530 = vdwg.mxu0
    %v3531 = vadd.f32 %v3345, %v3492
    %v3532 = vadd.f32 %v3346, %v3494
    %v3533 = vadd.f32 %v3347, %v3497
    %v3534 = vadd.f32 %v3348, %v3499
    %v3535 = vadd.f32 %v3349, %v3502
    %v3536 = vadd.f32 %v3350, %v3504
    %v3537 = vadd.f32 %v3351, %v3507
    %v3538 = vadd.f32 %v3352, %v3509
    %v3539 = vadd.f32 %v3353, %v3512
    %v3540 = vadd.f32 %v3354, %v3514
    %v3541 = vadd.f32 %v3355, %v3517
    %v3542 = vadd.f32 %v3356, %v3519
    %v3543 = vadd.f32 %v3357, %v3522
    %v3544 = vadd.f32 %v3358, %v3524
    %v3545 = vadd.f32 %v3359, %v3527
    %v3546 = vadd.f32 %v3360, %v3529
    %v3547 = vrot.slane %v2867, 2
    %v3548 = vrot.slane %v2868, 2
    %v3549 = vrot.slane %v2869, 2
    %v3550 = vrot.slane %v2870, 2
    %v3551 = vrot.slane %v2871, 2
    %v3552 = vrot.slane %v2872, 2
    %v3553 = vrot.slane %v2873, 2
    %v3554 = vrot.slane %v2874, 2
    %v3555 = vrot.slane %v2875, 2
    %v3556 = vrot.slane %v2876, 2
    %v3557 = vrot.slane %v2877, 2
    %v3558 = vrot.slane %v2878, 2
    %v3559 = vrot.slane %v2879, 2
    %v3560 = vrot.slane %v2880, 2
    %v3561 = vrot.slane %v2881, 2
    %v3562 = vrot.slane %v2882, 2
    %v3563 = vsel %vm1542, %v3561, %v3562
    %v3564 = vsel %vm1542, %v3560, %v3561
    %v3565 = vsel %vm1542, %v3559, %v3560
    %v3566 = vsel %vm1542, %v3558, %v3559
    %v3567 = vsel %vm1542, %v3557, %v3558
    %v3568 = vsel %vm1542, %v3556, %v3557
    %v3569 = vsel %vm1542, %v3555, %v3556
    %v3570 = vsel %vm1542, %v3554, %v3555
    %v3571 = vsel %vm1542, %v3553, %v3554
    %v3572 = vsel %vm1542, %v3552, %v3553
    %v3573 = vsel %vm1542, %v3551, %v3552
    %v3574 = vsel %vm1542, %v3550, %v3551
    %v3575 = vsel %vm1542, %v3549, %v3550
    %v3576 = vsel %vm1542, %v3548, %v3549
    %v3577 = vsel %vm1542, %v3547, %v3548
    %v3578 = vsel %vm1542, %v3562, %v3547
    %v3579 = vsel %vm1575, %v3577, 0.0
    %v3580 = vsel %vm1576, %v3576, 0.0
    %v3581 = vsel %vm1577, %v3575, 0.0
    %v3582 = vsel %vm1578, %v3574, 0.0
    %v3583 = vsel %vm1579, %v3573, 0.0
    %v3584 = vsel %vm1580, %v3572, 0.0
    %v3585 = vsel %vm1581, %v3571, 0.0
    %v3586 = vsel %vm1582, %v3570, 0.0
    %v3587 = vsel %vm1583, %v3569, 0.0
    %v3588 = vsel %vm1584, %v3568, 0.0
    %v3589 = vsel %vm1585, %v3567, 0.0
    %v3590 = vsel %vm1586, %v3566, 0.0
    %v3591 = vsel %vm1587, %v3565, 0.0
    %v3592 = vsel %vm1588, %v3564, 0.0
    %v3593 = vsel %vm1589, %v3563, 0.0
    %v3594 = vsel %vm1590, %v3578, 0.0
    %v3595 = vpack.c.bf16 %v3580, %v3579
    %v3596 = vpack.c.bf16 %v3582, %v3581
    %v3597 = vpack.c.bf16 %v3584, %v3583
    %v3598 = vpack.c.bf16 %v3586, %v3585
    %v3599 = vpack.c.bf16 %v3588, %v3587
    %v3600 = vpack.c.bf16 %v3590, %v3589
    %v3601 = vpack.c.bf16 %v3592, %v3591
    %v3602 = vpack.c.bf16 %v3594, %v3593
    %s3603 = scalar_lea.vmem [#allocation3], 896
    %v3604 = vld [vmem:[%s3603] sm:$0xf]
    %v3605 = vld [vmem:[%s3603 + $0x4] sm:$0xf]
    %v3606 = vld [vmem:[%s3603 + $0x8] sm:$0xf]
    %v3607 = vld [vmem:[%s3603 + $0xc] sm:$0xf]
    %v3608 = vld [vmem:[%s3603 + $0x10] sm:$0xf]
    %v3609 = vld [vmem:[%s3603 + $0x14] sm:$0xf]
    %v3610 = vld [vmem:[%s3603 + $0x18] sm:$0xf]
    %v3611 = vld [vmem:[%s3603 + $0x1c] sm:$0xf]
    %v3612 = vld [vmem:[%s3603 + $0x20] sm:$0xf]
    %v3613 = vld [vmem:[%s3603 + $0x24] sm:$0xf]
    %v3614 = vld [vmem:[%s3603 + $0x28] sm:$0xf]
    %v3615 = vld [vmem:[%s3603 + $0x2c] sm:$0xf]
    %v3616 = vld [vmem:[%s3603 + $0x30] sm:$0xf]
    %v3617 = vld [vmem:[%s3603 + $0x34] sm:$0xf]
    %v3618 = vld [vmem:[%s3603 + $0x38] sm:$0xf]
    %v3619 = vld [vmem:[%s3603 + $0x3c] sm:$0xf]
    %v3636 = vunpack.c.l.b16 %v3604
    %v3637 = vunpack.c.l.b16 %v3605
    %v3638 = vunpack.c.l.b16 %v3606
    %v3639 = vunpack.c.l.b16 %v3607
    %v3640 = vunpack.c.l.b16 %v3608
    %v3641 = vunpack.c.l.b16 %v3609
    %v3642 = vunpack.c.l.b16 %v3610
    %v3643 = vunpack.c.l.b16 %v3611
    %v3644 = vunpack.c.l.b16 %v3612
    %v3645 = vunpack.c.l.b16 %v3613
    %v3646 = vunpack.c.l.b16 %v3614
    %v3647 = vunpack.c.l.b16 %v3615
    %v3648 = vunpack.c.l.b16 %v3616
    %v3649 = vunpack.c.l.b16 %v3617
    %v3650 = vunpack.c.l.b16 %v3618
    %v3651 = vunpack.c.l.b16 %v3619
    %v3652 = vpack.c.b16 %v3637, %v3636
    %v3653 = vpack.c.b16 %v3639, %v3638
    %v3654 = vpack.c.b16 %v3641, %v3640
    %v3655 = vpack.c.b16 %v3643, %v3642
    %v3656 = vpack.c.b16 %v3645, %v3644
    %v3657 = vpack.c.b16 %v3647, %v3646
    %v3658 = vpack.c.b16 %v3649, %v3648
    %v3659 = vpack.c.b16 %v3651, %v3650
    %3668 = vmatpush.bf16.msra.mxu0 %v3659
    %3669 = vmatpush.bf16.msra.mxu0 %v3658
    %3670 = vmatpush.bf16.msra.mxu0 %v3657
    %3671 = vmatpush.bf16.msra.mxu0 %v3656
    %3672 = vmatpush.bf16.msra.mxu0 %v3655
    %3673 = vmatpush.bf16.msra.mxu0 %v3654
    %3674 = vmatpush.bf16.msra.mxu0 %v3653
    %3675 = vmatpush.bf16.msra.mxu0 %v3652
    %3676 = vmatmul.bf16.gmra.mxu0 %v3595
    %v3677 = vpop.f32.mrf.mxu0
    %v3678 = vadd.f32 0.0, %v3677
    %v3679 = vpop.f32.mrf.mxu0
    %v3680 = vadd.f32 0.0, %v3679
    %3681 = vmatmul.bf16.gmra.mxu0 %v3596
    %v3682 = vpop.f32.mrf.mxu0
    %v3683 = vadd.f32 0.0, %v3682
    %v3684 = vpop.f32.mrf.mxu0
    %v3685 = vadd.f32 0.0, %v3684
    %3686 = vmatmul.bf16.gmra.mxu0 %v3597
    %v3687 = vpop.f32.mrf.mxu0
    %v3688 = vadd.f32 0.0, %v3687
    %v3689 = vpop.f32.mrf.mxu0
    %v3690 = vadd.f32 0.0, %v3689
    %3691 = vmatmul.bf16.gmra.mxu0 %v3598
    %v3692 = vpop.f32.mrf.mxu0
    %v3693 = vadd.f32 0.0, %v3692
    %v3694 = vpop.f32.mrf.mxu0
    %v3695 = vadd.f32 0.0, %v3694
    %3696 = vmatmul.bf16.gmra.mxu0 %v3599
    %v3697 = vpop.f32.mrf.mxu0
    %v3698 = vadd.f32 0.0, %v3697
    %v3699 = vpop.f32.mrf.mxu0
    %v3700 = vadd.f32 0.0, %v3699
    %3701 = vmatmul.bf16.gmra.mxu0 %v3600
    %v3702 = vpop.f32.mrf.mxu0
    %v3703 = vadd.f32 0.0, %v3702
    %v3704 = vpop.f32.mrf.mxu0
    %v3705 = vadd.f32 0.0, %v3704
    %3706 = vmatmul.bf16.gmra.mxu0 %v3601
    %v3707 = vpop.f32.mrf.mxu0
    %v3708 = vadd.f32 0.0, %v3707
    %v3709 = vpop.f32.mrf.mxu0
    %v3710 = vadd.f32 0.0, %v3709
    %3711 = vmatmul.bf16.gmra.mxu0 %v3602
    %v3712 = vpop.f32.mrf.mxu0
    %v3713 = vadd.f32 0.0, %v3712
    %v3714 = vpop.f32.mrf.mxu0
    %v3715 = vadd.f32 0.0, %v3714
    %3716 = vdwg.mxu0
    %v3717 = vadd.f32 %v3531, %v3678
    %v3718 = vadd.f32 %v3532, %v3680
    %v3719 = vadd.f32 %v3533, %v3683
    %v3720 = vadd.f32 %v3534, %v3685
    %v3721 = vadd.f32 %v3535, %v3688
    %v3722 = vadd.f32 %v3536, %v3690
    %v3723 = vadd.f32 %v3537, %v3693
    %v3724 = vadd.f32 %v3538, %v3695
    %v3725 = vadd.f32 %v3539, %v3698
    %v3726 = vadd.f32 %v3540, %v3700
    %v3727 = vadd.f32 %v3541, %v3703
    %v3728 = vadd.f32 %v3542, %v3705
    %v3729 = vadd.f32 %v3543, %v3708
    %v3730 = vadd.f32 %v3544, %v3710
    %v3731 = vadd.f32 %v3545, %v3713
    %v3732 = vadd.f32 %v3546, %v3715
    %s3733 = scalar_lea.vmem %s3, 1
    %v3734 = vld [vmem:[%s3733] sm:$0x1]
    %v3736 = vperm.slane %v3734, 0
    %v3738 = vadd.f32 %v3717, %v3736
    %v3739 = vadd.f32 %v3718, %v3736
    %v3740 = vadd.f32 %v3719, %v3736
    %v3741 = vadd.f32 %v3720, %v3736
    %v3742 = vadd.f32 %v3721, %v3736
    %v3743 = vadd.f32 %v3722, %v3736
    %v3744 = vadd.f32 %v3723, %v3736
    %v3745 = vadd.f32 %v3724, %v3736
    %v3746 = vadd.f32 %v3725, %v3736
    %v3747 = vadd.f32 %v3726, %v3736
    %v3748 = vadd.f32 %v3727, %v3736
    %v3749 = vadd.f32 %v3728, %v3736
    %v3750 = vadd.f32 %v3729, %v3736
    %v3751 = vadd.f32 %v3730, %v3736
    %v3752 = vadd.f32 %v3731, %v3736
    %v3753 = vadd.f32 %v3732, %v3736
    %v3754 = vmax.f32 %v3738, 0.0
    %v3755 = vmax.f32 %v3739, 0.0
    %v3756 = vmax.f32 %v3740, 0.0
    %v3757 = vmax.f32 %v3741, 0.0
    %v3758 = vmax.f32 %v3742, 0.0
    %v3759 = vmax.f32 %v3743, 0.0
    %v3760 = vmax.f32 %v3744, 0.0
    %v3761 = vmax.f32 %v3745, 0.0
    %v3762 = vmax.f32 %v3746, 0.0
    %v3763 = vmax.f32 %v3747, 0.0
    %v3764 = vmax.f32 %v3748, 0.0
    %v3765 = vmax.f32 %v3749, 0.0
    %v3766 = vmax.f32 %v3750, 0.0
    %v3767 = vmax.f32 %v3751, 0.0
    %v3768 = vmax.f32 %v3752, 0.0
    %v3769 = vmax.f32 %v3753, 0.0
    %v3770 = vadd.f32 %v3754, %v3755
    %v3771 = vadd.f32 %v3770, %v3756
    %v3772 = vadd.f32 %v3771, %v3757
    %v3773 = vadd.f32 %v3772, %v3758
    %v3774 = vadd.f32 %v3773, %v3759
    %v3775 = vadd.f32 %v3774, %v3760
    %v3776 = vadd.f32 %v3775, %v3761
    %v3777 = vadd.f32 %v3776, %v3762
    %v3778 = vadd.f32 %v3777, %v3763
    %v3779 = vadd.f32 %v3778, %v3764
    %v3780 = vadd.f32 %v3779, %v3765
    %v3781 = vadd.f32 %v3780, %v3766
    %v3782 = vadd.f32 %v3781, %v3767
    %v3783 = vadd.f32 %v3782, %v3768
    %v3784 = vadd.f32 %v3783, %v3769
    %v3785 = vrot.slane %v3784, 4
    %v3786 = vadd.f32 %v3784, %v3785
    %v3787 = vrot.slane %v3786, 2
    %v3788 = vadd.f32 %v3786, %v3787
    %v3789 = vrot.slane %v3788, 1
    %v3790 = vadd.f32 %v3788, %v3789
    %v3791 = vmul.f32 %v3790, %v668
    %v3792 = vmul.f32 %v3754, %v3754
    %v3793 = vmul.f32 %v3755, %v3755
    %v3794 = vmul.f32 %v3756, %v3756
    %v3795 = vmul.f32 %v3757, %v3757
    %v3796 = vmul.f32 %v3758, %v3758
    %v3797 = vmul.f32 %v3759, %v3759
    %v3798 = vmul.f32 %v3760, %v3760
    %v3799 = vmul.f32 %v3761, %v3761
    %v3800 = vmul.f32 %v3762, %v3762
    %v3801 = vmul.f32 %v3763, %v3763
    %v3802 = vmul.f32 %v3764, %v3764
    %v3803 = vmul.f32 %v3765, %v3765
    %v3804 = vmul.f32 %v3766, %v3766
    %v3805 = vmul.f32 %v3767, %v3767
    %v3806 = vmul.f32 %v3768, %v3768
    %v3807 = vmul.f32 %v3769, %v3769
    %v3808 = vadd.f32 %v3792, %v3793
    %v3809 = vadd.f32 %v3808, %v3794
    %v3810 = vadd.f32 %v3809, %v3795
    %v3811 = vadd.f32 %v3810, %v3796
    %v3812 = vadd.f32 %v3811, %v3797
    %v3813 = vadd.f32 %v3812, %v3798
    %v3814 = vadd.f32 %v3813, %v3799
    %v3815 = vadd.f32 %v3814, %v3800
    %v3816 = vadd.f32 %v3815, %v3801
    %v3817 = vadd.f32 %v3816, %v3802
    %v3818 = vadd.f32 %v3817, %v3803
    %v3819 = vadd.f32 %v3818, %v3804
    %v3820 = vadd.f32 %v3819, %v3805
    %v3821 = vadd.f32 %v3820, %v3806
    %v3822 = vadd.f32 %v3821, %v3807
    %v3823 = vrot.slane %v3822, 4
    %v3824 = vadd.f32 %v3822, %v3823
    %v3825 = vrot.slane %v3824, 2
    %v3826 = vadd.f32 %v3824, %v3825
    %v3827 = vrot.slane %v3826, 1
    %v3828 = vadd.f32 %v3826, %v3827
    %v3829 = vmul.f32 %v3828, %v668
    %v3830 = vmul.f32 %v3791, %v3791
    %v3831 = vsub.f32 %v3829, %v3830
    %s3832 = scalar_lea.vmem %s4, 3
    %v3833 = vld [vmem:[%s3832] sm:$0x1]
    %v3834 = vadd.f32 %v3831, 1e-05
    %v3835 = vrsqrt.pop %v3834
    %v3836 = vmul.f32 %v3835, %v3834
    %v3837 = vmul.f32 %v3836, %v3835
    %v3838 = vmul.f32 0.5, %v3837
    %v3839 = vsub.f32 1.5, %v3838
    %v3840 = vmul.f32 %v3835, %v3839
    %vm3841 = vweird.f32 %v3834
    %vm3842 = vweird.f32 %v3835
    %vm3843 = vmor %vm3841, %vm3842
    %v3844 = vsel %vm3843, %v3835, %v3840
    %v3845 = vmul.f32 %v3833, %v3844
    %s3846 = scalar_lea.vmem %s5, 3
    %v3847 = vld [vmem:[%s3846] sm:$0x1]
    %v3848 = vmul.f32 %v3791, %v3845
    %v3849 = vsub.f32 %v3847, %v3848
    %v3851 = vperm.slane %v3845, 0
    %v3853 = vmul.f32 %v3754, %v3851
    %v3854 = vmul.f32 %v3755, %v3851
    %v3855 = vmul.f32 %v3756, %v3851
    %v3856 = vmul.f32 %v3757, %v3851
    %v3857 = vmul.f32 %v3758, %v3851
    %v3858 = vmul.f32 %v3759, %v3851
    %v3859 = vmul.f32 %v3760, %v3851
    %v3860 = vmul.f32 %v3761, %v3851
    %v3861 = vmul.f32 %v3762, %v3851
    %v3862 = vmul.f32 %v3763, %v3851
    %v3863 = vmul.f32 %v3764, %v3851
    %v3864 = vmul.f32 %v3765, %v3851
    %v3865 = vmul.f32 %v3766, %v3851
    %v3866 = vmul.f32 %v3767, %v3851
    %v3867 = vmul.f32 %v3768, %v3851
    %v3868 = vmul.f32 %v3769, %v3851
    %v3870 = vperm.slane %v3849, 0
    %v3872 = vadd.f32 %v3853, %v3870
    %v3873 = vadd.f32 %v3854, %v3870
    %v3874 = vadd.f32 %v3855, %v3870
    %v3875 = vadd.f32 %v3856, %v3870
    %v3876 = vadd.f32 %v3857, %v3870
    %v3877 = vadd.f32 %v3858, %v3870
    %v3878 = vadd.f32 %v3859, %v3870
    %v3879 = vadd.f32 %v3860, %v3870
    %v3880 = vadd.f32 %v3861, %v3870
    %v3881 = vadd.f32 %v3862, %v3870
    %v3882 = vadd.f32 %v3863, %v3870
    %v3883 = vadd.f32 %v3864, %v3870
    %v3884 = vadd.f32 %v3865, %v3870
    %v3885 = vadd.f32 %v3866, %v3870
    %v3886 = vadd.f32 %v3867, %v3870
    %v3887 = vadd.f32 %v3868, %v3870
    %v3888 = vpack.c.bf16 %v3873, %v3872
    %v3889 = vpack.c.bf16 %v3875, %v3874
    %v3890 = vpack.c.bf16 %v3877, %v3876
    %v3891 = vpack.c.bf16 %v3879, %v3878
    %v3892 = vpack.c.bf16 %v3881, %v3880
    %v3893 = vpack.c.bf16 %v3883, %v3882
    %v3894 = vpack.c.bf16 %v3885, %v3884
    %v3895 = vpack.c.bf16 %v3887, %v3886
    %s3896 = scalar_lea.vmem [#allocation3], 1088
    %v3897 = vld [vmem:[%s3896] sm:$0xf]
    %v3898 = vld [vmem:[%s3896 + $0x4] sm:$0xf]
    %v3899 = vld [vmem:[%s3896 + $0x8] sm:$0xf]
    %v3900 = vld [vmem:[%s3896 + $0xc] sm:$0xf]
    %v3901 = vld [vmem:[%s3896 + $0x10] sm:$0xf]
    %v3902 = vld [vmem:[%s3896 + $0x14] sm:$0xf]
    %v3903 = vld [vmem:[%s3896 + $0x18] sm:$0xf]
    %v3904 = vld [vmem:[%s3896 + $0x1c] sm:$0xf]
    %v3905 = vld [vmem:[%s3896 + $0x20] sm:$0xf]
    %v3906 = vld [vmem:[%s3896 + $0x24] sm:$0xf]
    %v3907 = vld [vmem:[%s3896 + $0x28] sm:$0xf]
    %v3908 = vld [vmem:[%s3896 + $0x2c] sm:$0xf]
    %v3909 = vld [vmem:[%s3896 + $0x30] sm:$0xf]
    %v3910 = vld [vmem:[%s3896 + $0x34] sm:$0xf]
    %v3911 = vld [vmem:[%s3896 + $0x38] sm:$0xf]
    %v3912 = vld [vmem:[%s3896 + $0x3c] sm:$0xf]
    %v3913 = vrot.slane %v3872, 6
    %v3914 = vrot.slane %v3873, 6
    %v3915 = vrot.slane %v3874, 6
    %v3916 = vrot.slane %v3875, 6
    %v3917 = vrot.slane %v3876, 6
    %v3918 = vrot.slane %v3877, 6
    %v3919 = vrot.slane %v3878, 6
    %v3920 = vrot.slane %v3879, 6
    %v3921 = vrot.slane %v3880, 6
    %v3922 = vrot.slane %v3881, 6
    %v3923 = vrot.slane %v3882, 6
    %v3924 = vrot.slane %v3883, 6
    %v3925 = vrot.slane %v3884, 6
    %v3926 = vrot.slane %v3885, 6
    %v3927 = vrot.slane %v3886, 6
    %v3928 = vrot.slane %v3887, 6
    %v3929 = vsel %vm805, %v3927, %v3928
    %v3930 = vsel %vm805, %v3926, %v3927
    %v3931 = vsel %vm805, %v3925, %v3926
    %v3932 = vsel %vm805, %v3924, %v3925
    %v3933 = vsel %vm805, %v3923, %v3924
    %v3934 = vsel %vm805, %v3922, %v3923
    %v3935 = vsel %vm805, %v3921, %v3922
    %v3936 = vsel %vm805, %v3920, %v3921
    %v3937 = vsel %vm805, %v3919, %v3920
    %v3938 = vsel %vm805, %v3918, %v3919
    %v3939 = vsel %vm805, %v3917, %v3918
    %v3940 = vsel %vm805, %v3916, %v3917
    %v3941 = vsel %vm805, %v3915, %v3916
    %v3942 = vsel %vm805, %v3914, %v3915
    %v3943 = vsel %vm805, %v3913, %v3914
    %v3944 = vsel %vm805, %v3928, %v3913
    %v3945 = vsel %vm838, %v3944, 0.0
    %v3946 = vsel %vm839, %v3943, 0.0
    %v3947 = vsel %vm840, %v3942, 0.0
    %v3948 = vsel %vm841, %v3941, 0.0
    %v3949 = vsel %vm842, %v3940, 0.0
    %v3950 = vsel %vm843, %v3939, 0.0
    %v3951 = vsel %vm844, %v3938, 0.0
    %v3952 = vsel %vm845, %v3937, 0.0
    %v3953 = vsel %vm846, %v3936, 0.0
    %v3954 = vsel %vm847, %v3935, 0.0
    %v3955 = vsel %vm848, %v3934, 0.0
    %v3956 = vsel %vm849, %v3933, 0.0
    %v3957 = vsel %vm850, %v3932, 0.0
    %v3958 = vsel %vm851, %v3931, 0.0
    %v3959 = vsel %vm852, %v3930, 0.0
    %v3960 = vsel %vm853, %v3929, 0.0
    %v3961 = vpack.c.bf16 %v3946, %v3945
    %v3962 = vpack.c.bf16 %v3948, %v3947
    %v3963 = vpack.c.bf16 %v3950, %v3949
    %v3964 = vpack.c.bf16 %v3952, %v3951
    %v3965 = vpack.c.bf16 %v3954, %v3953
    %v3966 = vpack.c.bf16 %v3956, %v3955
    %v3967 = vpack.c.bf16 %v3958, %v3957
    %v3968 = vpack.c.bf16 %v3960, %v3959
    %s3969 = scalar_lea.vmem [#allocation3], 960
    %v3970 = vld [vmem:[%s3969] sm:$0xf]
    %v3971 = vld [vmem:[%s3969 + $0x4] sm:$0xf]
    %v3972 = vld [vmem:[%s3969 + $0x8] sm:$0xf]
    %v3973 = vld [vmem:[%s3969 + $0xc] sm:$0xf]
    %v3974 = vld [vmem:[%s3969 + $0x10] sm:$0xf]
    %v3975 = vld [vmem:[%s3969 + $0x14] sm:$0xf]
    %v3976 = vld [vmem:[%s3969 + $0x18] sm:$0xf]
    %v3977 = vld [vmem:[%s3969 + $0x1c] sm:$0xf]
    %v3978 = vld [vmem:[%s3969 + $0x20] sm:$0xf]
    %v3979 = vld [vmem:[%s3969 + $0x24] sm:$0xf]
    %v3980 = vld [vmem:[%s3969 + $0x28] sm:$0xf]
    %v3981 = vld [vmem:[%s3969 + $0x2c] sm:$0xf]
    %v3982 = vld [vmem:[%s3969 + $0x30] sm:$0xf]
    %v3983 = vld [vmem:[%s3969 + $0x34] sm:$0xf]
    %v3984 = vld [vmem:[%s3969 + $0x38] sm:$0xf]
    %v3985 = vld [vmem:[%s3969 + $0x3c] sm:$0xf]
    %v4002 = vunpack.c.l.b16 %v3970
    %v4003 = vunpack.c.l.b16 %v3971
    %v4004 = vunpack.c.l.b16 %v3972
    %v4005 = vunpack.c.l.b16 %v3973
    %v4006 = vunpack.c.l.b16 %v3974
    %v4007 = vunpack.c.l.b16 %v3975
    %v4008 = vunpack.c.l.b16 %v3976
    %v4009 = vunpack.c.l.b16 %v3977
    %v4010 = vunpack.c.l.b16 %v3978
    %v4011 = vunpack.c.l.b16 %v3979
    %v4012 = vunpack.c.l.b16 %v3980
    %v4013 = vunpack.c.l.b16 %v3981
    %v4014 = vunpack.c.l.b16 %v3982
    %v4015 = vunpack.c.l.b16 %v3983
    %v4016 = vunpack.c.l.b16 %v3984
    %v4017 = vunpack.c.l.b16 %v3985
    %v4018 = vpack.c.b16 %v4003, %v4002
    %v4019 = vpack.c.b16 %v4005, %v4004
    %v4020 = vpack.c.b16 %v4007, %v4006
    %v4021 = vpack.c.b16 %v4009, %v4008
    %v4022 = vpack.c.b16 %v4011, %v4010
    %v4023 = vpack.c.b16 %v4013, %v4012
    %v4024 = vpack.c.b16 %v4015, %v4014
    %v4025 = vpack.c.b16 %v4017, %v4016
    %4034 = vmatpush.bf16.msra.mxu0 %v4025
    %4035 = vmatpush.bf16.msra.mxu0 %v4024
    %4036 = vmatpush.bf16.msra.mxu0 %v4023
    %4037 = vmatpush.bf16.msra.mxu0 %v4022
    %4038 = vmatpush.bf16.msra.mxu0 %v4021
    %4039 = vmatpush.bf16.msra.mxu0 %v4020
    %4040 = vmatpush.bf16.msra.mxu0 %v4019
    %4041 = vmatpush.bf16.msra.mxu0 %v4018
    %4042 = vmatmul.bf16.gmra.mxu0 %v3961
    %v4043 = vpop.f32.mrf.mxu0
    %v4044 = vadd.f32 0.0, %v4043
    %v4045 = vpop.f32.mrf.mxu0
    %v4046 = vadd.f32 0.0, %v4045
    %4047 = vmatmul.bf16.gmra.mxu0 %v3962
    %v4048 = vpop.f32.mrf.mxu0
    %v4049 = vadd.f32 0.0, %v4048
    %v4050 = vpop.f32.mrf.mxu0
    %v4051 = vadd.f32 0.0, %v4050
    %4052 = vmatmul.bf16.gmra.mxu0 %v3963
    %v4053 = vpop.f32.mrf.mxu0
    %v4054 = vadd.f32 0.0, %v4053
    %v4055 = vpop.f32.mrf.mxu0
    %v4056 = vadd.f32 0.0, %v4055
    %4057 = vmatmul.bf16.gmra.mxu0 %v3964
    %v4058 = vpop.f32.mrf.mxu0
    %v4059 = vadd.f32 0.0, %v4058
    %v4060 = vpop.f32.mrf.mxu0
    %v4061 = vadd.f32 0.0, %v4060
    %4062 = vmatmul.bf16.gmra.mxu0 %v3965
    %v4063 = vpop.f32.mrf.mxu0
    %v4064 = vadd.f32 0.0, %v4063
    %v4065 = vpop.f32.mrf.mxu0
    %v4066 = vadd.f32 0.0, %v4065
    %4067 = vmatmul.bf16.gmra.mxu0 %v3966
    %v4068 = vpop.f32.mrf.mxu0
    %v4069 = vadd.f32 0.0, %v4068
    %v4070 = vpop.f32.mrf.mxu0
    %v4071 = vadd.f32 0.0, %v4070
    %4072 = vmatmul.bf16.gmra.mxu0 %v3967
    %v4073 = vpop.f32.mrf.mxu0
    %v4074 = vadd.f32 0.0, %v4073
    %v4075 = vpop.f32.mrf.mxu0
    %v4076 = vadd.f32 0.0, %v4075
    %4077 = vmatmul.bf16.gmra.mxu0 %v3968
    %v4078 = vpop.f32.mrf.mxu0
    %v4079 = vadd.f32 0.0, %v4078
    %v4080 = vpop.f32.mrf.mxu0
    %v4081 = vadd.f32 0.0, %v4080
    %4082 = vdwg.mxu0
    %v4099 = vunpack.c.l.b16 %v3897
    %v4100 = vunpack.c.l.b16 %v3898
    %v4101 = vunpack.c.l.b16 %v3899
    %v4102 = vunpack.c.l.b16 %v3900
    %v4103 = vunpack.c.l.b16 %v3901
    %v4104 = vunpack.c.l.b16 %v3902
    %v4105 = vunpack.c.l.b16 %v3903
    %v4106 = vunpack.c.l.b16 %v3904
    %v4107 = vunpack.c.l.b16 %v3905
    %v4108 = vunpack.c.l.b16 %v3906
    %v4109 = vunpack.c.l.b16 %v3907
    %v4110 = vunpack.c.l.b16 %v3908
    %v4111 = vunpack.c.l.b16 %v3909
    %v4112 = vunpack.c.l.b16 %v3910
    %v4113 = vunpack.c.l.b16 %v3911
    %v4114 = vunpack.c.l.b16 %v3912
    %v4115 = vpack.c.b16 %v4100, %v4099
    %v4116 = vpack.c.b16 %v4102, %v4101
    %v4117 = vpack.c.b16 %v4104, %v4103
    %v4118 = vpack.c.b16 %v4106, %v4105
    %v4119 = vpack.c.b16 %v4108, %v4107
    %v4120 = vpack.c.b16 %v4110, %v4109
    %v4121 = vpack.c.b16 %v4112, %v4111
    %v4122 = vpack.c.b16 %v4114, %v4113
    %4131 = vmatpush.bf16.msra.mxu0 %v4122
    %4132 = vmatpush.bf16.msra.mxu0 %v4121
    %4133 = vmatpush.bf16.msra.mxu0 %v4120
    %4134 = vmatpush.bf16.msra.mxu0 %v4119
    %4135 = vmatpush.bf16.msra.mxu0 %v4118
    %4136 = vmatpush.bf16.msra.mxu0 %v4117
    %4137 = vmatpush.bf16.msra.mxu0 %v4116
    %4138 = vmatpush.bf16.msra.mxu0 %v4115
    %4139 = vmatmul.bf16.gmra.mxu0 %v3888
    %v4140 = vpop.f32.mrf.mxu0
    %v4141 = vadd.f32 %v4044, %v4140
    %v4142 = vpop.f32.mrf.mxu0
    %v4143 = vadd.f32 %v4046, %v4142
    %4144 = vmatmul.bf16.gmra.mxu0 %v3889
    %v4145 = vpop.f32.mrf.mxu0
    %v4146 = vadd.f32 %v4049, %v4145
    %v4147 = vpop.f32.mrf.mxu0
    %v4148 = vadd.f32 %v4051, %v4147
    %4149 = vmatmul.bf16.gmra.mxu0 %v3890
    %v4150 = vpop.f32.mrf.mxu0
    %v4151 = vadd.f32 %v4054, %v4150
    %v4152 = vpop.f32.mrf.mxu0
    %v4153 = vadd.f32 %v4056, %v4152
    %4154 = vmatmul.bf16.gmra.mxu0 %v3891
    %v4155 = vpop.f32.mrf.mxu0
    %v4156 = vadd.f32 %v4059, %v4155
    %v4157 = vpop.f32.mrf.mxu0
    %v4158 = vadd.f32 %v4061, %v4157
    %4159 = vmatmul.bf16.gmra.mxu0 %v3892
    %v4160 = vpop.f32.mrf.mxu0
    %v4161 = vadd.f32 %v4064, %v4160
    %v4162 = vpop.f32.mrf.mxu0
    %v4163 = vadd.f32 %v4066, %v4162
    %4164 = vmatmul.bf16.gmra.mxu0 %v3893
    %v4165 = vpop.f32.mrf.mxu0
    %v4166 = vadd.f32 %v4069, %v4165
    %v4167 = vpop.f32.mrf.mxu0
    %v4168 = vadd.f32 %v4071, %v4167
    %4169 = vmatmul.bf16.gmra.mxu0 %v3894
    %v4170 = vpop.f32.mrf.mxu0
    %v4171 = vadd.f32 %v4074, %v4170
    %v4172 = vpop.f32.mrf.mxu0
    %v4173 = vadd.f32 %v4076, %v4172
    %4174 = vmatmul.bf16.gmra.mxu0 %v3895
    %v4175 = vpop.f32.mrf.mxu0
    %v4176 = vadd.f32 %v4079, %v4175
    %v4177 = vpop.f32.mrf.mxu0
    %v4178 = vadd.f32 %v4081, %v4177
    %4179 = vdwg.mxu0
    %v4180 = vrot.slane %v3872, 7
    %v4181 = vrot.slane %v3873, 7
    %v4182 = vrot.slane %v3874, 7
    %v4183 = vrot.slane %v3875, 7
    %v4184 = vrot.slane %v3876, 7
    %v4185 = vrot.slane %v3877, 7
    %v4186 = vrot.slane %v3878, 7
    %v4187 = vrot.slane %v3879, 7
    %v4188 = vrot.slane %v3880, 7
    %v4189 = vrot.slane %v3881, 7
    %v4190 = vrot.slane %v3882, 7
    %v4191 = vrot.slane %v3883, 7
    %v4192 = vrot.slane %v3884, 7
    %v4193 = vrot.slane %v3885, 7
    %v4194 = vrot.slane %v3886, 7
    %v4195 = vrot.slane %v3887, 7
    %v4196 = vsel %vm1104, %v4194, %v4195
    %v4197 = vsel %vm1104, %v4193, %v4194
    %v4198 = vsel %vm1104, %v4192, %v4193
    %v4199 = vsel %vm1104, %v4191, %v4192
    %v4200 = vsel %vm1104, %v4190, %v4191
    %v4201 = vsel %vm1104, %v4189, %v4190
    %v4202 = vsel %vm1104, %v4188, %v4189
    %v4203 = vsel %vm1104, %v4187, %v4188
    %v4204 = vsel %vm1104, %v4186, %v4187
    %v4205 = vsel %vm1104, %v4185, %v4186
    %v4206 = vsel %vm1104, %v4184, %v4185
    %v4207 = vsel %vm1104, %v4183, %v4184
    %v4208 = vsel %vm1104, %v4182, %v4183
    %v4209 = vsel %vm1104, %v4181, %v4182
    %v4210 = vsel %vm1104, %v4180, %v4181
    %v4211 = vsel %vm1104, %v4195, %v4180
    %v4212 = vsel %vm1137, %v4211, 0.0
    %v4213 = vsel %vm1138, %v4210, 0.0
    %v4214 = vsel %vm1139, %v4209, 0.0
    %v4215 = vsel %vm1140, %v4208, 0.0
    %v4216 = vsel %vm1141, %v4207, 0.0
    %v4217 = vsel %vm1142, %v4206, 0.0
    %v4218 = vsel %vm1143, %v4205, 0.0
    %v4219 = vsel %vm1144, %v4204, 0.0
    %v4220 = vsel %vm1145, %v4203, 0.0
    %v4221 = vsel %vm1146, %v4202, 0.0
    %v4222 = vsel %vm1147, %v4201, 0.0
    %v4223 = vsel %vm1148, %v4200, 0.0
    %v4224 = vsel %vm1149, %v4199, 0.0
    %v4225 = vsel %vm1150, %v4198, 0.0
    %v4226 = vsel %vm1151, %v4197, 0.0
    %v4227 = vsel %vm1152, %v4196, 0.0
    %v4228 = vpack.c.bf16 %v4213, %v4212
    %v4229 = vpack.c.bf16 %v4215, %v4214
    %v4230 = vpack.c.bf16 %v4217, %v4216
    %v4231 = vpack.c.bf16 %v4219, %v4218
    %v4232 = vpack.c.bf16 %v4221, %v4220
    %v4233 = vpack.c.bf16 %v4223, %v4222
    %v4234 = vpack.c.bf16 %v4225, %v4224
    %v4235 = vpack.c.bf16 %v4227, %v4226
    %s4236 = scalar_lea.vmem [#allocation3], 1024
    %v4237 = vld [vmem:[%s4236] sm:$0xf]
    %v4238 = vld [vmem:[%s4236 + $0x4] sm:$0xf]
    %v4239 = vld [vmem:[%s4236 + $0x8] sm:$0xf]
    %v4240 = vld [vmem:[%s4236 + $0xc] sm:$0xf]
    %v4241 = vld [vmem:[%s4236 + $0x10] sm:$0xf]
    %v4242 = vld [vmem:[%s4236 + $0x14] sm:$0xf]
    %v4243 = vld [vmem:[%s4236 + $0x18] sm:$0xf]
    %v4244 = vld [vmem:[%s4236 + $0x1c] sm:$0xf]
    %v4245 = vld [vmem:[%s4236 + $0x20] sm:$0xf]
    %v4246 = vld [vmem:[%s4236 + $0x24] sm:$0xf]
    %v4247 = vld [vmem:[%s4236 + $0x28] sm:$0xf]
    %v4248 = vld [vmem:[%s4236 + $0x2c] sm:$0xf]
    %v4249 = vld [vmem:[%s4236 + $0x30] sm:$0xf]
    %v4250 = vld [vmem:[%s4236 + $0x34] sm:$0xf]
    %v4251 = vld [vmem:[%s4236 + $0x38] sm:$0xf]
    %v4252 = vld [vmem:[%s4236 + $0x3c] sm:$0xf]
    %v4269 = vunpack.c.l.b16 %v4237
    %v4270 = vunpack.c.l.b16 %v4238
    %v4271 = vunpack.c.l.b16 %v4239
    %v4272 = vunpack.c.l.b16 %v4240
    %v4273 = vunpack.c.l.b16 %v4241
    %v4274 = vunpack.c.l.b16 %v4242
    %v4275 = vunpack.c.l.b16 %v4243
    %v4276 = vunpack.c.l.b16 %v4244
    %v4277 = vunpack.c.l.b16 %v4245
    %v4278 = vunpack.c.l.b16 %v4246
    %v4279 = vunpack.c.l.b16 %v4247
    %v4280 = vunpack.c.l.b16 %v4248
    %v4281 = vunpack.c.l.b16 %v4249
    %v4282 = vunpack.c.l.b16 %v4250
    %v4283 = vunpack.c.l.b16 %v4251
    %v4284 = vunpack.c.l.b16 %v4252
    %v4285 = vpack.c.b16 %v4270, %v4269
    %v4286 = vpack.c.b16 %v4272, %v4271
    %v4287 = vpack.c.b16 %v4274, %v4273
    %v4288 = vpack.c.b16 %v4276, %v4275
    %v4289 = vpack.c.b16 %v4278, %v4277
    %v4290 = vpack.c.b16 %v4280, %v4279
    %v4291 = vpack.c.b16 %v4282, %v4281
    %v4292 = vpack.c.b16 %v4284, %v4283
    %4301 = vmatpush.bf16.msra.mxu0 %v4292
    %4302 = vmatpush.bf16.msra.mxu0 %v4291
    %4303 = vmatpush.bf16.msra.mxu0 %v4290
    %4304 = vmatpush.bf16.msra.mxu0 %v4289
    %4305 = vmatpush.bf16.msra.mxu0 %v4288
    %4306 = vmatpush.bf16.msra.mxu0 %v4287
    %4307 = vmatpush.bf16.msra.mxu0 %v4286
    %4308 = vmatpush.bf16.msra.mxu0 %v4285
    %4309 = vmatmul.bf16.gmra.mxu0 %v4228
    %v4310 = vpop.f32.mrf.mxu0
    %v4311 = vadd.f32 0.0, %v4310
    %v4312 = vpop.f32.mrf.mxu0
    %v4313 = vadd.f32 0.0, %v4312
    %4314 = vmatmul.bf16.gmra.mxu0 %v4229
    %v4315 = vpop.f32.mrf.mxu0
    %v4316 = vadd.f32 0.0, %v4315
    %v4317 = vpop.f32.mrf.mxu0
    %v4318 = vadd.f32 0.0, %v4317
    %4319 = vmatmul.bf16.gmra.mxu0 %v4230
    %v4320 = vpop.f32.mrf.mxu0
    %v4321 = vadd.f32 0.0, %v4320
    %v4322 = vpop.f32.mrf.mxu0
    %v4323 = vadd.f32 0.0, %v4322
    %4324 = vmatmul.bf16.gmra.mxu0 %v4231
    %v4325 = vpop.f32.mrf.mxu0
    %v4326 = vadd.f32 0.0, %v4325
    %v4327 = vpop.f32.mrf.mxu0
    %v4328 = vadd.f32 0.0, %v4327
    %4329 = vmatmul.bf16.gmra.mxu0 %v4232
    %v4330 = vpop.f32.mrf.mxu0
    %v4331 = vadd.f32 0.0, %v4330
    %v4332 = vpop.f32.mrf.mxu0
    %v4333 = vadd.f32 0.0, %v4332
    %4334 = vmatmul.bf16.gmra.mxu0 %v4233
    %v4335 = vpop.f32.mrf.mxu0
    %v4336 = vadd.f32 0.0, %v4335
    %v4337 = vpop.f32.mrf.mxu0
    %v4338 = vadd.f32 0.0, %v4337
    %4339 = vmatmul.bf16.gmra.mxu0 %v4234
    %v4340 = vpop.f32.mrf.mxu0
    %v4341 = vadd.f32 0.0, %v4340
    %v4342 = vpop.f32.mrf.mxu0
    %v4343 = vadd.f32 0.0, %v4342
    %4344 = vmatmul.bf16.gmra.mxu0 %v4235
    %v4345 = vpop.f32.mrf.mxu0
    %v4346 = vadd.f32 0.0, %v4345
    %v4347 = vpop.f32.mrf.mxu0
    %v4348 = vadd.f32 0.0, %v4347
    %4349 = vdwg.mxu0
    %v4350 = vadd.f32 %v4141, %v4311
    %v4351 = vadd.f32 %v4143, %v4313
    %v4352 = vadd.f32 %v4146, %v4316
    %v4353 = vadd.f32 %v4148, %v4318
    %v4354 = vadd.f32 %v4151, %v4321
    %v4355 = vadd.f32 %v4153, %v4323
    %v4356 = vadd.f32 %v4156, %v4326
    %v4357 = vadd.f32 %v4158, %v4328
    %v4358 = vadd.f32 %v4161, %v4331
    %v4359 = vadd.f32 %v4163, %v4333
    %v4360 = vadd.f32 %v4166, %v4336
    %v4361 = vadd.f32 %v4168, %v4338
    %v4362 = vadd.f32 %v4171, %v4341
    %v4363 = vadd.f32 %v4173, %v4343
    %v4364 = vadd.f32 %v4176, %v4346
    %v4365 = vadd.f32 %v4178, %v4348
    %v4366 = vrot.slane %v3872, 1
    %v4367 = vrot.slane %v3873, 1
    %v4368 = vrot.slane %v3874, 1
    %v4369 = vrot.slane %v3875, 1
    %v4370 = vrot.slane %v3876, 1
    %v4371 = vrot.slane %v3877, 1
    %v4372 = vrot.slane %v3878, 1
    %v4373 = vrot.slane %v3879, 1
    %v4374 = vrot.slane %v3880, 1
    %v4375 = vrot.slane %v3881, 1
    %v4376 = vrot.slane %v3882, 1
    %v4377 = vrot.slane %v3883, 1
    %v4378 = vrot.slane %v3884, 1
    %v4379 = vrot.slane %v3885, 1
    %v4380 = vrot.slane %v3886, 1
    %v4381 = vrot.slane %v3887, 1
    %v4382 = vsel %vm1323, %v4380, %v4381
    %v4383 = vsel %vm1323, %v4379, %v4380
    %v4384 = vsel %vm1323, %v4378, %v4379
    %v4385 = vsel %vm1323, %v4377, %v4378
    %v4386 = vsel %vm1323, %v4376, %v4377
    %v4387 = vsel %vm1323, %v4375, %v4376
    %v4388 = vsel %vm1323, %v4374, %v4375
    %v4389 = vsel %vm1323, %v4373, %v4374
    %v4390 = vsel %vm1323, %v4372, %v4373
    %v4391 = vsel %vm1323, %v4371, %v4372
    %v4392 = vsel %vm1323, %v4370, %v4371
    %v4393 = vsel %vm1323, %v4369, %v4370
    %v4394 = vsel %vm1323, %v4368, %v4369
    %v4395 = vsel %vm1323, %v4367, %v4368
    %v4396 = vsel %vm1323, %v4366, %v4367
    %v4397 = vsel %vm1323, %v4381, %v4366
    %v4398 = vsel %vm1356, %v4396, 0.0
    %v4399 = vsel %vm1357, %v4395, 0.0
    %v4400 = vsel %vm1358, %v4394, 0.0
    %v4401 = vsel %vm1359, %v4393, 0.0
    %v4402 = vsel %vm1360, %v4392, 0.0
    %v4403 = vsel %vm1361, %v4391, 0.0
    %v4404 = vsel %vm1362, %v4390, 0.0
    %v4405 = vsel %vm1363, %v4389, 0.0
    %v4406 = vsel %vm1364, %v4388, 0.0
    %v4407 = vsel %vm1365, %v4387, 0.0
    %v4408 = vsel %vm1366, %v4386, 0.0
    %v4409 = vsel %vm1367, %v4385, 0.0
    %v4410 = vsel %vm1368, %v4384, 0.0
    %v4411 = vsel %vm1369, %v4383, 0.0
    %v4412 = vsel %vm1370, %v4382, 0.0
    %v4413 = vsel %vm1371, %v4397, 0.0
    %v4414 = vpack.c.bf16 %v4399, %v4398
    %v4415 = vpack.c.bf16 %v4401, %v4400
    %v4416 = vpack.c.bf16 %v4403, %v4402
    %v4417 = vpack.c.bf16 %v4405, %v4404
    %v4418 = vpack.c.bf16 %v4407, %v4406
    %v4419 = vpack.c.bf16 %v4409, %v4408
    %v4420 = vpack.c.bf16 %v4411, %v4410
    %v4421 = vpack.c.bf16 %v4413, %v4412
    %s4422 = scalar_lea.vmem [#allocation3], 1152
    %v4423 = vld [vmem:[%s4422] sm:$0xf]
    %v4424 = vld [vmem:[%s4422 + $0x4] sm:$0xf]
    %v4425 = vld [vmem:[%s4422 + $0x8] sm:$0xf]
    %v4426 = vld [vmem:[%s4422 + $0xc] sm:$0xf]
    %v4427 = vld [vmem:[%s4422 + $0x10] sm:$0xf]
    %v4428 = vld [vmem:[%s4422 + $0x14] sm:$0xf]
    %v4429 = vld [vmem:[%s4422 + $0x18] sm:$0xf]
    %v4430 = vld [vmem:[%s4422 + $0x1c] sm:$0xf]
    %v4431 = vld [vmem:[%s4422 + $0x20] sm:$0xf]
    %v4432 = vld [vmem:[%s4422 + $0x24] sm:$0xf]
    %v4433 = vld [vmem:[%s4422 + $0x28] sm:$0xf]
    %v4434 = vld [vmem:[%s4422 + $0x2c] sm:$0xf]
    %v4435 = vld [vmem:[%s4422 + $0x30] sm:$0xf]
    %v4436 = vld [vmem:[%s4422 + $0x34] sm:$0xf]
    %v4437 = vld [vmem:[%s4422 + $0x38] sm:$0xf]
    %v4438 = vld [vmem:[%s4422 + $0x3c] sm:$0xf]
    %v4455 = vunpack.c.l.b16 %v4423
    %v4456 = vunpack.c.l.b16 %v4424
    %v4457 = vunpack.c.l.b16 %v4425
    %v4458 = vunpack.c.l.b16 %v4426
    %v4459 = vunpack.c.l.b16 %v4427
    %v4460 = vunpack.c.l.b16 %v4428
    %v4461 = vunpack.c.l.b16 %v4429
    %v4462 = vunpack.c.l.b16 %v4430
    %v4463 = vunpack.c.l.b16 %v4431
    %v4464 = vunpack.c.l.b16 %v4432
    %v4465 = vunpack.c.l.b16 %v4433
    %v4466 = vunpack.c.l.b16 %v4434
    %v4467 = vunpack.c.l.b16 %v4435
    %v4468 = vunpack.c.l.b16 %v4436
    %v4469 = vunpack.c.l.b16 %v4437
    %v4470 = vunpack.c.l.b16 %v4438
    %v4471 = vpack.c.b16 %v4456, %v4455
    %v4472 = vpack.c.b16 %v4458, %v4457
    %v4473 = vpack.c.b16 %v4460, %v4459
    %v4474 = vpack.c.b16 %v4462, %v4461
    %v4475 = vpack.c.b16 %v4464, %v4463
    %v4476 = vpack.c.b16 %v4466, %v4465
    %v4477 = vpack.c.b16 %v4468, %v4467
    %v4478 = vpack.c.b16 %v4470, %v4469
    %4487 = vmatpush.bf16.msra.mxu0 %v4478
    %4488 = vmatpush.bf16.msra.mxu0 %v4477
    %4489 = vmatpush.bf16.msra.mxu0 %v4476
    %4490 = vmatpush.bf16.msra.mxu0 %v4475
    %4491 = vmatpush.bf16.msra.mxu0 %v4474
    %4492 = vmatpush.bf16.msra.mxu0 %v4473
    %4493 = vmatpush.bf16.msra.mxu0 %v4472
    %4494 = vmatpush.bf16.msra.mxu0 %v4471
    %4495 = vmatmul.bf16.gmra.mxu0 %v4414
    %v4496 = vpop.f32.mrf.mxu0
    %v4497 = vadd.f32 0.0, %v4496
    %v4498 = vpop.f32.mrf.mxu0
    %v4499 = vadd.f32 0.0, %v4498
    %4500 = vmatmul.bf16.gmra.mxu0 %v4415
    %v4501 = vpop.f32.mrf.mxu0
    %v4502 = vadd.f32 0.0, %v4501
    %v4503 = vpop.f32.mrf.mxu0
    %v4504 = vadd.f32 0.0, %v4503
    %4505 = vmatmul.bf16.gmra.mxu0 %v4416
    %v4506 = vpop.f32.mrf.mxu0
    %v4507 = vadd.f32 0.0, %v4506
    %v4508 = vpop.f32.mrf.mxu0
    %v4509 = vadd.f32 0.0, %v4508
    %4510 = vmatmul.bf16.gmra.mxu0 %v4417
    %v4511 = vpop.f32.mrf.mxu0
    %v4512 = vadd.f32 0.0, %v4511
    %v4513 = vpop.f32.mrf.mxu0
    %v4514 = vadd.f32 0.0, %v4513
    %4515 = vmatmul.bf16.gmra.mxu0 %v4418
    %v4516 = vpop.f32.mrf.mxu0
    %v4517 = vadd.f32 0.0, %v4516
    %v4518 = vpop.f32.mrf.mxu0
    %v4519 = vadd.f32 0.0, %v4518
    %4520 = vmatmul.bf16.gmra.mxu0 %v4419
    %v4521 = vpop.f32.mrf.mxu0
    %v4522 = vadd.f32 0.0, %v4521
    %v4523 = vpop.f32.mrf.mxu0
    %v4524 = vadd.f32 0.0, %v4523
    %4525 = vmatmul.bf16.gmra.mxu0 %v4420
    %v4526 = vpop.f32.mrf.mxu0
    %v4527 = vadd.f32 0.0, %v4526
    %v4528 = vpop.f32.mrf.mxu0
    %v4529 = vadd.f32 0.0, %v4528
    %4530 = vmatmul.bf16.gmra.mxu0 %v4421
    %v4531 = vpop.f32.mrf.mxu0
    %v4532 = vadd.f32 0.0, %v4531
    %v4533 = vpop.f32.mrf.mxu0
    %v4534 = vadd.f32 0.0, %v4533
    %4535 = vdwg.mxu0
    %v4536 = vadd.f32 %v4350, %v4497
    %v4537 = vadd.f32 %v4351, %v4499
    %v4538 = vadd.f32 %v4352, %v4502
    %v4539 = vadd.f32 %v4353, %v4504
    %v4540 = vadd.f32 %v4354, %v4507
    %v4541 = vadd.f32 %v4355, %v4509
    %v4542 = vadd.f32 %v4356, %v4512
    %v4543 = vadd.f32 %v4357, %v4514
    %v4544 = vadd.f32 %v4358, %v4517
    %v4545 = vadd.f32 %v4359, %v4519
    %v4546 = vadd.f32 %v4360, %v4522
    %v4547 = vadd.f32 %v4361, %v4524
    %v4548 = vadd.f32 %v4362, %v4527
    %v4549 = vadd.f32 %v4363, %v4529
    %v4550 = vadd.f32 %v4364, %v4532
    %v4551 = vadd.f32 %v4365, %v4534
    %v4552 = vrot.slane %v3872, 2
    %v4553 = vrot.slane %v3873, 2
    %v4554 = vrot.slane %v3874, 2
    %v4555 = vrot.slane %v3875, 2
    %v4556 = vrot.slane %v3876, 2
    %v4557 = vrot.slane %v3877, 2
    %v4558 = vrot.slane %v3878, 2
    %v4559 = vrot.slane %v3879, 2
    %v4560 = vrot.slane %v3880, 2
    %v4561 = vrot.slane %v3881, 2
    %v4562 = vrot.slane %v3882, 2
    %v4563 = vrot.slane %v3883, 2
    %v4564 = vrot.slane %v3884, 2
    %v4565 = vrot.slane %v3885, 2
    %v4566 = vrot.slane %v3886, 2
    %v4567 = vrot.slane %v3887, 2
    %v4568 = vsel %vm1542, %v4566, %v4567
    %v4569 = vsel %vm1542, %v4565, %v4566
    %v4570 = vsel %vm1542, %v4564, %v4565
    %v4571 = vsel %vm1542, %v4563, %v4564
    %v4572 = vsel %vm1542, %v4562, %v4563
    %v4573 = vsel %vm1542, %v4561, %v4562
    %v4574 = vsel %vm1542, %v4560, %v4561
    %v4575 = vsel %vm1542, %v4559, %v4560
    %v4576 = vsel %vm1542, %v4558, %v4559
    %v4577 = vsel %vm1542, %v4557, %v4558
    %v4578 = vsel %vm1542, %v4556, %v4557
    %v4579 = vsel %vm1542, %v4555, %v4556
    %v4580 = vsel %vm1542, %v4554, %v4555
    %v4581 = vsel %vm1542, %v4553, %v4554
    %v4582 = vsel %vm1542, %v4552, %v4553
    %v4583 = vsel %vm1542, %v4567, %v4552
    %v4584 = vsel %vm1575, %v4582, 0.0
    %v4585 = vsel %vm1576, %v4581, 0.0
    %v4586 = vsel %vm1577, %v4580, 0.0
    %v4587 = vsel %vm1578, %v4579, 0.0
    %v4588 = vsel %vm1579, %v4578, 0.0
    %v4589 = vsel %vm1580, %v4577, 0.0
    %v4590 = vsel %vm1581, %v4576, 0.0
    %v4591 = vsel %vm1582, %v4575, 0.0
    %v4592 = vsel %vm1583, %v4574, 0.0
    %v4593 = vsel %vm1584, %v4573, 0.0
    %v4594 = vsel %vm1585, %v4572, 0.0
    %v4595 = vsel %vm1586, %v4571, 0.0
    %v4596 = vsel %vm1587, %v4570, 0.0
    %v4597 = vsel %vm1588, %v4569, 0.0
    %v4598 = vsel %vm1589, %v4568, 0.0
    %v4599 = vsel %vm1590, %v4583, 0.0
    %v4600 = vpack.c.bf16 %v4585, %v4584
    %v4601 = vpack.c.bf16 %v4587, %v4586
    %v4602 = vpack.c.bf16 %v4589, %v4588
    %v4603 = vpack.c.bf16 %v4591, %v4590
    %v4604 = vpack.c.bf16 %v4593, %v4592
    %v4605 = vpack.c.bf16 %v4595, %v4594
    %v4606 = vpack.c.bf16 %v4597, %v4596
    %v4607 = vpack.c.bf16 %v4599, %v4598
    %s4608 = scalar_lea.vmem [#allocation3], 1216
    %v4609 = vld [vmem:[%s4608] sm:$0xf]
    %v4610 = vld [vmem:[%s4608 + $0x4] sm:$0xf]
    %v4611 = vld [vmem:[%s4608 + $0x8] sm:$0xf]
    %v4612 = vld [vmem:[%s4608 + $0xc] sm:$0xf]
    %v4613 = vld [vmem:[%s4608 + $0x10] sm:$0xf]
    %v4614 = vld [vmem:[%s4608 + $0x14] sm:$0xf]
    %v4615 = vld [vmem:[%s4608 + $0x18] sm:$0xf]
    %v4616 = vld [vmem:[%s4608 + $0x1c] sm:$0xf]
    %v4617 = vld [vmem:[%s4608 + $0x20] sm:$0xf]
    %v4618 = vld [vmem:[%s4608 + $0x24] sm:$0xf]
    %v4619 = vld [vmem:[%s4608 + $0x28] sm:$0xf]
    %v4620 = vld [vmem:[%s4608 + $0x2c] sm:$0xf]
    %v4621 = vld [vmem:[%s4608 + $0x30] sm:$0xf]
    %v4622 = vld [vmem:[%s4608 + $0x34] sm:$0xf]
    %v4623 = vld [vmem:[%s4608 + $0x38] sm:$0xf]
    %v4624 = vld [vmem:[%s4608 + $0x3c] sm:$0xf]
    %v4641 = vunpack.c.l.b16 %v4609
    %v4642 = vunpack.c.l.b16 %v4610
    %v4643 = vunpack.c.l.b16 %v4611
    %v4644 = vunpack.c.l.b16 %v4612
    %v4645 = vunpack.c.l.b16 %v4613
    %v4646 = vunpack.c.l.b16 %v4614
    %v4647 = vunpack.c.l.b16 %v4615
    %v4648 = vunpack.c.l.b16 %v4616
    %v4649 = vunpack.c.l.b16 %v4617
    %v4650 = vunpack.c.l.b16 %v4618
    %v4651 = vunpack.c.l.b16 %v4619
    %v4652 = vunpack.c.l.b16 %v4620
    %v4653 = vunpack.c.l.b16 %v4621
    %v4654 = vunpack.c.l.b16 %v4622
    %v4655 = vunpack.c.l.b16 %v4623
    %v4656 = vunpack.c.l.b16 %v4624
    %v4657 = vpack.c.b16 %v4642, %v4641
    %v4658 = vpack.c.b16 %v4644, %v4643
    %v4659 = vpack.c.b16 %v4646, %v4645
    %v4660 = vpack.c.b16 %v4648, %v4647
    %v4661 = vpack.c.b16 %v4650, %v4649
    %v4662 = vpack.c.b16 %v4652, %v4651
    %v4663 = vpack.c.b16 %v4654, %v4653
    %v4664 = vpack.c.b16 %v4656, %v4655
    %4673 = vmatpush.bf16.msra.mxu0 %v4664
    %4674 = vmatpush.bf16.msra.mxu0 %v4663
    %4675 = vmatpush.bf16.msra.mxu0 %v4662
    %4676 = vmatpush.bf16.msra.mxu0 %v4661
    %4677 = vmatpush.bf16.msra.mxu0 %v4660
    %4678 = vmatpush.bf16.msra.mxu0 %v4659
    %4679 = vmatpush.bf16.msra.mxu0 %v4658
    %4680 = vmatpush.bf16.msra.mxu0 %v4657
    %4681 = vmatmul.bf16.gmra.mxu0 %v4600
    %v4682 = vpop.f32.mrf.mxu0
    %v4683 = vadd.f32 0.0, %v4682
    %v4684 = vpop.f32.mrf.mxu0
    %v4685 = vadd.f32 0.0, %v4684
    %4686 = vmatmul.bf16.gmra.mxu0 %v4601
    %v4687 = vpop.f32.mrf.mxu0
    %v4688 = vadd.f32 0.0, %v4687
    %v4689 = vpop.f32.mrf.mxu0
    %v4690 = vadd.f32 0.0, %v4689
    %4691 = vmatmul.bf16.gmra.mxu0 %v4602
    %v4692 = vpop.f32.mrf.mxu0
    %v4693 = vadd.f32 0.0, %v4692
    %v4694 = vpop.f32.mrf.mxu0
    %v4695 = vadd.f32 0.0, %v4694
    %4696 = vmatmul.bf16.gmra.mxu0 %v4603
    %v4697 = vpop.f32.mrf.mxu0
    %v4698 = vadd.f32 0.0, %v4697
    %v4699 = vpop.f32.mrf.mxu0
    %v4700 = vadd.f32 0.0, %v4699
    %4701 = vmatmul.bf16.gmra.mxu0 %v4604
    %v4702 = vpop.f32.mrf.mxu0
    %v4703 = vadd.f32 0.0, %v4702
    %v4704 = vpop.f32.mrf.mxu0
    %v4705 = vadd.f32 0.0, %v4704
    %4706 = vmatmul.bf16.gmra.mxu0 %v4605
    %v4707 = vpop.f32.mrf.mxu0
    %v4708 = vadd.f32 0.0, %v4707
    %v4709 = vpop.f32.mrf.mxu0
    %v4710 = vadd.f32 0.0, %v4709
    %4711 = vmatmul.bf16.gmra.mxu0 %v4606
    %v4712 = vpop.f32.mrf.mxu0
    %v4713 = vadd.f32 0.0, %v4712
    %v4714 = vpop.f32.mrf.mxu0
    %v4715 = vadd.f32 0.0, %v4714
    %4716 = vmatmul.bf16.gmra.mxu0 %v4607
    %v4717 = vpop.f32.mrf.mxu0
    %v4718 = vadd.f32 0.0, %v4717
    %v4719 = vpop.f32.mrf.mxu0
    %v4720 = vadd.f32 0.0, %v4719
    %4721 = vdwg.mxu0
    %v4722 = vadd.f32 %v4536, %v4683
    %v4723 = vadd.f32 %v4537, %v4685
    %v4724 = vadd.f32 %v4538, %v4688
    %v4725 = vadd.f32 %v4539, %v4690
    %v4726 = vadd.f32 %v4540, %v4693
    %v4727 = vadd.f32 %v4541, %v4695
    %v4728 = vadd.f32 %v4542, %v4698
    %v4729 = vadd.f32 %v4543, %v4700
    %v4730 = vadd.f32 %v4544, %v4703
    %v4731 = vadd.f32 %v4545, %v4705
    %v4732 = vadd.f32 %v4546, %v4708
    %v4733 = vadd.f32 %v4547, %v4710
    %v4734 = vadd.f32 %v4548, %v4713
    %v4735 = vadd.f32 %v4549, %v4715
    %v4736 = vadd.f32 %v4550, %v4718
    %v4737 = vadd.f32 %v4551, %v4720
    %v4738 = vadd.f32 %v4722, %v4723
    %v4739 = vadd.f32 %v4738, %v4724
    %v4740 = vadd.f32 %v4739, %v4725
    %v4741 = vadd.f32 %v4740, %v4726
    %v4742 = vadd.f32 %v4741, %v4727
    %v4743 = vadd.f32 %v4742, %v4728
    %v4744 = vadd.f32 %v4743, %v4729
    %v4745 = vadd.f32 %v4744, %v4730
    %v4746 = vadd.f32 %v4745, %v4731
    %v4747 = vadd.f32 %v4746, %v4732
    %v4748 = vadd.f32 %v4747, %v4733
    %v4749 = vadd.f32 %v4748, %v4734
    %v4750 = vadd.f32 %v4749, %v4735
    %v4751 = vadd.f32 %v4750, %v4736
    %v4752 = vadd.f32 %v4751, %v4737
    %v4753 = vrot.slane %v4752, 4
    %v4754 = vadd.f32 %v4752, %v4753
    %v4755 = vrot.slane %v4754, 2
    %v4756 = vadd.f32 %v4754, %v4755
    %v4757 = vrot.slane %v4756, 1
    %v4758 = vadd.f32 %v4756, %v4757
    %v4759 = vmul.f32 %v4758, %v668
    %v4760 = vmul.f32 %v4722, %v4722
    %v4761 = vmul.f32 %v4723, %v4723
    %v4762 = vmul.f32 %v4724, %v4724
    %v4763 = vmul.f32 %v4725, %v4725
    %v4764 = vmul.f32 %v4726, %v4726
    %v4765 = vmul.f32 %v4727, %v4727
    %v4766 = vmul.f32 %v4728, %v4728
    %v4767 = vmul.f32 %v4729, %v4729
    %v4768 = vmul.f32 %v4730, %v4730
    %v4769 = vmul.f32 %v4731, %v4731
    %v4770 = vmul.f32 %v4732, %v4732
    %v4771 = vmul.f32 %v4733, %v4733
    %v4772 = vmul.f32 %v4734, %v4734
    %v4773 = vmul.f32 %v4735, %v4735
    %v4774 = vmul.f32 %v4736, %v4736
    %v4775 = vmul.f32 %v4737, %v4737
    %v4776 = vadd.f32 %v4760, %v4761
    %v4777 = vadd.f32 %v4776, %v4762
    %v4778 = vadd.f32 %v4777, %v4763
    %v4779 = vadd.f32 %v4778, %v4764
    %v4780 = vadd.f32 %v4779, %v4765
    %v4781 = vadd.f32 %v4780, %v4766
    %v4782 = vadd.f32 %v4781, %v4767
    %v4783 = vadd.f32 %v4782, %v4768
    %v4784 = vadd.f32 %v4783, %v4769
    %v4785 = vadd.f32 %v4784, %v4770
    %v4786 = vadd.f32 %v4785, %v4771
    %v4787 = vadd.f32 %v4786, %v4772
    %v4788 = vadd.f32 %v4787, %v4773
    %v4789 = vadd.f32 %v4788, %v4774
    %v4790 = vadd.f32 %v4789, %v4775
    %v4791 = vrot.slane %v4790, 4
    %v4792 = vadd.f32 %v4790, %v4791
    %v4793 = vrot.slane %v4792, 2
    %v4794 = vadd.f32 %v4792, %v4793
    %v4795 = vrot.slane %v4794, 1
    %v4796 = vadd.f32 %v4794, %v4795
    %v4797 = vmul.f32 %v4796, %v668
    %v4798 = vmul.f32 %v4759, %v4759
    %v4799 = vsub.f32 %v4797, %v4798
    %s4800 = scalar_lea.vmem %s4, 4
    %v4801 = vld [vmem:[%s4800] sm:$0x1]
    %v4802 = vadd.f32 %v4799, 1e-05
    %v4803 = vrsqrt.pop %v4802
    %v4804 = vmul.f32 %v4803, %v4802
    %v4805 = vmul.f32 %v4804, %v4803
    %v4806 = vmul.f32 0.5, %v4805
    %v4807 = vsub.f32 1.5, %v4806
    %v4808 = vmul.f32 %v4803, %v4807
    %vm4809 = vweird.f32 %v4802
    %vm4810 = vweird.f32 %v4803
    %vm4811 = vmor %vm4809, %vm4810
    %v4812 = vsel %vm4811, %v4803, %v4808
    %v4813 = vmul.f32 %v4801, %v4812
    %s4814 = scalar_lea.vmem %s5, 4
    %v4815 = vld [vmem:[%s4814] sm:$0x1]
    %v4816 = vmul.f32 %v4759, %v4813
    %v4817 = vsub.f32 %v4815, %v4816
    %v4819 = vperm.slane %v4813, 0
    %v4821 = vmul.f32 %v4722, %v4819
    %v4822 = vmul.f32 %v4723, %v4819
    %v4823 = vmul.f32 %v4724, %v4819
    %v4824 = vmul.f32 %v4725, %v4819
    %v4825 = vmul.f32 %v4726, %v4819
    %v4826 = vmul.f32 %v4727, %v4819
    %v4827 = vmul.f32 %v4728, %v4819
    %v4828 = vmul.f32 %v4729, %v4819
    %v4829 = vmul.f32 %v4730, %v4819
    %v4830 = vmul.f32 %v4731, %v4819
    %v4831 = vmul.f32 %v4732, %v4819
    %v4832 = vmul.f32 %v4733, %v4819
    %v4833 = vmul.f32 %v4734, %v4819
    %v4834 = vmul.f32 %v4735, %v4819
    %v4835 = vmul.f32 %v4736, %v4819
    %v4836 = vmul.f32 %v4737, %v4819
    %v4838 = vperm.slane %v4817, 0
    %v4840 = vadd.f32 %v4821, %v4838
    %v4841 = vadd.f32 %v4822, %v4838
    %v4842 = vadd.f32 %v4823, %v4838
    %v4843 = vadd.f32 %v4824, %v4838
    %v4844 = vadd.f32 %v4825, %v4838
    %v4845 = vadd.f32 %v4826, %v4838
    %v4846 = vadd.f32 %v4827, %v4838
    %v4847 = vadd.f32 %v4828, %v4838
    %v4848 = vadd.f32 %v4829, %v4838
    %v4849 = vadd.f32 %v4830, %v4838
    %v4850 = vadd.f32 %v4831, %v4838
    %v4851 = vadd.f32 %v4832, %v4838
    %v4852 = vadd.f32 %v4833, %v4838
    %v4853 = vadd.f32 %v4834, %v4838
    %v4854 = vadd.f32 %v4835, %v4838
    %v4855 = vadd.f32 %v4836, %v4838
    %v4856 = vadd.f32 %v2867, %v4840
    %v4857 = vadd.f32 %v2868, %v4841
    %v4858 = vadd.f32 %v2869, %v4842
    %v4859 = vadd.f32 %v2870, %v4843
    %v4860 = vadd.f32 %v2871, %v4844
    %v4861 = vadd.f32 %v2872, %v4845
    %v4862 = vadd.f32 %v2873, %v4846
    %v4863 = vadd.f32 %v2874, %v4847
    %v4864 = vadd.f32 %v2875, %v4848
    %v4865 = vadd.f32 %v2876, %v4849
    %v4866 = vadd.f32 %v2877, %v4850
    %v4867 = vadd.f32 %v2878, %v4851
    %v4868 = vadd.f32 %v2879, %v4852
    %v4869 = vadd.f32 %v2880, %v4853
    %v4870 = vadd.f32 %v2881, %v4854
    %v4871 = vadd.f32 %v2882, %v4855
    %v4872 = vrot.slane %v4856, 1
    %v4873 = vrot.slane %v4857, 1
    %v4874 = vrot.slane %v4858, 1
    %v4875 = vrot.slane %v4859, 1
    %v4876 = vrot.slane %v4860, 1
    %v4877 = vrot.slane %v4861, 1
    %v4878 = vrot.slane %v4862, 1
    %v4879 = vrot.slane %v4863, 1
    %v4880 = vrot.slane %v4864, 1
    %v4881 = vrot.slane %v4865, 1
    %v4882 = vrot.slane %v4866, 1
    %v4883 = vrot.slane %v4867, 1
    %v4884 = vrot.slane %v4868, 1
    %v4885 = vrot.slane %v4869, 1
    %v4886 = vrot.slane %v4870, 1
    %v4887 = vrot.slane %v4871, 1
    %v4888 = vsel %vm1323, %v4886, %v4887
    %v4889 = vsel %vm1323, %v4885, %v4886
    %v4890 = vsel %vm1323, %v4884, %v4885
    %v4891 = vsel %vm1323, %v4883, %v4884
    %v4892 = vsel %vm1323, %v4882, %v4883
    %v4893 = vsel %vm1323, %v4881, %v4882
    %v4894 = vsel %vm1323, %v4880, %v4881
    %v4895 = vsel %vm1323, %v4879, %v4880
    %v4896 = vsel %vm1323, %v4878, %v4879
    %v4897 = vsel %vm1323, %v4877, %v4878
    %v4898 = vsel %vm1323, %v4876, %v4877
    %v4899 = vsel %vm1323, %v4875, %v4876
    %v4900 = vsel %vm1323, %v4874, %v4875
    %v4901 = vsel %vm1323, %v4873, %v4874
    %v4902 = vsel %vm1323, %v4872, %v4873
    %v4903 = vsel %vm1323, %v4887, %v4872
    %v4904 = vmax.f32 %v4856, %v4902
    %v4905 = vmax.f32 %v4857, %v4901
    %v4906 = vmax.f32 %v4858, %v4900
    %v4907 = vmax.f32 %v4859, %v4899
    %v4908 = vmax.f32 %v4860, %v4898
    %v4909 = vmax.f32 %v4861, %v4897
    %v4910 = vmax.f32 %v4862, %v4896
    %v4911 = vmax.f32 %v4863, %v4895
    %v4912 = vmax.f32 %v4864, %v4894
    %v4913 = vmax.f32 %v4865, %v4893
    %v4914 = vmax.f32 %v4866, %v4892
    %v4915 = vmax.f32 %v4867, %v4891
    %v4916 = vmax.f32 %v4868, %v4890
    %v4917 = vmax.f32 %v4869, %v4889
    %v4918 = vmax.f32 %v4870, %v4888
    %v4919 = vmax.f32 %v4871, %v4903
    %4920 = vst [vmem:[#allocation2] sm:$0xff] %v4904
    %4921 = vst [vmem:[#allocation2 + $0x8] sm:$0xff] %v4905
    %4922 = vst [vmem:[#allocation2 + $0x10] sm:$0xff] %v4906
    %4923 = vst [vmem:[#allocation2 + $0x18] sm:$0xff] %v4907
    %4924 = vst [vmem:[#allocation2 + $0x20] sm:$0xff] %v4908
    %4925 = vst [vmem:[#allocation2 + $0x28] sm:$0xff] %v4909
    %4926 = vst [vmem:[#allocation2 + $0x30] sm:$0xff] %v4910
    %4927 = vst [vmem:[#allocation2 + $0x38] sm:$0xff] %v4911
    %4928 = vst [vmem:[#allocation2 + $0x40] sm:$0xff] %v4912
    %4929 = vst [vmem:[#allocation2 + $0x48] sm:$0xff] %v4913
    %4930 = vst [vmem:[#allocation2 + $0x50] sm:$0xff] %v4914
    %4931 = vst [vmem:[#allocation2 + $0x58] sm:$0xff] %v4915
    %4932 = vst [vmem:[#allocation2 + $0x60] sm:$0xff] %v4916
    %4933 = vst [vmem:[#allocation2 + $0x68] sm:$0xff] %v4917
    %4934 = vst [vmem:[#allocation2 + $0x70] sm:$0xff] %v4918
    %4935 = vst [vmem:[#allocation2 + $0x78] sm:$0xff] %v4919
    %v4936 = vld [vmem:[#allocation2] ss:$2 sm:$0xff]
    %s4937 = scalar_lea.vmem [#allocation2], 16
    %v4938 = vld [vmem:[%s4937] ss:$2 sm:$0xff]
    %s4939 = scalar_lea.vmem [#allocation2], 32
    %v4940 = vld [vmem:[%s4939] ss:$2 sm:$0xff]
    %s4941 = scalar_lea.vmem [#allocation2], 48
    %v4942 = vld [vmem:[%s4941] ss:$2 sm:$0xff]
    %s4943 = scalar_lea.vmem [#allocation2], 64
    %v4944 = vld [vmem:[%s4943] ss:$2 sm:$0xff]
    %s4945 = scalar_lea.vmem [#allocation2], 80
    %v4946 = vld [vmem:[%s4945] ss:$2 sm:$0xff]
    %s4947 = scalar_lea.vmem [#allocation2], 96
    %v4948 = vld [vmem:[%s4947] ss:$2 sm:$0xff]
    %s4949 = scalar_lea.vmem [#allocation2], 112
    %v4950 = vld [vmem:[%s4949] ss:$2 sm:$0xff]
    %4951 = vst [vmem:[#allocation6] sm:$0xff] %v4936
    %4952 = vst [vmem:[#allocation6 + $0x8] sm:$0xff] %v4938
    %4953 = vst [vmem:[#allocation6 + $0x10] sm:$0xff] %v4940
    %4954 = vst [vmem:[#allocation6 + $0x18] sm:$0xff] %v4942
    %4955 = vst [vmem:[#allocation6 + $0x20] sm:$0xff] %v4944
    %4956 = vst [vmem:[#allocation6 + $0x28] sm:$0xff] %v4946
    %4957 = vst [vmem:[#allocation6 + $0x30] sm:$0xff] %v4948
    %4958 = vst [vmem:[#allocation6 + $0x38] sm:$0xff] %v4950
    // Predicated region
    $region30: #{tpu_custom_call.1} parent=1 // pred_check
      _
    $region31: #{tpu_custom_call.1} parent=1 // pred_check_branch
      %4960 = sbr.rel (0) target = $region33
    $region32: #{tpu_custom_call.1} parent=1 // pred_region
      %4962 = vsyncadd [#allocation5], 0
      %s4963 = sshll.u32 [#allocation6], 4
      %s4964 = int_to_ptr.vmem [resolvable:$true] %s4963
      %s4965 = sshll.u32 %s6, 4
      %s4966 = int_to_ptr.hbm [resolvable:$true] %s4965
      %4971 = dma.vmem_to_hbm [thread:$0]  %s4964, 1024, %s4966, [#allocation5], 128, 128, 8
    $region33: #{tpu_custom_call.1} parent=1 // pred_fallthru
      _
    // Predicated region
    $region34: #{tpu_custom_call.1} parent=1 // pred_check
      _
    $region35: #{tpu_custom_call.1} parent=1 // pred_check_branch
      %4973 = sbr.rel (0) target = $region37
    $region36: #{tpu_custom_call.1} parent=1 // pred_region
      %4975 = dma.done [#allocation5], 1024
    $region37: #{tpu_custom_call.1} parent=1 // pred_fallthru
      _
    %4976 = vsyncpa [#allocation4], 1
    %4977 = vsyncpa [#allocation5], 1

</llo_original>
